<compile_context>
chip_gen: v5e
topology: v5e:2x2
jax: 0.10.0
libtpu: 0.0.40
codegen_flags: <defaults>
</compile_context>

<pallas_src>
import functools

import jax
import jax.numpy as jnp
from jax import lax
from jax.experimental import pallas as pl
from jax.experimental.pallas import tpu as pltpu


def _round_up(x, m):
    return ((x + m - 1) // m) * m


# ---------------------------------------------------------------------------
# One GRU step + output projection + log-softmax (pure in-kernel math).
#   x_bf16 : (Bt, Ep) bf16, already ReLU'd embedding
#   h      : (Bt, Hp) f32 recurrent state (pad lanes are exactly 0)
#   w_ref  : (Ep+Hp, 4*Gp) bf16 fused gate weight  [ r | z | n_x | n_h ]
#   b_ref  : (1, 4*Gp) f32 fused gate bias
#   wout_ref: (Hp, Vp) bf16  /  bout_ref: (1, Vp) f32 (-1e30 on pad vocab cols)
# ---------------------------------------------------------------------------
def _gru_step(x_bf16, h, w_ref, b_ref, wout_ref, bout_ref):
    f32 = jnp.float32
    Gp = b_ref.shape[-1] // 4
    xh = jnp.concatenate([x_bf16, h.astype(jnp.bfloat16)], axis=1)       # (Bt, Ep+Hp)
    # Single fused gate matmul: one MXU push per step for all gates.
    g = jnp.dot(xh, w_ref[...], preferred_element_type=f32) + b_ref[...]  # (Bt, 4Gp)
    r = jax.nn.sigmoid(g[:, 0:Gp])
    z = jax.nn.sigmoid(g[:, Gp:2 * Gp])
    n = jnp.tanh(g[:, 2 * Gp:3 * Gp] + r * g[:, 3 * Gp:4 * Gp])
    h_new = (1.0 - z) * n + z * h
    logits = jnp.dot(h_new.astype(jnp.bfloat16), wout_ref[...],
                     preferred_element_type=f32) + bout_ref[...]          # (Bt, Vp)
    m = jnp.max(logits, axis=-1, keepdims=True)
    sh = logits - m
    logsm = sh - jnp.log(jnp.sum(jnp.exp(sh), axis=-1, keepdims=True))
    return h_new, logits, m, logsm


# ---------------------------------------------------------------------------
# Teacher-forcing kernel: one grid step per batch tile, all T timesteps inside.
# ---------------------------------------------------------------------------
def _decoder_tf_kernel(emb_ref, h0_ref, w_ref, b_ref, wout_ref, bout_ref,
                       out_ref, hT_ref, *, unroll):
    T = out_ref.shape[0]

    def step(t, h):
        h_new, _, _, logsm = _gru_step(emb_ref[t], h, w_ref, b_ref,
                                       wout_ref, bout_ref)
        out_ref[t] = logsm
        return h_new

    hT_ref[...] = lax.fori_loop(0, T, step, h0_ref[...], unroll=unroll)


# ---------------------------------------------------------------------------
# Greedy-decode kernel: argmax token's embedding fed back each step.
# Embedding feedback = one_hot(argmax) @ (pre-ReLU'd) embedding table.
# ---------------------------------------------------------------------------
def _decoder_greedy_kernel(emb0_ref, h0_ref, w_ref, b_ref, wout_ref, bout_ref,
                           embtab_ref, out_ref, hT_ref, *, unroll):
    T, Bt, Vp = out_ref.shape
    Ep = embtab_ref.shape[-1]
    # Loop-invariant constructions hoisted out of the timestep loop.
    iota = lax.broadcasted_iota(jnp.int32, (Bt, Vp), 1)
    x0 = jnp.broadcast_to(emb0_ref[...], (Bt, Ep))            # SOS embedding (bf16)

    def step(t, carry):
        h, x = carry
        h_new, logits, m, logsm = _gru_step(x, h, w_ref, b_ref,
                                            wout_ref, bout_ref)
        out_ref[t] = logsm
        # torch.argmax(dim=2): first index of the max.  Padded vocab columns
        # carry a -1e30 bias so they can never win.
        idx = jnp.min(jnp.where(logits == m, iota, Vp), axis=-1, keepdims=True)
        onehot = (iota == idx).astype(jnp.bfloat16)            # (Bt, Vp)
        # TODO(synk): for large V, tile w_out + online log-softmax and replace
        # this one-hot matmul with an SMEM-indexed row gather / DMA.
        x_next = jnp.dot(onehot, embtab_ref[...],
                         preferred_element_type=jnp.float32).astype(jnp.bfloat16)
        return h_new, x_next

    h_final, _ = lax.fori_loop(0, T, step, (h0_ref[...], x0), unroll=unroll)
    hT_ref[...] = h_final


# ---------------------------------------------------------------------------
# Decoder module (parameters + wrapper that invokes the Pallas kernels)
# ---------------------------------------------------------------------------
class PallasDecoder:
    def __init__(self, embedding_vectors, hidden_size, sos_index, key):
        emb = jnp.asarray(embedding_vectors, jnp.float32)                # (V, E)
        V, E = emb.shape
        H = hidden_size
        self.V, self.E, self.H = V, E, H
        self.hidden_size = H
        self.sos_index = int(sos_index)

        # lane-aligned padded dims
        self.Vp = _round_up(V, 128)
        self.Ep = _round_up(E, 128)
        self.Gp = _round_up(H, 128)     # per-gate lane width == padded hidden width
        self.Hp = self.Gp

        self.emb_f32 = emb              # kept for the pure-JAX reference
        # Pre-ReLU'd, padded, bf16 embedding table (used for TF gather, greedy
        # one-hot feedback, and the SOS row).
        emb_relu = jnp.maximum(emb, 0.0)
        self.emb_tab_p = (jnp.zeros((self.Vp, self.Ep), jnp.bfloat16)
                          .at[:V, :E].set(emb_relu.astype(jnp.bfloat16)))

        ks = jax.random.split(key, 6)
        s = 1.0 / jnp.sqrt(jnp.float32(H))   # torch GRU/Linear init U(-1/sqrt(H), 1/sqrt(H))
        w_ih = jax.random.uniform(ks[0], (3, H, E), jnp.float32, -s, s)   # gates (r,z,n)
        w_hh = jax.random.uniform(ks[1], (3, H, H), jnp.float32, -s, s)
        b_ih = jax.random.uniform(ks[2], (3, H), jnp.float32, -s, s)
        b_hh = jax.random.uniform(ks[3], (3, H), jnp.float32, -s, s)
        w_out = jax.random.uniform(ks[4], (V, H), jnp.float32, -s, s)     # Linear(H, V)
        b_out = jax.random.uniform(ks[5], (V,), jnp.float32, -s, s)
        # raw params kept for the reference implementation
        self.w_ih, self.w_hh, self.b_ih, self.b_hh = w_ih, w_hh, b_ih, b_hh
        self.w_out_raw, self.b_out_raw = w_out, b_out

        Ep, Hp, Gp, Vp = self.Ep, self.Hp, self.Gp, self.Vp
        # Fused gate weight: [x | h] @ W_comb gives
        #   cols 0*Gp:   W_ir x + W_hr h     (r pre-activation)
        #   cols 1*Gp:   W_iz x + W_hz h     (z pre-activation)
        #   cols 2*Gp:   W_in x              (n input part)
        #   cols 3*Gp:   W_hn h              (n hidden part, scaled by r)
        w = jnp.zeros((Ep + Hp, 4 * Gp), jnp.float32)
        w = w.at[:E,        0 * Gp:0 * Gp + H].set(w_ih[0].T)
        w = w.at[Ep:Ep + H, 0 * Gp:0 * Gp + H].set(w_hh[0].T)
        w = w.at[:E,        1 * Gp:1 * Gp + H].set(w_ih[1].T)
        w = w.at[Ep:Ep + H, 1 * Gp:1 * Gp + H].set(w_hh[1].T)
        w = w.at[:E,        2 * Gp:2 * Gp + H].set(w_ih[2].T)
        w = w.at[Ep:Ep + H, 3 * Gp:3 * Gp + H].set(w_hh[2].T)
        self.w_comb = w.astype(jnp.bfloat16)                              # (Ep+Hp, 4Gp)

        b = jnp.zeros((1, 4 * Gp), jnp.float32)
        b = b.at[0, 0 * Gp:0 * Gp + H].set(b_ih[0] + b_hh[0])
        b = b.at[0, 1 * Gp:1 * Gp + H].set(b_ih[1] + b_hh[1])
        b = b.at[0, 2 * Gp:2 * Gp + H].set(b_ih[2])
        b = b.at[0, 3 * Gp:3 * Gp + H].set(b_hh[2])
        self.b_comb = b                                                   # (1, 4Gp) f32

        # Lane-dense padded output projection: zero weight rows/cols, -1e30 bias
        # on padded vocab columns (never win the max; exp underflows to 0).
        self.w_out_p = (jnp.zeros((Hp, Vp), jnp.bfloat16)
                        .at[:H, :V].set(w_out.T.astype(jnp.bfloat16)))    # (Hp, Vp)
        self.b_out_p = (jnp.full((1, Vp), -1e30, jnp.float32)
                        .at[0, :V].set(b_out))                            # (1, Vp)

    def __call__(self, hidden, pad_tgt_seqs=None, teacher_forcing=False, max_length=8):
        if pad_tgt_seqs is None:
            assert not teacher_forcing, "Cannot use teacher forcing without a target sequence."
        B = hidden.shape[1]
        V, H = self.V, self.H
        Ep, Hp, Gp, Vp = self.Ep, self.Hp, self.Gp, self.Vp

        # Batch padding + batch-tile grid (single "parallel" axis: v7x can shard
        # large decode batches across its two TensorCores; no-op at small B).
        Bt = min(_round_up(max(B, 8), 8), 256)
        Bp = _round_up(max(B, 8), Bt)
        nb = Bp // Bt

        h0_p = jnp.zeros((Bp, Hp), jnp.float32).at[:B, :H].set(hidden[0])

        T = max_length if pad_tgt_seqs is None else int(pad_tgt_seqs.shape[0])
        unroll = True if T <= 16 else 8     # full unroll for short fixed T

        weight_specs = [
            pl.BlockSpec((Ep + Hp, 4 * Gp), lambda b: (0, 0)),   # w_comb
            pl.BlockSpec((1, 4 * Gp), lambda b: (0, 0)),         # b_comb
            pl.BlockSpec((Hp, Vp), lambda b: (0, 0)),            # w_out
            pl.BlockSpec((1, Vp), lambda b: (0, 0)),             # b_out
        ]
        weight_args = (self.w_comb, self.b_comb, self.w_out_p, self.b_out_p)
        out_shapes = (jax.ShapeDtypeStruct((T, Bp, Vp), jnp.float32),
                      jax.ShapeDtypeStruct((Bp, Hp), jnp.float32))
        out_specs = (pl.BlockSpec((T, Bt, Vp), lambda b: (0, b, 0)),
                     pl.BlockSpec((Bt, Hp), lambda b: (b, 0)))
        cparams = pltpu.CompilerParams(dimension_semantics=("parallel",))

        if teacher_forcing:
            sosrow = jnp.full((1, B), self.sos_index, dtype=jnp.int32)
            toks = jnp.concatenate([sosrow, pad_tgt_seqs[:-1].astype(jnp.int32)], axis=0)
            # gather = plain-JAX glue; table is already ReLU'd + bf16 + padded
            embedded = self.emb_tab_p[toks]                               # (T, B, Ep)
            embedded_p = jnp.zeros((T, Bp, Ep), jnp.bfloat16).at[:, :B].set(embedded)

            out_p, hT_p = pl.pallas_call(
                functools.partial(_decoder_tf_kernel, unroll=unroll),
                grid=(nb,),
                out_shape=out_shapes,
                in_specs=[pl.BlockSpec((T, Bt, Ep), lambda b: (0, b, 0)),  # embeddings
                          pl.BlockSpec((Bt, Hp), lambda b: (b, 0))]        # h0
                         + weight_specs,
                out_specs=out_specs,
                compiler_params=cparams,
            )(embedded_p, h0_p, *weight_args)
        else:
            emb0 = self.emb_tab_p[self.sos_index][None, :]                # (1, Ep) bf16

            out_p, hT_p = pl.pallas_call(
                functools.partial(_decoder_greedy_kernel, unroll=unroll),
                grid=(nb,),
                out_shape=out_shapes,
                in_specs=[pl.BlockSpec((1, Ep), lambda b: (0, 0)),         # SOS emb
                          pl.BlockSpec((Bt, Hp), lambda b: (b, 0))]        # h0
                         + weight_specs
                         + [pl.BlockSpec((Vp, Ep), lambda b: (0, 0))],     # emb table
                out_specs=out_specs,
                compiler_params=cparams,
            )(emb0, h0_p, *weight_args, self.emb_tab_p)

        out = out_p[:, :B, :V]
        hT = hT_p[:B, :H]
        return out, hT[None]                    # ((T,B,V), (1,B,H)) like PyTorch


if __name__ == "__main__":
    key = jax.random.PRNGKey(0)
    k_emb, k_params, k_h, k_tgt = jax.random.split(key, 4)

    V, E, H, B, T = 48, 16, 32, 4, 8
    SOS = 1

    embedding_vectors = jax.random.normal(k_emb, (V, E), dtype=jnp.float32)
    dec = PallasDecoder(embedding_vectors, hidden_size=H, sos_index=SOS, key=k_params)

    hidden = jax.random.normal(k_h, (1, B, H), dtype=jnp.float32)
    pad_tgt_seqs = jax.random.randint(k_tgt, (T, B), 0, V).astype(jnp.int32)

    # teacher-forcing path
    out_tf, h_tf = dec(hidden, pad_tgt_seqs, teacher_forcing=True)
    # greedy (argmax feedback) path
    out_gr, h_gr = dec(hidden, pad_tgt_seqs, teacher_forcing=False)
    jax.block_until_ready((out_tf, h_tf, out_gr, h_gr))

    # structural checks
    assert out_tf.shape == (T, B, V) and h_tf.shape == (1, B, H)
    assert out_gr.shape == (T, B, V) and h_gr.shape == (1, B, H)
    assert bool(jnp.all(jnp.isfinite(out_tf))) and bool(jnp.all(jnp.isfinite(out_gr)))
    # log-softmax rows must normalize to 1 in probability space
    assert bool(jnp.allclose(jnp.sum(jnp.exp(out_tf), axis=-1), 1.0, atol=1e-3))
    assert bool(jnp.allclose(jnp.sum(jnp.exp(out_gr), axis=-1), 1.0, atol=1e-3))
    # first greedy step uses the SOS embedding, so it must equal the first TF step
    assert bool(jnp.allclose(out_gr[0], out_tf[0], atol=1e-4, rtol=1e-4))

    # plain-JAX reference for the teacher-forcing path (same bf16 weights / f32 accum)
    # NOTE: weights are intentionally quantized to bf16 for the MXU, a deliberate
    # numerical deviation from the f32 PyTorch reference (covered by tolerance).
    def ref_tf(hidden, tgt):
        toks = jnp.concatenate([jnp.full((1, B), SOS, jnp.int32), tgt[:-1]], axis=0)
        xs = jnp.maximum(dec.emb_f32[toks], 0.0).astype(jnp.bfloat16)
        wi = jnp.concatenate([dec.w_ih[g].T for g in range(3)], axis=1).astype(jnp.bfloat16)
        wh = jnp.concatenate([dec.w_hh[g].T for g in range(3)], axis=1).astype(jnp.bfloat16)
        wo = dec.w_out_raw.T.astype(jnp.bfloat16)
        bo = dec.b_out_raw[None, :]

        def cell(h, x):
            gi = jnp.dot(x, wi, preferred_element_type=jnp.float32)
            gh = jnp.dot(h.astype(jnp.bfloat16), wh, preferred_element_type=jnp.float32)
            r = jax.nn.sigmoid(gi[:, :H] + gh[:, :H] + dec.b_ih[0] + dec.b_hh[0])
            z = jax.nn.sigmoid(gi[:, H:2 * H] + gh[:, H:2 * H] + dec.b_ih[1] + dec.b_hh[1])
            n = jnp.tanh(gi[:, 2 * H:] + dec.b_ih[2] + r * (gh[:, 2 * H:] + dec.b_hh[2]))
            h_new = (1.0 - z) * n + z * h
            logits = jnp.dot(h_new.astype(jnp.bfloat16), wo,
                             preferred_element_type=jnp.float32) + bo
            return h_new, jax.nn.log_softmax(logits, axis=-1)

        hT, outs = lax.scan(cell, hidden[0], xs)
        return outs, hT[None]

    ref_out, ref_h = ref_tf(hidden, pad_tgt_seqs)
    assert bool(jnp.allclose(out_tf, ref_out, atol=3e-2, rtol=3e-2))
    assert bool(jnp.allclose(h_tf, ref_h, atol=3e-2, rtol=3e-2))

    print("KERNEL_OK")
</pallas_src>

<mosaic_0001>
module attributes {stable_mosaic.version = 11 : i64} {
  func.func @_decoder_tf_kernel(%arg0: i32, %arg1: memref<8x8x128xbf16, #tpu.memory_space<vmem>>, %arg2: memref<8x128xf32, #tpu.memory_space<vmem>>, %arg3: memref<256x512xbf16, #tpu.memory_space<vmem>>, %arg4: memref<1x512xf32, #tpu.memory_space<vmem>>, %arg5: memref<128x128xbf16, #tpu.memory_space<vmem>>, %arg6: memref<1x128xf32, #tpu.memory_space<vmem>>, %arg7: memref<8x8x128xf32, #tpu.memory_space<vmem>>, %arg8: memref<8x128xf32, #tpu.memory_space<vmem>>) attributes {dimension_semantics = [#tpu.dimension_semantics<parallel>], iteration_bounds = array<i64: 1>, scalar_prefetch = 0 : i64, scratch_operands = 0 : i64, tpu.core_type = #tpu.core_type<tc>, window_params = [{transform_indices = @transform_0, window_bounds = array<i64: 8, 8, 128>}, {transform_indices = @transform_1, window_bounds = array<i64: 8, 128>}, {pipeline_mode = #tpu.pipeline_mode<synchronous>, transform_indices = @transform_2, window_bounds = array<i64: 256, 512>}, {pipeline_mode = #tpu.pipeline_mode<synchronous>, transform_indices = @transform_3, window_bounds = array<i64: 1, 512>}, {pipeline_mode = #tpu.pipeline_mode<synchronous>, transform_indices = @transform_4, window_bounds = array<i64: 128, 128>}, {pipeline_mode = #tpu.pipeline_mode<synchronous>, transform_indices = @transform_5, window_bounds = array<i64: 1, 128>}, {transform_indices = @transform_6, window_bounds = array<i64: 8, 8, 128>}, {transform_indices = @transform_7, window_bounds = array<i64: 8, 128>}]} {
    %c0 = arith.constant 0 : index
    %c0_0 = arith.constant 0 : index
    %0 = vector.load %arg2[%c0, %c0_0] : memref<8x128xf32, #tpu.memory_space<vmem>>, vector<8x128xf32>
    %c0_i32 = arith.constant 0 : i32
    %1 = arith.index_cast %c0_i32 : i32 to index
    %c0_1 = arith.constant 0 : index
    %c0_2 = arith.constant 0 : index
    %2 = vector.load %arg1[%1, %c0_1, %c0_2] : memref<8x8x128xbf16, #tpu.memory_space<vmem>>, vector<1x8x128xbf16>
    %3 = vector.shape_cast %2 : vector<1x8x128xbf16> to vector<8x128xbf16>
    %4 = arith.truncf %0 : vector<8x128xf32> to vector<8x128xbf16>
    %5 = tpu.concatenate %3, %4 in 1 : vector<8x128xbf16>, vector<8x128xbf16> -> vector<8x256xbf16>
    %c0_3 = arith.constant 0 : index
    %c0_4 = arith.constant 0 : index
    %6 = vector.load %arg3[%c0_3, %c0_4] : memref<256x512xbf16, #tpu.memory_space<vmem>>, vector<256x512xbf16>
    %cst = arith.constant dense<0.000000e+00> : vector<8x512xf32>
    %7 = tpu.matmul %5, %6, %cst {dimension_numbers = #tpu.dot_dimension_numbers<[1], [0], [0], [1], [0, 0, 1, 1], [], []>} : vector<8x256xbf16>, vector<256x512xbf16>, vector<8x512xf32> -> vector<8x512xf32>
    %c0_5 = arith.constant 0 : index
    %c0_6 = arith.constant 0 : index
    %8 = vector.load %arg4[%c0_5, %c0_6] : memref<1x512xf32, #tpu.memory_space<vmem>>, vector<1x512xf32>
    %9 = vector.broadcast %8 : vector<1x512xf32> to vector<8x512xf32>
    %10 = arith.addf %7, %9 : vector<8x512xf32>
    %11 = vector.extract_strided_slice %10 {offsets = [0, 0], sizes = [8, 128], strides = [1, 1]} : vector<8x512xf32> to vector<8x128xf32>
    %12 = arith.negf %11 : vector<8x128xf32>
    %13 = math.exp %12 : vector<8x128xf32>
    %cst_7 = arith.constant 1.000000e+00 : f32
    %14 = vector.broadcast %cst_7 : f32 to vector<8x128xf32>
    %15 = arith.addf %14, %13 : vector<8x128xf32>
    %16 = arith.divf %14, %15 : vector<8x128xf32>
    %17 = vector.extract_strided_slice %10 {offsets = [0, 128], sizes = [8, 128], strides = [1, 1]} : vector<8x512xf32> to vector<8x128xf32>
    %18 = arith.negf %17 : vector<8x128xf32>
    %19 = math.exp %18 : vector<8x128xf32>
    %cst_8 = arith.constant 1.000000e+00 : f32
    %20 = vector.broadcast %cst_8 : f32 to vector<8x128xf32>
    %21 = arith.addf %20, %19 : vector<8x128xf32>
    %22 = arith.divf %20, %21 : vector<8x128xf32>
    %23 = vector.extract_strided_slice %10 {offsets = [0, 256], sizes = [8, 128], strides = [1, 1]} : vector<8x512xf32> to vector<8x128xf32>
    %24 = vector.extract_strided_slice %10 {offsets = [0, 384], sizes = [8, 128], strides = [1, 1]} : vector<8x512xf32> to vector<8x128xf32>
    %25 = arith.mulf %16, %24 : vector<8x128xf32>
    %26 = arith.addf %23, %25 : vector<8x128xf32>
    %27 = math.tanh %26 : vector<8x128xf32>
    %cst_9 = arith.constant 1.000000e+00 : f32
    %28 = vector.broadcast %cst_9 : f32 to vector<8x128xf32>
    %29 = arith.subf %28, %22 : vector<8x128xf32>
    %30 = arith.mulf %29, %27 : vector<8x128xf32>
    %31 = arith.mulf %22, %0 : vector<8x128xf32>
    %32 = arith.addf %30, %31 : vector<8x128xf32>
    %33 = arith.truncf %32 : vector<8x128xf32> to vector<8x128xbf16>
    %c0_10 = arith.constant 0 : index
    %c0_11 = arith.constant 0 : index
    %34 = vector.load %arg5[%c0_10, %c0_11] : memref<128x128xbf16, #tpu.memory_space<vmem>>, vector<128x128xbf16>
    %cst_12 = arith.constant dense<0.000000e+00> : vector<8x128xf32>
    %35 = tpu.matmul %33, %34, %cst_12 {dimension_numbers = #tpu.dot_dimension_numbers<[1], [0], [0], [1], [0, 0, 1, 1], [], []>} : vector<8x128xbf16>, vector<128x128xbf16>, vector<8x128xf32> -> vector<8x128xf32>
    %c0_13 = arith.constant 0 : index
    %c0_14 = arith.constant 0 : index
    %36 = vector.load %arg6[%c0_13, %c0_14] : memref<1x128xf32, #tpu.memory_space<vmem>>, vector<1x128xf32>
    %37 = vector.broadcast %36 : vector<1x128xf32> to vector<8x128xf32>
    %38 = arith.addf %35, %37 : vector<8x128xf32>
    %cst_15 = arith.constant dense<0xFF800000> : vector<8xf32>
    %39 = vector.multi_reduction <maximumf>, %38, %cst_15 [1] : vector<8x128xf32> to vector<8xf32>
    %40 = vector.shape_cast %39 : vector<8xf32> to vector<8x1xf32>
    %41 = vector.broadcast %40 : vector<8x1xf32> to vector<8x128xf32>
    %42 = arith.subf %38, %41 : vector<8x128xf32>
    %43 = math.exp %42 : vector<8x128xf32>
    %cst_16 = arith.constant dense<0.000000e+00> : vector<8xf32>
    %44 = vector.multi_reduction <add>, %43, %cst_16 [1] : vector<8x128xf32> to vector<8xf32>
    %45 = vector.shape_cast %44 : vector<8xf32> to vector<8x1xf32>
    %46 = math.log %45 : vector<8x1xf32>
    %47 = vector.broadcast %46 : vector<8x1xf32> to vector<8x128xf32>
    %48 = arith.subf %42, %47 : vector<8x128xf32>
    %49 = arith.index_cast %c0_i32 : i32 to index
    %c0_17 = arith.constant 0 : index
    %c0_18 = arith.constant 0 : index
    %50 = vector.load %arg7[%49, %c0_17, %c0_18] : memref<8x8x128xf32, #tpu.memory_space<vmem>>, vector<1x8x128xf32>
    %51 = vector.shape_cast %50 : vector<1x8x128xf32> to vector<8x128xf32>
    %52 = vector.shape_cast %48 : vector<8x128xf32> to vector<1x8x128xf32>
    tpu.vector_store %arg7[%49, %c0_17, %c0_18], %52 {strides = array<i32>} : memref<8x8x128xf32, #tpu.memory_space<vmem>>, vector<1x8x128xf32>,
    %c1_i32 = arith.constant 1 : i32
    %53 = arith.index_cast %c1_i32 : i32 to index
    %c0_19 = arith.constant 0 : index
    %c0_20 = arith.constant 0 : index
    %54 = vector.load %arg1[%53, %c0_19, %c0_20] : memref<8x8x128xbf16, #tpu.memory_space<vmem>>, vector<1x8x128xbf16>
    %55 = vector.shape_cast %54 : vector<1x8x128xbf16> to vector<8x128xbf16>
    %56 = arith.truncf %32 : vector<8x128xf32> to vector<8x128xbf16>
    %57 = tpu.concatenate %55, %56 in 1 : vector<8x128xbf16>, vector<8x128xbf16> -> vector<8x256xbf16>
    %c0_21 = arith.constant 0 : index
    %c0_22 = arith.constant 0 : index
    %58 = vector.load %arg3[%c0_21, %c0_22] : memref<256x512xbf16, #tpu.memory_space<vmem>>, vector<256x512xbf16>
    %cst_23 = arith.constant dense<0.000000e+00> : vector<8x512xf32>
    %59 = tpu.matmul %57, %58, %cst_23 {dimension_numbers = #tpu.dot_dimension_numbers<[1], [0], [0], [1], [0, 0, 1, 1], [], []>} : vector<8x256xbf16>, vector<256x512xbf16>, vector<8x512xf32> -> vector<8x512xf32>
    %c0_24 = arith.constant 0 : index
    %c0_25 = arith.constant 0 : index
    %60 = vector.load %arg4[%c0_24, %c0_25] : memref<1x512xf32, #tpu.memory_space<vmem>>, vector<1x512xf32>
    %61 = vector.broadcast %60 : vector<1x512xf32> to vector<8x512xf32>
    %62 = arith.addf %59, %61 : vector<8x512xf32>
    %63 = vector.extract_strided_slice %62 {offsets = [0, 0], sizes = [8, 128], strides = [1, 1]} : vector<8x512xf32> to vector<8x128xf32>
    %64 = arith.negf %63 : vector<8x128xf32>
    %65 = math.exp %64 : vector<8x128xf32>
    %cst_26 = arith.constant 1.000000e+00 : f32
    %66 = vector.broadcast %cst_26 : f32 to vector<8x128xf32>
    %67 = arith.addf %66, %65 : vector<8x128xf32>
    %68 = arith.divf %66, %67 : vector<8x128xf32>
    %69 = vector.extract_strided_slice %62 {offsets = [0, 128], sizes = [8, 128], strides = [1, 1]} : vector<8x512xf32> to vector<8x128xf32>
    %70 = arith.negf %69 : vector<8x128xf32>
    %71 = math.exp %70 : vector<8x128xf32>
    %cst_27 = arith.constant 1.000000e+00 : f32
    %72 = vector.broadcast %cst_27 : f32 to vector<8x128xf32>
    %73 = arith.addf %72, %71 : vector<8x128xf32>
    %74 = arith.divf %72, %73 : vector<8x128xf32>
    %75 = vector.extract_strided_slice %62 {offsets = [0, 256], sizes = [8, 128], strides = [1, 1]} : vector<8x512xf32> to vector<8x128xf32>
    %76 = vector.extract_strided_slice %62 {offsets = [0, 384], sizes = [8, 128], strides = [1, 1]} : vector<8x512xf32> to vector<8x128xf32>
    %77 = arith.mulf %68, %76 : vector<8x128xf32>
    %78 = arith.addf %75, %77 : vector<8x128xf32>
    %79 = math.tanh %78 : vector<8x128xf32>
    %cst_28 = arith.constant 1.000000e+00 : f32
    %80 = vector.broadcast %cst_28 : f32 to vector<8x128xf32>
    %81 = arith.subf %80, %74 : vector<8x128xf32>
    %82 = arith.mulf %81, %79 : vector<8x128xf32>
    %83 = arith.mulf %74, %32 : vector<8x128xf32>
    %84 = arith.addf %82, %83 : vector<8x128xf32>
    %85 = arith.truncf %84 : vector<8x128xf32> to vector<8x128xbf16>
    %c0_29 = arith.constant 0 : index
    %c0_30 = arith.constant 0 : index
    %86 = vector.load %arg5[%c0_29, %c0_30] : memref<128x128xbf16, #tpu.memory_space<vmem>>, vector<128x128xbf16>
    %cst_31 = arith.constant dense<0.000000e+00> : vector<8x128xf32>
    %87 = tpu.matmul %85, %86, %cst_31 {dimension_numbers = #tpu.dot_dimension_numbers<[1], [0], [0], [1], [0, 0, 1, 1], [], []>} : vector<8x128xbf16>, vector<128x128xbf16>, vector<8x128xf32> -> vector<8x128xf32>
    %c0_32 = arith.constant 0 : index
    %c0_33 = arith.constant 0 : index
    %88 = vector.load %arg6[%c0_32, %c0_33] : memref<1x128xf32, #tpu.memory_space<vmem>>, vector<1x128xf32>
    %89 = vector.broadcast %88 : vector<1x128xf32> to vector<8x128xf32>
    %90 = arith.addf %87, %89 : vector<8x128xf32>
    %cst_34 = arith.constant dense<0xFF800000> : vector<8xf32>
    %91 = vector.multi_reduction <maximumf>, %90, %cst_34 [1] : vector<8x128xf32> to vector<8xf32>
    %92 = vector.shape_cast %91 : vector<8xf32> to vector<8x1xf32>
    %93 = vector.broadcast %92 : vector<8x1xf32> to vector<8x128xf32>
    %94 = arith.subf %90, %93 : vector<8x128xf32>
    %95 = math.exp %94 : vector<8x128xf32>
    %cst_35 = arith.constant dense<0.000000e+00> : vector<8xf32>
    %96 = vector.multi_reduction <add>, %95, %cst_35 [1] : vector<8x128xf32> to vector<8xf32>
    %97 = vector.shape_cast %96 : vector<8xf32> to vector<8x1xf32>
    %98 = math.log %97 : vector<8x1xf32>
    %99 = vector.broadcast %98 : vector<8x1xf32> to vector<8x128xf32>
    %100 = arith.subf %94, %99 : vector<8x128xf32>
    %101 = arith.index_cast %c1_i32 : i32 to index
    %c0_36 = arith.constant 0 : index
    %c0_37 = arith.constant 0 : index
    %102 = vector.load %arg7[%101, %c0_36, %c0_37] : memref<8x8x128xf32, #tpu.memory_space<vmem>>, vector<1x8x128xf32>
    %103 = vector.shape_cast %102 : vector<1x8x128xf32> to vector<8x128xf32>
    %104 = vector.shape_cast %100 : vector<8x128xf32> to vector<1x8x128xf32>
    tpu.vector_store %arg7[%101, %c0_36, %c0_37], %104 {strides = array<i32>} : memref<8x8x128xf32, #tpu.memory_space<vmem>>, vector<1x8x128xf32>,
    %c2_i32 = arith.constant 2 : i32
    %105 = arith.index_cast %c2_i32 : i32 to index
    %c0_38 = arith.constant 0 : index
    %c0_39 = arith.constant 0 : index
    %106 = vector.load %arg1[%105, %c0_38, %c0_39] : memref<8x8x128xbf16, #tpu.memory_space<vmem>>, vector<1x8x128xbf16>
    %107 = vector.shape_cast %106 : vector<1x8x128xbf16> to vector<8x128xbf16>
    %108 = arith.truncf %84 : vector<8x128xf32> to vector<8x128xbf16>
    %109 = tpu.concatenate %107, %108 in 1 : vector<8x128xbf16>, vector<8x128xbf16> -> vector<8x256xbf16>
    %c0_40 = arith.constant 0 : index
    %c0_41 = arith.constant 0 : index
    %110 = vector.load %arg3[%c0_40, %c0_41] : memref<256x512xbf16, #tpu.memory_space<vmem>>, vector<256x512xbf16>
    %cst_42 = arith.constant dense<0.000000e+00> : vector<8x512xf32>
    %111 = tpu.matmul %109, %110, %cst_42 {dimension_numbers = #tpu.dot_dimension_numbers<[1], [0], [0], [1], [0, 0, 1, 1], [], []>} : vector<8x256xbf16>, vector<256x512xbf16>, vector<8x512xf32> -> vector<8x512xf32>
    %c0_43 = arith.constant 0 : index
    %c0_44 = arith.constant 0 : index
    %112 = vector.load %arg4[%c0_43, %c0_44] : memref<1x512xf32, #tpu.memory_space<vmem>>, vector<1x512xf32>
    %113 = vector.broadcast %112 : vector<1x512xf32> to vector<8x512xf32>
    %114 = arith.addf %111, %113 : vector<8x512xf32>
    %115 = vector.extract_strided_slice %114 {offsets = [0, 0], sizes = [8, 128], strides = [1, 1]} : vector<8x512xf32> to vector<8x128xf32>
    %116 = arith.negf %115 : vector<8x128xf32>
    %117 = math.exp %116 : vector<8x128xf32>
    %cst_45 = arith.constant 1.000000e+00 : f32
    %118 = vector.broadcast %cst_45 : f32 to vector<8x128xf32>
    %119 = arith.addf %118, %117 : vector<8x128xf32>
    %120 = arith.divf %118, %119 : vector<8x128xf32>
    %121 = vector.extract_strided_slice %114 {offsets = [0, 128], sizes = [8, 128], strides = [1, 1]} : vector<8x512xf32> to vector<8x128xf32>
    %122 = arith.negf %121 : vector<8x128xf32>
    %123 = math.exp %122 : vector<8x128xf32>
    %cst_46 = arith.constant 1.000000e+00 : f32
    %124 = vector.broadcast %cst_46 : f32 to vector<8x128xf32>
    %125 = arith.addf %124, %123 : vector<8x128xf32>
    %126 = arith.divf %124, %125 : vector<8x128xf32>
    %127 = vector.extract_strided_slice %114 {offsets = [0, 256], sizes = [8, 128], strides = [1, 1]} : vector<8x512xf32> to vector<8x128xf32>
    %128 = vector.extract_strided_slice %114 {offsets = [0, 384], sizes = [8, 128], strides = [1, 1]} : vector<8x512xf32> to vector<8x128xf32>
    %129 = arith.mulf %120, %128 : vector<8x128xf32>
    %130 = arith.addf %127, %129 : vector<8x128xf32>
    %131 = math.tanh %130 : vector<8x128xf32>
    %cst_47 = arith.constant 1.000000e+00 : f32
    %132 = vector.broadcast %cst_47 : f32 to vector<8x128xf32>
    %133 = arith.subf %132, %126 : vector<8x128xf32>
    %134 = arith.mulf %133, %131 : vector<8x128xf32>
    %135 = arith.mulf %126, %84 : vector<8x128xf32>
    %136 = arith.addf %134, %135 : vector<8x128xf32>
    %137 = arith.truncf %136 : vector<8x128xf32> to vector<8x128xbf16>
    %c0_48 = arith.constant 0 : index
    %c0_49 = arith.constant 0 : index
    %138 = vector.load %arg5[%c0_48, %c0_49] : memref<128x128xbf16, #tpu.memory_space<vmem>>, vector<128x128xbf16>
    %cst_50 = arith.constant dense<0.000000e+00> : vector<8x128xf32>
    %139 = tpu.matmul %137, %138, %cst_50 {dimension_numbers = #tpu.dot_dimension_numbers<[1], [0], [0], [1], [0, 0, 1, 1], [], []>} : vector<8x128xbf16>, vector<128x128xbf16>, vector<8x128xf32> -> vector<8x128xf32>
    %c0_51 = arith.constant 0 : index
    %c0_52 = arith.constant 0 : index
    %140 = vector.load %arg6[%c0_51, %c0_52] : memref<1x128xf32, #tpu.memory_space<vmem>>, vector<1x128xf32>
    %141 = vector.broadcast %140 : vector<1x128xf32> to vector<8x128xf32>
    %142 = arith.addf %139, %141 : vector<8x128xf32>
    %cst_53 = arith.constant dense<0xFF800000> : vector<8xf32>
    %143 = vector.multi_reduction <maximumf>, %142, %cst_53 [1] : vector<8x128xf32> to vector<8xf32>
    %144 = vector.shape_cast %143 : vector<8xf32> to vector<8x1xf32>
    %145 = vector.broadcast %144 : vector<8x1xf32> to vector<8x128xf32>
    %146 = arith.subf %142, %145 : vector<8x128xf32>
    %147 = math.exp %146 : vector<8x128xf32>
    %cst_54 = arith.constant dense<0.000000e+00> : vector<8xf32>
    %148 = vector.multi_reduction <add>, %147, %cst_54 [1] : vector<8x128xf32> to vector<8xf32>
    %149 = vector.shape_cast %148 : vector<8xf32> to vector<8x1xf32>
    %150 = math.log %149 : vector<8x1xf32>
    %151 = vector.broadcast %150 : vector<8x1xf32> to vector<8x128xf32>
    %152 = arith.subf %146, %151 : vector<8x128xf32>
    %153 = arith.index_cast %c2_i32 : i32 to index
    %c0_55 = arith.constant 0 : index
    %c0_56 = arith.constant 0 : index
    %154 = vector.load %arg7[%153, %c0_55, %c0_56] : memref<8x8x128xf32, #tpu.memory_space<vmem>>, vector<1x8x128xf32>
    %155 = vector.shape_cast %154 : vector<1x8x128xf32> to vector<8x128xf32>
    %156 = vector.shape_cast %152 : vector<8x128xf32> to vector<1x8x128xf32>
    tpu.vector_store %arg7[%153, %c0_55, %c0_56], %156 {strides = array<i32>} : memref<8x8x128xf32, #tpu.memory_space<vmem>>, vector<1x8x128xf32>,
    %c3_i32 = arith.constant 3 : i32
    %157 = arith.index_cast %c3_i32 : i32 to index
    %c0_57 = arith.constant 0 : index
    %c0_58 = arith.constant 0 : index
    %158 = vector.load %arg1[%157, %c0_57, %c0_58] : memref<8x8x128xbf16, #tpu.memory_space<vmem>>, vector<1x8x128xbf16>
    %159 = vector.shape_cast %158 : vector<1x8x128xbf16> to vector<8x128xbf16>
    %160 = arith.truncf %136 : vector<8x128xf32> to vector<8x128xbf16>
    %161 = tpu.concatenate %159, %160 in 1 : vector<8x128xbf16>, vector<8x128xbf16> -> vector<8x256xbf16>
    %c0_59 = arith.constant 0 : index
    %c0_60 = arith.constant 0 : index
    %162 = vector.load %arg3[%c0_59, %c0_60] : memref<256x512xbf16, #tpu.memory_space<vmem>>, vector<256x512xbf16>
    %cst_61 = arith.constant dense<0.000000e+00> : vector<8x512xf32>
    %163 = tpu.matmul %161, %162, %cst_61 {dimension_numbers = #tpu.dot_dimension_numbers<[1], [0], [0], [1], [0, 0, 1, 1], [], []>} : vector<8x256xbf16>, vector<256x512xbf16>, vector<8x512xf32> -> vector<8x512xf32>
    %c0_62 = arith.constant 0 : index
    %c0_63 = arith.constant 0 : index
    %164 = vector.load %arg4[%c0_62, %c0_63] : memref<1x512xf32, #tpu.memory_space<vmem>>, vector<1x512xf32>
    %165 = vector.broadcast %164 : vector<1x512xf32> to vector<8x512xf32>
    %166 = arith.addf %163, %165 : vector<8x512xf32>
    %167 = vector.extract_strided_slice %166 {offsets = [0, 0], sizes = [8, 128], strides = [1, 1]} : vector<8x512xf32> to vector<8x128xf32>
    %168 = arith.negf %167 : vector<8x128xf32>
    %169 = math.exp %168 : vector<8x128xf32>
    %cst_64 = arith.constant 1.000000e+00 : f32
    %170 = vector.broadcast %cst_64 : f32 to vector<8x128xf32>
    %171 = arith.addf %170, %169 : vector<8x128xf32>
    %172 = arith.divf %170, %171 : vector<8x128xf32>
    %173 = vector.extract_strided_slice %166 {offsets = [0, 128], sizes = [8, 128], strides = [1, 1]} : vector<8x512xf32> to vector<8x128xf32>
    %174 = arith.negf %173 : vector<8x128xf32>
    %175 = math.exp %174 : vector<8x128xf32>
    %cst_65 = arith.constant 1.000000e+00 : f32
    %176 = vector.broadcast %cst_65 : f32 to vector<8x128xf32>
    %177 = arith.addf %176, %175 : vector<8x128xf32>
    %178 = arith.divf %176, %177 : vector<8x128xf32>
    %179 = vector.extract_strided_slice %166 {offsets = [0, 256], sizes = [8, 128], strides = [1, 1]} : vector<8x512xf32> to vector<8x128xf32>
    %180 = vector.extract_strided_slice %166 {offsets = [0, 384], sizes = [8, 128], strides = [1, 1]} : vector<8x512xf32> to vector<8x128xf32>
    %181 = arith.mulf %172, %180 : vector<8x128xf32>
    %182 = arith.addf %179, %181 : vector<8x128xf32>
    %183 = math.tanh %182 : vector<8x128xf32>
    %cst_66 = arith.constant 1.000000e+00 : f32
    %184 = vector.broadcast %cst_66 : f32 to vector<8x128xf32>
    %185 = arith.subf %184, %178 : vector<8x128xf32>
    %186 = arith.mulf %185, %183 : vector<8x128xf32>
    %187 = arith.mulf %178, %136 : vector<8x128xf32>
    %188 = arith.addf %186, %187 : vector<8x128xf32>
    %189 = arith.truncf %188 : vector<8x128xf32> to vector<8x128xbf16>
    %c0_67 = arith.constant 0 : index
    %c0_68 = arith.constant 0 : index
    %190 = vector.load %arg5[%c0_67, %c0_68] : memref<128x128xbf16, #tpu.memory_space<vmem>>, vector<128x128xbf16>
    %cst_69 = arith.constant dense<0.000000e+00> : vector<8x128xf32>
    %191 = tpu.matmul %189, %190, %cst_69 {dimension_numbers = #tpu.dot_dimension_numbers<[1], [0], [0], [1], [0, 0, 1, 1], [], []>} : vector<8x128xbf16>, vector<128x128xbf16>, vector<8x128xf32> -> vector<8x128xf32>
    %c0_70 = arith.constant 0 : index
    %c0_71 = arith.constant 0 : index
    %192 = vector.load %arg6[%c0_70, %c0_71] : memref<1x128xf32, #tpu.memory_space<vmem>>, vector<1x128xf32>
    %193 = vector.broadcast %192 : vector<1x128xf32> to vector<8x128xf32>
    %194 = arith.addf %191, %193 : vector<8x128xf32>
    %cst_72 = arith.constant dense<0xFF800000> : vector<8xf32>
    %195 = vector.multi_reduction <maximumf>, %194, %cst_72 [1] : vector<8x128xf32> to vector<8xf32>
    %196 = vector.shape_cast %195 : vector<8xf32> to vector<8x1xf32>
    %197 = vector.broadcast %196 : vector<8x1xf32> to vector<8x128xf32>
    %198 = arith.subf %194, %197 : vector<8x128xf32>
    %199 = math.exp %198 : vector<8x128xf32>
    %cst_73 = arith.constant dense<0.000000e+00> : vector<8xf32>
    %200 = vector.multi_reduction <add>, %199, %cst_73 [1] : vector<8x128xf32> to vector<8xf32>
    %201 = vector.shape_cast %200 : vector<8xf32> to vector<8x1xf32>
    %202 = math.log %201 : vector<8x1xf32>
    %203 = vector.broadcast %202 : vector<8x1xf32> to vector<8x128xf32>
    %204 = arith.subf %198, %203 : vector<8x128xf32>
    %205 = arith.index_cast %c3_i32 : i32 to index
    %c0_74 = arith.constant 0 : index
    %c0_75 = arith.constant 0 : index
    %206 = vector.load %arg7[%205, %c0_74, %c0_75] : memref<8x8x128xf32, #tpu.memory_space<vmem>>, vector<1x8x128xf32>
    %207 = vector.shape_cast %206 : vector<1x8x128xf32> to vector<8x128xf32>
    %208 = vector.shape_cast %204 : vector<8x128xf32> to vector<1x8x128xf32>
    tpu.vector_store %arg7[%205, %c0_74, %c0_75], %208 {strides = array<i32>} : memref<8x8x128xf32, #tpu.memory_space<vmem>>, vector<1x8x128xf32>,
    %c4_i32 = arith.constant 4 : i32
    %209 = arith.index_cast %c4_i32 : i32 to index
    %c0_76 = arith.constant 0 : index
    %c0_77 = arith.constant 0 : index
    %210 = vector.load %arg1[%209, %c0_76, %c0_77] : memref<8x8x128xbf16, #tpu.memory_space<vmem>>, vector<1x8x128xbf16>
    %211 = vector.shape_cast %210 : vector<1x8x128xbf16> to vector<8x128xbf16>
    %212 = arith.truncf %188 : vector<8x128xf32> to vector<8x128xbf16>
    %213 = tpu.concatenate %211, %212 in 1 : vector<8x128xbf16>, vector<8x128xbf16> -> vector<8x256xbf16>
    %c0_78 = arith.constant 0 : index
    %c0_79 = arith.constant 0 : index
    %214 = vector.load %arg3[%c0_78, %c0_79] : memref<256x512xbf16, #tpu.memory_space<vmem>>, vector<256x512xbf16>
    %cst_80 = arith.constant dense<0.000000e+00> : vector<8x512xf32>
    %215 = tpu.matmul %213, %214, %cst_80 {dimension_numbers = #tpu.dot_dimension_numbers<[1], [0], [0], [1], [0, 0, 1, 1], [], []>} : vector<8x256xbf16>, vector<256x512xbf16>, vector<8x512xf32> -> vector<8x512xf32>
    %c0_81 = arith.constant 0 : index
    %c0_82 = arith.constant 0 : index
    %216 = vector.load %arg4[%c0_81, %c0_82] : memref<1x512xf32, #tpu.memory_space<vmem>>, vector<1x512xf32>
    %217 = vector.broadcast %216 : vector<1x512xf32> to vector<8x512xf32>
    %218 = arith.addf %215, %217 : vector<8x512xf32>
    %219 = vector.extract_strided_slice %218 {offsets = [0, 0], sizes = [8, 128], strides = [1, 1]} : vector<8x512xf32> to vector<8x128xf32>
    %220 = arith.negf %219 : vector<8x128xf32>
    %221 = math.exp %220 : vector<8x128xf32>
    %cst_83 = arith.constant 1.000000e+00 : f32
    %222 = vector.broadcast %cst_83 : f32 to vector<8x128xf32>
    %223 = arith.addf %222, %221 : vector<8x128xf32>
    %224 = arith.divf %222, %223 : vector<8x128xf32>
    %225 = vector.extract_strided_slice %218 {offsets = [0, 128], sizes = [8, 128], strides = [1, 1]} : vector<8x512xf32> to vector<8x128xf32>
    %226 = arith.negf %225 : vector<8x128xf32>
    %227 = math.exp %226 : vector<8x128xf32>
    %cst_84 = arith.constant 1.000000e+00 : f32
    %228 = vector.broadcast %cst_84 : f32 to vector<8x128xf32>
    %229 = arith.addf %228, %227 : vector<8x128xf32>
    %230 = arith.divf %228, %229 : vector<8x128xf32>
    %231 = vector.extract_strided_slice %218 {offsets = [0, 256], sizes = [8, 128], strides = [1, 1]} : vector<8x512xf32> to vector<8x128xf32>
    %232 = vector.extract_strided_slice %218 {offsets = [0, 384], sizes = [8, 128], strides = [1, 1]} : vector<8x512xf32> to vector<8x128xf32>
    %233 = arith.mulf %224, %232 : vector<8x128xf32>
    %234 = arith.addf %231, %233 : vector<8x128xf32>
    %235 = math.tanh %234 : vector<8x128xf32>
    %cst_85 = arith.constant 1.000000e+00 : f32
    %236 = vector.broadcast %cst_85 : f32 to vector<8x128xf32>
    %237 = arith.subf %236, %230 : vector<8x128xf32>
    %238 = arith.mulf %237, %235 : vector<8x128xf32>
    %239 = arith.mulf %230, %188 : vector<8x128xf32>
    %240 = arith.addf %238, %239 : vector<8x128xf32>
    %241 = arith.truncf %240 : vector<8x128xf32> to vector<8x128xbf16>
    %c0_86 = arith.constant 0 : index
    %c0_87 = arith.constant 0 : index
    %242 = vector.load %arg5[%c0_86, %c0_87] : memref<128x128xbf16, #tpu.memory_space<vmem>>, vector<128x128xbf16>
    %cst_88 = arith.constant dense<0.000000e+00> : vector<8x128xf32>
    %243 = tpu.matmul %241, %242, %cst_88 {dimension_numbers = #tpu.dot_dimension_numbers<[1], [0], [0], [1], [0, 0, 1, 1], [], []>} : vector<8x128xbf16>, vector<128x128xbf16>, vector<8x128xf32> -> vector<8x128xf32>
    %c0_89 = arith.constant 0 : index
    %c0_90 = arith.constant 0 : index
    %244 = vector.load %arg6[%c0_89, %c0_90] : memref<1x128xf32, #tpu.memory_space<vmem>>, vector<1x128xf32>
    %245 = vector.broadcast %244 : vector<1x128xf32> to vector<8x128xf32>
    %246 = arith.addf %243, %245 : vector<8x128xf32>
    %cst_91 = arith.constant dense<0xFF800000> : vector<8xf32>
    %247 = vector.multi_reduction <maximumf>, %246, %cst_91 [1] : vector<8x128xf32> to vector<8xf32>
    %248 = vector.shape_cast %247 : vector<8xf32> to vector<8x1xf32>
    %249 = vector.broadcast %248 : vector<8x1xf32> to vector<8x128xf32>
    %250 = arith.subf %246, %249 : vector<8x128xf32>
    %251 = math.exp %250 : vector<8x128xf32>
    %cst_92 = arith.constant dense<0.000000e+00> : vector<8xf32>
    %252 = vector.multi_reduction <add>, %251, %cst_92 [1] : vector<8x128xf32> to vector<8xf32>
    %253 = vector.shape_cast %252 : vector<8xf32> to vector<8x1xf32>
    %254 = math.log %253 : vector<8x1xf32>
    %255 = vector.broadcast %254 : vector<8x1xf32> to vector<8x128xf32>
    %256 = arith.subf %250, %255 : vector<8x128xf32>
    %257 = arith.index_cast %c4_i32 : i32 to index
    %c0_93 = arith.constant 0 : index
    %c0_94 = arith.constant 0 : index
    %258 = vector.load %arg7[%257, %c0_93, %c0_94] : memref<8x8x128xf32, #tpu.memory_space<vmem>>, vector<1x8x128xf32>
    %259 = vector.shape_cast %258 : vector<1x8x128xf32> to vector<8x128xf32>
    %260 = vector.shape_cast %256 : vector<8x128xf32> to vector<1x8x128xf32>
    tpu.vector_store %arg7[%257, %c0_93, %c0_94], %260 {strides = array<i32>} : memref<8x8x128xf32, #tpu.memory_space<vmem>>, vector<1x8x128xf32>,
    %c5_i32 = arith.constant 5 : i32
    %261 = arith.index_cast %c5_i32 : i32 to index
    %c0_95 = arith.constant 0 : index
    %c0_96 = arith.constant 0 : index
    %262 = vector.load %arg1[%261, %c0_95, %c0_96] : memref<8x8x128xbf16, #tpu.memory_space<vmem>>, vector<1x8x128xbf16>
    %263 = vector.shape_cast %262 : vector<1x8x128xbf16> to vector<8x128xbf16>
    %264 = arith.truncf %240 : vector<8x128xf32> to vector<8x128xbf16>
    %265 = tpu.concatenate %263, %264 in 1 : vector<8x128xbf16>, vector<8x128xbf16> -> vector<8x256xbf16>
    %c0_97 = arith.constant 0 : index
    %c0_98 = arith.constant 0 : index
    %266 = vector.load %arg3[%c0_97, %c0_98] : memref<256x512xbf16, #tpu.memory_space<vmem>>, vector<256x512xbf16>
    %cst_99 = arith.constant dense<0.000000e+00> : vector<8x512xf32>
    %267 = tpu.matmul %265, %266, %cst_99 {dimension_numbers = #tpu.dot_dimension_numbers<[1], [0], [0], [1], [0, 0, 1, 1], [], []>} : vector<8x256xbf16>, vector<256x512xbf16>, vector<8x512xf32> -> vector<8x512xf32>
    %c0_100 = arith.constant 0 : index
    %c0_101 = arith.constant 0 : index
    %268 = vector.load %arg4[%c0_100, %c0_101] : memref<1x512xf32, #tpu.memory_space<vmem>>, vector<1x512xf32>
    %269 = vector.broadcast %268 : vector<1x512xf32> to vector<8x512xf32>
    %270 = arith.addf %267, %269 : vector<8x512xf32>
    %271 = vector.extract_strided_slice %270 {offsets = [0, 0], sizes = [8, 128], strides = [1, 1]} : vector<8x512xf32> to vector<8x128xf32>
    %272 = arith.negf %271 : vector<8x128xf32>
    %273 = math.exp %272 : vector<8x128xf32>
    %cst_102 = arith.constant 1.000000e+00 : f32
    %274 = vector.broadcast %cst_102 : f32 to vector<8x128xf32>
    %275 = arith.addf %274, %273 : vector<8x128xf32>
    %276 = arith.divf %274, %275 : vector<8x128xf32>
    %277 = vector.extract_strided_slice %270 {offsets = [0, 128], sizes = [8, 128], strides = [1, 1]} : vector<8x512xf32> to vector<8x128xf32>
    %278 = arith.negf %277 : vector<8x128xf32>
    %279 = math.exp %278 : vector<8x128xf32>
    %cst_103 = arith.constant 1.000000e+00 : f32
    %280 = vector.broadcast %cst_103 : f32 to vector<8x128xf32>
    %281 = arith.addf %280, %279 : vector<8x128xf32>
    %282 = arith.divf %280, %281 : vector<8x128xf32>
    %283 = vector.extract_strided_slice %270 {offsets = [0, 256], sizes = [8, 128], strides = [1, 1]} : vector<8x512xf32> to vector<8x128xf32>
    %284 = vector.extract_strided_slice %270 {offsets = [0, 384], sizes = [8, 128], strides = [1, 1]} : vector<8x512xf32> to vector<8x128xf32>
    %285 = arith.mulf %276, %284 : vector<8x128xf32>
    %286 = arith.addf %283, %285 : vector<8x128xf32>
    %287 = math.tanh %286 : vector<8x128xf32>
    %cst_104 = arith.constant 1.000000e+00 : f32
    %288 = vector.broadcast %cst_104 : f32 to vector<8x128xf32>
    %289 = arith.subf %288, %282 : vector<8x128xf32>
    %290 = arith.mulf %289, %287 : vector<8x128xf32>
    %291 = arith.mulf %282, %240 : vector<8x128xf32>
    %292 = arith.addf %290, %291 : vector<8x128xf32>
    %293 = arith.truncf %292 : vector<8x128xf32> to vector<8x128xbf16>
    %c0_105 = arith.constant 0 : index
    %c0_106 = arith.constant 0 : index
    %294 = vector.load %arg5[%c0_105, %c0_106] : memref<128x128xbf16, #tpu.memory_space<vmem>>, vector<128x128xbf16>
    %cst_107 = arith.constant dense<0.000000e+00> : vector<8x128xf32>
    %295 = tpu.matmul %293, %294, %cst_107 {dimension_numbers = #tpu.dot_dimension_numbers<[1], [0], [0], [1], [0, 0, 1, 1], [], []>} : vector<8x128xbf16>, vector<128x128xbf16>, vector<8x128xf32> -> vector<8x128xf32>
    %c0_108 = arith.constant 0 : index
    %c0_109 = arith.constant 0 : index
    %296 = vector.load %arg6[%c0_108, %c0_109] : memref<1x128xf32, #tpu.memory_space<vmem>>, vector<1x128xf32>
    %297 = vector.broadcast %296 : vector<1x128xf32> to vector<8x128xf32>
    %298 = arith.addf %295, %297 : vector<8x128xf32>
    %cst_110 = arith.constant dense<0xFF800000> : vector<8xf32>
    %299 = vector.multi_reduction <maximumf>, %298, %cst_110 [1] : vector<8x128xf32> to vector<8xf32>
    %300 = vector.shape_cast %299 : vector<8xf32> to vector<8x1xf32>
    %301 = vector.broadcast %300 : vector<8x1xf32> to vector<8x128xf32>
    %302 = arith.subf %298, %301 : vector<8x128xf32>
    %303 = math.exp %302 : vector<8x128xf32>
    %cst_111 = arith.constant dense<0.000000e+00> : vector<8xf32>
    %304 = vector.multi_reduction <add>, %303, %cst_111 [1] : vector<8x128xf32> to vector<8xf32>
    %305 = vector.shape_cast %304 : vector<8xf32> to vector<8x1xf32>
    %306 = math.log %305 : vector<8x1xf32>
    %307 = vector.broadcast %306 : vector<8x1xf32> to vector<8x128xf32>
    %308 = arith.subf %302, %307 : vector<8x128xf32>
    %309 = arith.index_cast %c5_i32 : i32 to index
    %c0_112 = arith.constant 0 : index
    %c0_113 = arith.constant 0 : index
    %310 = vector.load %arg7[%309, %c0_112, %c0_113] : memref<8x8x128xf32, #tpu.memory_space<vmem>>, vector<1x8x128xf32>
    %311 = vector.shape_cast %310 : vector<1x8x128xf32> to vector<8x128xf32>
    %312 = vector.shape_cast %308 : vector<8x128xf32> to vector<1x8x128xf32>
    tpu.vector_store %arg7[%309, %c0_112, %c0_113], %312 {strides = array<i32>} : memref<8x8x128xf32, #tpu.memory_space<vmem>>, vector<1x8x128xf32>,
    %c6_i32 = arith.constant 6 : i32
    %313 = arith.index_cast %c6_i32 : i32 to index
    %c0_114 = arith.constant 0 : index
    %c0_115 = arith.constant 0 : index
    %314 = vector.load %arg1[%313, %c0_114, %c0_115] : memref<8x8x128xbf16, #tpu.memory_space<vmem>>, vector<1x8x128xbf16>
    %315 = vector.shape_cast %314 : vector<1x8x128xbf16> to vector<8x128xbf16>
    %316 = arith.truncf %292 : vector<8x128xf32> to vector<8x128xbf16>
    %317 = tpu.concatenate %315, %316 in 1 : vector<8x128xbf16>, vector<8x128xbf16> -> vector<8x256xbf16>
    %c0_116 = arith.constant 0 : index
    %c0_117 = arith.constant 0 : index
    %318 = vector.load %arg3[%c0_116, %c0_117] : memref<256x512xbf16, #tpu.memory_space<vmem>>, vector<256x512xbf16>
    %cst_118 = arith.constant dense<0.000000e+00> : vector<8x512xf32>
    %319 = tpu.matmul %317, %318, %cst_118 {dimension_numbers = #tpu.dot_dimension_numbers<[1], [0], [0], [1], [0, 0, 1, 1], [], []>} : vector<8x256xbf16>, vector<256x512xbf16>, vector<8x512xf32> -> vector<8x512xf32>
    %c0_119 = arith.constant 0 : index
    %c0_120 = arith.constant 0 : index
    %320 = vector.load %arg4[%c0_119, %c0_120] : memref<1x512xf32, #tpu.memory_space<vmem>>, vector<1x512xf32>
    %321 = vector.broadcast %320 : vector<1x512xf32> to vector<8x512xf32>
    %322 = arith.addf %319, %321 : vector<8x512xf32>
    %323 = vector.extract_strided_slice %322 {offsets = [0, 0], sizes = [8, 128], strides = [1, 1]} : vector<8x512xf32> to vector<8x128xf32>
    %324 = arith.negf %323 : vector<8x128xf32>
    %325 = math.exp %324 : vector<8x128xf32>
    %cst_121 = arith.constant 1.000000e+00 : f32
    %326 = vector.broadcast %cst_121 : f32 to vector<8x128xf32>
    %327 = arith.addf %326, %325 : vector<8x128xf32>
    %328 = arith.divf %326, %327 : vector<8x128xf32>
    %329 = vector.extract_strided_slice %322 {offsets = [0, 128], sizes = [8, 128], strides = [1, 1]} : vector<8x512xf32> to vector<8x128xf32>
    %330 = arith.negf %329 : vector<8x128xf32>
    %331 = math.exp %330 : vector<8x128xf32>
    %cst_122 = arith.constant 1.000000e+00 : f32
    %332 = vector.broadcast %cst_122 : f32 to vector<8x128xf32>
    %333 = arith.addf %332, %331 : vector<8x128xf32>
    %334 = arith.divf %332, %333 : vector<8x128xf32>
    %335 = vector.extract_strided_slice %322 {offsets = [0, 256], sizes = [8, 128], strides = [1, 1]} : vector<8x512xf32> to vector<8x128xf32>
    %336 = vector.extract_strided_slice %322 {offsets = [0, 384], sizes = [8, 128], strides = [1, 1]} : vector<8x512xf32> to vector<8x128xf32>
    %337 = arith.mulf %328, %336 : vector<8x128xf32>
    %338 = arith.addf %335, %337 : vector<8x128xf32>
    %339 = math.tanh %338 : vector<8x128xf32>
    %cst_123 = arith.constant 1.000000e+00 : f32
    %340 = vector.broadcast %cst_123 : f32 to vector<8x128xf32>
    %341 = arith.subf %340, %334 : vector<8x128xf32>
    %342 = arith.mulf %341, %339 : vector<8x128xf32>
    %343 = arith.mulf %334, %292 : vector<8x128xf32>
    %344 = arith.addf %342, %343 : vector<8x128xf32>
    %345 = arith.truncf %344 : vector<8x128xf32> to vector<8x128xbf16>
    %c0_124 = arith.constant 0 : index
    %c0_125 = arith.constant 0 : index
    %346 = vector.load %arg5[%c0_124, %c0_125] : memref<128x128xbf16, #tpu.memory_space<vmem>>, vector<128x128xbf16>
    %cst_126 = arith.constant dense<0.000000e+00> : vector<8x128xf32>
    %347 = tpu.matmul %345, %346, %cst_126 {dimension_numbers = #tpu.dot_dimension_numbers<[1], [0], [0], [1], [0, 0, 1, 1], [], []>} : vector<8x128xbf16>, vector<128x128xbf16>, vector<8x128xf32> -> vector<8x128xf32>
    %c0_127 = arith.constant 0 : index
    %c0_128 = arith.constant 0 : index
    %348 = vector.load %arg6[%c0_127, %c0_128] : memref<1x128xf32, #tpu.memory_space<vmem>>, vector<1x128xf32>
    %349 = vector.broadcast %348 : vector<1x128xf32> to vector<8x128xf32>
    %350 = arith.addf %347, %349 : vector<8x128xf32>
    %cst_129 = arith.constant dense<0xFF800000> : vector<8xf32>
    %351 = vector.multi_reduction <maximumf>, %350, %cst_129 [1] : vector<8x128xf32> to vector<8xf32>
    %352 = vector.shape_cast %351 : vector<8xf32> to vector<8x1xf32>
    %353 = vector.broadcast %352 : vector<8x1xf32> to vector<8x128xf32>
    %354 = arith.subf %350, %353 : vector<8x128xf32>
    %355 = math.exp %354 : vector<8x128xf32>
    %cst_130 = arith.constant dense<0.000000e+00> : vector<8xf32>
    %356 = vector.multi_reduction <add>, %355, %cst_130 [1] : vector<8x128xf32> to vector<8xf32>
    %357 = vector.shape_cast %356 : vector<8xf32> to vector<8x1xf32>
    %358 = math.log %357 : vector<8x1xf32>
    %359 = vector.broadcast %358 : vector<8x1xf32> to vector<8x128xf32>
    %360 = arith.subf %354, %359 : vector<8x128xf32>
    %361 = arith.index_cast %c6_i32 : i32 to index
    %c0_131 = arith.constant 0 : index
    %c0_132 = arith.constant 0 : index
    %362 = vector.load %arg7[%361, %c0_131, %c0_132] : memref<8x8x128xf32, #tpu.memory_space<vmem>>, vector<1x8x128xf32>
    %363 = vector.shape_cast %362 : vector<1x8x128xf32> to vector<8x128xf32>
    %364 = vector.shape_cast %360 : vector<8x128xf32> to vector<1x8x128xf32>
    tpu.vector_store %arg7[%361, %c0_131, %c0_132], %364 {strides = array<i32>} : memref<8x8x128xf32, #tpu.memory_space<vmem>>, vector<1x8x128xf32>,
    %c7_i32 = arith.constant 7 : i32
    %365 = arith.index_cast %c7_i32 : i32 to index
    %c0_133 = arith.constant 0 : index
    %c0_134 = arith.constant 0 : index
    %366 = vector.load %arg1[%365, %c0_133, %c0_134] : memref<8x8x128xbf16, #tpu.memory_space<vmem>>, vector<1x8x128xbf16>
    %367 = vector.shape_cast %366 : vector<1x8x128xbf16> to vector<8x128xbf16>
    %368 = arith.truncf %344 : vector<8x128xf32> to vector<8x128xbf16>
    %369 = tpu.concatenate %367, %368 in 1 : vector<8x128xbf16>, vector<8x128xbf16> -> vector<8x256xbf16>
    %c0_135 = arith.constant 0 : index
    %c0_136 = arith.constant 0 : index
    %370 = vector.load %arg3[%c0_135, %c0_136] : memref<256x512xbf16, #tpu.memory_space<vmem>>, vector<256x512xbf16>
    %cst_137 = arith.constant dense<0.000000e+00> : vector<8x512xf32>
    %371 = tpu.matmul %369, %370, %cst_137 {dimension_numbers = #tpu.dot_dimension_numbers<[1], [0], [0], [1], [0, 0, 1, 1], [], []>} : vector<8x256xbf16>, vector<256x512xbf16>, vector<8x512xf32> -> vector<8x512xf32>
    %c0_138 = arith.constant 0 : index
    %c0_139 = arith.constant 0 : index
    %372 = vector.load %arg4[%c0_138, %c0_139] : memref<1x512xf32, #tpu.memory_space<vmem>>, vector<1x512xf32>
    %373 = vector.broadcast %372 : vector<1x512xf32> to vector<8x512xf32>
    %374 = arith.addf %371, %373 : vector<8x512xf32>
    %375 = vector.extract_strided_slice %374 {offsets = [0, 0], sizes = [8, 128], strides = [1, 1]} : vector<8x512xf32> to vector<8x128xf32>
    %376 = arith.negf %375 : vector<8x128xf32>
    %377 = math.exp %376 : vector<8x128xf32>
    %cst_140 = arith.constant 1.000000e+00 : f32
    %378 = vector.broadcast %cst_140 : f32 to vector<8x128xf32>
    %379 = arith.addf %378, %377 : vector<8x128xf32>
    %380 = arith.divf %378, %379 : vector<8x128xf32>
    %381 = vector.extract_strided_slice %374 {offsets = [0, 128], sizes = [8, 128], strides = [1, 1]} : vector<8x512xf32> to vector<8x128xf32>
    %382 = arith.negf %381 : vector<8x128xf32>
    %383 = math.exp %382 : vector<8x128xf32>
    %cst_141 = arith.constant 1.000000e+00 : f32
    %384 = vector.broadcast %cst_141 : f32 to vector<8x128xf32>
    %385 = arith.addf %384, %383 : vector<8x128xf32>
    %386 = arith.divf %384, %385 : vector<8x128xf32>
    %387 = vector.extract_strided_slice %374 {offsets = [0, 256], sizes = [8, 128], strides = [1, 1]} : vector<8x512xf32> to vector<8x128xf32>
    %388 = vector.extract_strided_slice %374 {offsets = [0, 384], sizes = [8, 128], strides = [1, 1]} : vector<8x512xf32> to vector<8x128xf32>
    %389 = arith.mulf %380, %388 : vector<8x128xf32>
    %390 = arith.addf %387, %389 : vector<8x128xf32>
    %391 = math.tanh %390 : vector<8x128xf32>
    %cst_142 = arith.constant 1.000000e+00 : f32
    %392 = vector.broadcast %cst_142 : f32 to vector<8x128xf32>
    %393 = arith.subf %392, %386 : vector<8x128xf32>
    %394 = arith.mulf %393, %391 : vector<8x128xf32>
    %395 = arith.mulf %386, %344 : vector<8x128xf32>
    %396 = arith.addf %394, %395 : vector<8x128xf32>
    %397 = arith.truncf %396 : vector<8x128xf32> to vector<8x128xbf16>
    %c0_143 = arith.constant 0 : index
    %c0_144 = arith.constant 0 : index
    %398 = vector.load %arg5[%c0_143, %c0_144] : memref<128x128xbf16, #tpu.memory_space<vmem>>, vector<128x128xbf16>
    %cst_145 = arith.constant dense<0.000000e+00> : vector<8x128xf32>
    %399 = tpu.matmul %397, %398, %cst_145 {dimension_numbers = #tpu.dot_dimension_numbers<[1], [0], [0], [1], [0, 0, 1, 1], [], []>} : vector<8x128xbf16>, vector<128x128xbf16>, vector<8x128xf32> -> vector<8x128xf32>
    %c0_146 = arith.constant 0 : index
    %c0_147 = arith.constant 0 : index
    %400 = vector.load %arg6[%c0_146, %c0_147] : memref<1x128xf32, #tpu.memory_space<vmem>>, vector<1x128xf32>
    %401 = vector.broadcast %400 : vector<1x128xf32> to vector<8x128xf32>
    %402 = arith.addf %399, %401 : vector<8x128xf32>
    %cst_148 = arith.constant dense<0xFF800000> : vector<8xf32>
    %403 = vector.multi_reduction <maximumf>, %402, %cst_148 [1] : vector<8x128xf32> to vector<8xf32>
    %404 = vector.shape_cast %403 : vector<8xf32> to vector<8x1xf32>
    %405 = vector.broadcast %404 : vector<8x1xf32> to vector<8x128xf32>
    %406 = arith.subf %402, %405 : vector<8x128xf32>
    %407 = math.exp %406 : vector<8x128xf32>
    %cst_149 = arith.constant dense<0.000000e+00> : vector<8xf32>
    %408 = vector.multi_reduction <add>, %407, %cst_149 [1] : vector<8x128xf32> to vector<8xf32>
    %409 = vector.shape_cast %408 : vector<8xf32> to vector<8x1xf32>
    %410 = math.log %409 : vector<8x1xf32>
    %411 = vector.broadcast %410 : vector<8x1xf32> to vector<8x128xf32>
    %412 = arith.subf %406, %411 : vector<8x128xf32>
    %413 = arith.index_cast %c7_i32 : i32 to index
    %c0_150 = arith.constant 0 : index
    %c0_151 = arith.constant 0 : index
    %414 = vector.load %arg7[%413, %c0_150, %c0_151] : memref<8x8x128xf32, #tpu.memory_space<vmem>>, vector<1x8x128xf32>
    %415 = vector.shape_cast %414 : vector<1x8x128xf32> to vector<8x128xf32>
    %416 = vector.shape_cast %412 : vector<8x128xf32> to vector<1x8x128xf32>
    tpu.vector_store %arg7[%413, %c0_150, %c0_151], %416 {strides = array<i32>} : memref<8x8x128xf32, #tpu.memory_space<vmem>>, vector<1x8x128xf32>,
    %c8_i32 = arith.constant 8 : i32
    %c0_152 = arith.constant 0 : index
    %c0_153 = arith.constant 0 : index
    %417 = vector.load %arg8[%c0_152, %c0_153] : memref<8x128xf32, #tpu.memory_space<vmem>>, vector<8x128xf32>
    tpu.vector_store %arg8[%c0_152, %c0_153], %396 {strides = array<i32>} : memref<8x128xf32, #tpu.memory_space<vmem>>, vector<8x128xf32>,
    return
  }
  func.func @transform_0(%arg0: i32) -> (i32, i32, i32) {
    %c0_i32 = arith.constant 0 : i32
    %c0_i32_0 = arith.constant 0 : i32
    %c0_i32_1 = arith.constant 0 : i32
    return %c0_i32, %arg0, %c0_i32_0 : i32, i32, i32
  }
  func.func @transform_1(%arg0: i32) -> (i32, i32) {
    %c0_i32 = arith.constant 0 : i32
    %c0_i32_0 = arith.constant 0 : i32
    return %arg0, %c0_i32 : i32, i32
  }
  func.func @transform_2(%arg0: i32) -> (i32, i32) {
    %c0_i32 = arith.constant 0 : i32
    %c0_i32_0 = arith.constant 0 : i32
    %c0_i32_1 = arith.constant 0 : i32
    return %c0_i32, %c0_i32_0 : i32, i32
  }
  func.func @transform_3(%arg0: i32) -> (i32, i32) {
    %c0_i32 = arith.constant 0 : i32
    %c0_i32_0 = arith.constant 0 : i32
    %c0_i32_1 = arith.constant 0 : i32
    return %c0_i32, %c0_i32_0 : i32, i32
  }
  func.func @transform_4(%arg0: i32) -> (i32, i32) {
    %c0_i32 = arith.constant 0 : i32
    %c0_i32_0 = arith.constant 0 : i32
    %c0_i32_1 = arith.constant 0 : i32
    return %c0_i32, %c0_i32_0 : i32, i32
  }
  func.func @transform_5(%arg0: i32) -> (i32, i32) {
    %c0_i32 = arith.constant 0 : i32
    %c0_i32_0 = arith.constant 0 : i32
    %c0_i32_1 = arith.constant 0 : i32
    return %c0_i32, %c0_i32_0 : i32, i32
  }
  func.func @transform_6(%arg0: i32) -> (i32, i32, i32) {
    %c0_i32 = arith.constant 0 : i32
    %c0_i32_0 = arith.constant 0 : i32
    %c0_i32_1 = arith.constant 0 : i32
    return %c0_i32, %arg0, %c0_i32_0 : i32, i32, i32
  }
  func.func @transform_7(%arg0: i32) -> (i32, i32) {
    %c0_i32 = arith.constant 0 : i32
    %c0_i32_0 = arith.constant 0 : i32
    return %arg0, %c0_i32 : i32, i32
  }
}

</mosaic_0001>

<llo_original>
// kernel: tpu_custom_call.1
$region0: #{tpu_custom_call.1}
  #allocation0 [shape = 'u32[]', space=smem, size = 0x4, offset = 0x4, fixed_abs, tag = 'smem constant byte address 0x4 - core index']
  #allocation1 [shape = 'u32[72,128]{1,0:T(1,128)}', space=vmem, size = 0x9000, scoped, tag = 'internal scratch']
  %s0 = inlined_call_operand.hbm [shape: bf16[8,8,128], index: 0, kind: input, shape index: {}]
  %s1 = inlined_call_operand.hbm [shape: f32[8,128], index: 1, kind: input, shape index: {}]
  %s2 = inlined_call_operand.hbm [shape: bf16[256,512], index: 2, kind: input, shape index: {}]
  %s3 = inlined_call_operand.hbm [shape: f32[1,512], index: 3, kind: input, shape index: {}]
  %s4 = inlined_call_operand.hbm [shape: bf16[128,128], index: 4, kind: input, shape index: {}]
  %s5 = inlined_call_operand.vmem [shape: f32[1,128], index: 5, kind: input, shape index: {}]
  %s6 = inlined_call_operand.hbm [shape: f32[8,8,128], index: 6, kind: output, shape index: {0}]
  %s7 = inlined_call_operand.hbm [shape: f32[8,128], index: 7, kind: output, shape index: {1}]
  %8 = xla_tuple %s6, %s7
  %s9 = sld [smem:[#allocation0]]
  $region62: #{tpu_custom_call.1} parent=0
    _
  %s11 = ssub.s32 1, %s9
  %s12 = scalar_select 0, %s11, %s9
  $region1: #{tpu_custom_call.1} parent=0
    #allocation2 [shape = 'u8[16384]{0}', space=vmem, size = 0x4000, scoped, tag = 'input window, operand 0, single buffered']
    #allocation3 [shape = 's32[1]{0}', space=sflag, size = 0x4, scoped, tag = 'scoped memory for tpu_custom_call.1']
    #allocation4 [shape = 's32[1]{0}', space=sflag, size = 0x4, scoped, tag = 'scoped memory for tpu_custom_call.1']
    #allocation5 [shape = 'u8[4096]{0}', space=vmem, size = 0x1000, scoped, tag = 'input window, operand 1, single buffered']
    #allocation6 [shape = 's32[1]{0}', space=sflag, size = 0x4, scoped, tag = 'scoped memory for tpu_custom_call.1']
    #allocation7 [shape = 'u8[262144]{0}', space=vmem, size = 0x40000, scoped, tag = 'input window, operand 2, single buffered']
    #allocation8 [shape = 'u8[2048]{0}', space=vmem, size = 0x800, scoped, tag = 'input window, operand 3, single buffered']
    #allocation9 [shape = 's32[1]{0}', space=sflag, size = 0x4, scoped, tag = 'scoped memory for tpu_custom_call.1']
    #allocation10 [shape = 'u8[32768]{0}', space=vmem, size = 0x8000, scoped, tag = 'input window, operand 4, single buffered']
    #allocation11 [shape = 'u8[32768]{0}', space=vmem, size = 0x8000, scoped, tag = 'output window, operand 0, single buffered']
    #allocation12 [shape = 'u8[4096]{0}', space=vmem, size = 0x1000, scoped, tag = 'output window, operand 1, single buffered']
    #allocation13 [shape = 's32[1]{0}', space=sflag, size = 0x4, scoped, tag = 'scoped memory for tpu_custom_call.1']
    %13 = vsyncpa [#allocation3], 0
    %14 = vsyncpa [#allocation6], 0
    %15 = vsyncpa [#allocation9], 0
    %16 = vsyncpa [#allocation4], 0
    %17 = vsyncpa [#allocation13], 0
    // Predicated region
    $region2: #{tpu_custom_call.1} parent=1 // pred_check
      _
    $region3: #{tpu_custom_call.1} parent=1 // pred_check_branch
      %19 = sbr.rel (0) target = $region5
    $region4: #{tpu_custom_call.1} parent=1 // pred_region
      %21 = vsyncadd [#allocation3], 0
      %s22 = sshll.u32 %s0, 4
      %s23 = int_to_ptr.hbm [resolvable:$true] %s22
      %s24 = sshll.u32 [#allocation2], 4
      %s25 = int_to_ptr.vmem [resolvable:$true] %s24
      %30 = dma.hbm_to_vmem [thread:$0]  %s23, 512, %s25, [#allocation3], 64, 64, 4
    $region5: #{tpu_custom_call.1} parent=1 // pred_fallthru
      _
    // Predicated region
    $region6: #{tpu_custom_call.1} parent=1 // pred_check
      _
    $region7: #{tpu_custom_call.1} parent=1 // pred_check_branch
      %32 = sbr.rel (0) target = $region9
    $region8: #{tpu_custom_call.1} parent=1 // pred_region
      %34 = vsyncadd [#allocation6], 0
      %s36 = sshll.u32 %s1, 4
      %s37 = int_to_ptr.hbm [resolvable:$true] %s36
      %s38 = sshll.u32 [#allocation5], 4
      %s39 = int_to_ptr.vmem [resolvable:$true] %s38
      %41 = dma.hbm_to_vmem [thread:$0]  %s37, 128, %s39, [#allocation6]
    $region9: #{tpu_custom_call.1} parent=1 // pred_fallthru
      _
    // Predicated region
    $region10: #{tpu_custom_call.1} parent=1 // pred_check
      _
    $region11: #{tpu_custom_call.1} parent=1 // pred_check_branch
      %43 = sbr.rel (0) target = $region13
    $region12: #{tpu_custom_call.1} parent=1 // pred_region
      %45 = vsyncadd [#allocation6], 0
      %s46 = sshll.u32 %s2, 4
      %s47 = int_to_ptr.hbm [resolvable:$true] %s46
      %s48 = sshll.u32 [#allocation7], 4
      %s49 = int_to_ptr.vmem [resolvable:$true] %s48
      %54 = dma.hbm_to_vmem [thread:$0]  %s47, 8192, %s49, [#allocation6], 256, 256, 16
    $region13: #{tpu_custom_call.1} parent=1 // pred_fallthru
      _
    // Predicated region
    $region14: #{tpu_custom_call.1} parent=1 // pred_check
      _
    $region15: #{tpu_custom_call.1} parent=1 // pred_check_branch
      %56 = sbr.rel (0) target = $region17
    $region16: #{tpu_custom_call.1} parent=1 // pred_region
      %58 = vsyncadd [#allocation9], 0
      %s60 = sshll.u32 %s3, 4
      %s61 = int_to_ptr.hbm [resolvable:$true] %s60
      %s62 = sshll.u32 [#allocation8], 4
      %s63 = int_to_ptr.vmem [resolvable:$true] %s62
      %65 = dma.hbm_to_vmem [thread:$0]  %s61, 64, %s63, [#allocation9]
    $region17: #{tpu_custom_call.1} parent=1 // pred_fallthru
      _
    // Predicated region
    $region18: #{tpu_custom_call.1} parent=1 // pred_check
      _
    $region19: #{tpu_custom_call.1} parent=1 // pred_check_branch
      %67 = sbr.rel (0) target = $region21
    $region20: #{tpu_custom_call.1} parent=1 // pred_region
      %69 = vsyncadd [#allocation9], 0
      %s70 = sshll.u32 %s4, 4
      %s71 = int_to_ptr.hbm [resolvable:$true] %s70
      %s72 = sshll.u32 [#allocation10], 4
      %s73 = int_to_ptr.vmem [resolvable:$true] %s72
      %78 = dma.hbm_to_vmem [thread:$0]  %s71, 1024, %s73, [#allocation9], 64, 64, 4
    $region21: #{tpu_custom_call.1} parent=1 // pred_fallthru
      _
    // Predicated region
    $region22: #{tpu_custom_call.1} parent=1 // pred_check
      _
    $region23: #{tpu_custom_call.1} parent=1 // pred_check_branch
      %80 = sbr.rel (0) target = $region25
    $region24: #{tpu_custom_call.1} parent=1 // pred_region
      _
    $region25: #{tpu_custom_call.1} parent=1 // pred_fallthru
      _
    // Predicated region
    $region26: #{tpu_custom_call.1} parent=1 // pred_check
      _
    $region27: #{tpu_custom_call.1} parent=1 // pred_check_branch
      %82 = sbr.rel (0) target = $region29
    $region28: #{tpu_custom_call.1} parent=1 // pred_region
      %84 = dma.done [#allocation3], 512
    $region29: #{tpu_custom_call.1} parent=1 // pred_fallthru
      _
    // Predicated region
    $region30: #{tpu_custom_call.1} parent=1 // pred_check
      _
    $region31: #{tpu_custom_call.1} parent=1 // pred_check_branch
      %86 = sbr.rel (0) target = $region33
    $region32: #{tpu_custom_call.1} parent=1 // pred_region
      %88 = dma.done [#allocation6], 128
    $region33: #{tpu_custom_call.1} parent=1 // pred_fallthru
      _
    // Predicated region
    $region34: #{tpu_custom_call.1} parent=1 // pred_check
      _
    $region35: #{tpu_custom_call.1} parent=1 // pred_check_branch
      %90 = sbr.rel (0) target = $region37
    $region36: #{tpu_custom_call.1} parent=1 // pred_region
      %92 = dma.done [#allocation6], 8192
    $region37: #{tpu_custom_call.1} parent=1 // pred_fallthru
      _
    // Predicated region
    $region38: #{tpu_custom_call.1} parent=1 // pred_check
      _
    $region39: #{tpu_custom_call.1} parent=1 // pred_check_branch
      %94 = sbr.rel (0) target = $region41
    $region40: #{tpu_custom_call.1} parent=1 // pred_region
      %96 = dma.done [#allocation9], 64
    $region41: #{tpu_custom_call.1} parent=1 // pred_fallthru
      _
    // Predicated region
    $region42: #{tpu_custom_call.1} parent=1 // pred_check
      _
    $region43: #{tpu_custom_call.1} parent=1 // pred_check_branch
      %98 = sbr.rel (0) target = $region45
    $region44: #{tpu_custom_call.1} parent=1 // pred_region
      %100 = dma.done [#allocation9], 1024
    $region45: #{tpu_custom_call.1} parent=1 // pred_fallthru
      _
    %v101 = vld [vmem:[#allocation5] sm:$0xff]
    %v102 = vld [vmem:[#allocation2] sm:$0xf]
    %v103 = vpack.c.bf16 %v101, %v101
    %v104 = vld [vmem:[#allocation7] sm:$0xff]
    %v105 = vld [vmem:[#allocation7 + $0x8] sm:$0xff]
    %v106 = vld [vmem:[#allocation7 + $0x10] sm:$0xff]
    %v107 = vld [vmem:[#allocation7 + $0x18] sm:$0xff]
    %v108 = vld [vmem:[#allocation7 + $0x20] sm:$0xff]
    %v109 = vld [vmem:[#allocation7 + $0x28] sm:$0xff]
    %v110 = vld [vmem:[#allocation7 + $0x30] sm:$0xff]
    %v111 = vld [vmem:[#allocation7 + $0x38] sm:$0xff]
    %v112 = vld [vmem:[#allocation7 + $0x40] sm:$0xff]
    %v113 = vld [vmem:[#allocation7 + $0x48] sm:$0xff]
    %v114 = vld [vmem:[#allocation7 + $0x50] sm:$0xff]
    %v115 = vld [vmem:[#allocation7 + $0x58] sm:$0xff]
    %v116 = vld [vmem:[#allocation7 + $0x60] sm:$0xff]
    %v117 = vld [vmem:[#allocation7 + $0x68] sm:$0xff]
    %v118 = vld [vmem:[#allocation7 + $0x70] sm:$0xff]
    %v119 = vld [vmem:[#allocation7 + $0x78] sm:$0xff]
    %v120 = vld [vmem:[#allocation7 + $0x80] sm:$0xff]
    %v121 = vld [vmem:[#allocation7 + $0x88] sm:$0xff]
    %v122 = vld [vmem:[#allocation7 + $0x90] sm:$0xff]
    %v123 = vld [vmem:[#allocation7 + $0x98] sm:$0xff]
    %v124 = vld [vmem:[#allocation7 + $0xa0] sm:$0xff]
    %v125 = vld [vmem:[#allocation7 + $0xa8] sm:$0xff]
    %v126 = vld [vmem:[#allocation7 + $0xb0] sm:$0xff]
    %v127 = vld [vmem:[#allocation7 + $0xb8] sm:$0xff]
    %v128 = vld [vmem:[#allocation7 + $0xc0] sm:$0xff]
    %v129 = vld [vmem:[#allocation7 + $0xc8] sm:$0xff]
    %v130 = vld [vmem:[#allocation7 + $0xd0] sm:$0xff]
    %v131 = vld [vmem:[#allocation7 + $0xd8] sm:$0xff]
    %v132 = vld [vmem:[#allocation7 + $0xe0] sm:$0xff]
    %v133 = vld [vmem:[#allocation7 + $0xe8] sm:$0xff]
    %v134 = vld [vmem:[#allocation7 + $0xf0] sm:$0xff]
    %v135 = vld [vmem:[#allocation7 + $0xf8] sm:$0xff]
    %v136 = vld [vmem:[#allocation7 + $0x100] sm:$0xff]
    %v137 = vld [vmem:[#allocation7 + $0x108] sm:$0xff]
    %v138 = vld [vmem:[#allocation7 + $0x110] sm:$0xff]
    %v139 = vld [vmem:[#allocation7 + $0x118] sm:$0xff]
    %v140 = vld [vmem:[#allocation7 + $0x120] sm:$0xff]
    %v141 = vld [vmem:[#allocation7 + $0x128] sm:$0xff]
    %v142 = vld [vmem:[#allocation7 + $0x130] sm:$0xff]
    %v143 = vld [vmem:[#allocation7 + $0x138] sm:$0xff]
    %v144 = vld [vmem:[#allocation7 + $0x140] sm:$0xff]
    %v145 = vld [vmem:[#allocation7 + $0x148] sm:$0xff]
    %v146 = vld [vmem:[#allocation7 + $0x150] sm:$0xff]
    %v147 = vld [vmem:[#allocation7 + $0x158] sm:$0xff]
    %v148 = vld [vmem:[#allocation7 + $0x160] sm:$0xff]
    %v149 = vld [vmem:[#allocation7 + $0x168] sm:$0xff]
    %v150 = vld [vmem:[#allocation7 + $0x170] sm:$0xff]
    %v151 = vld [vmem:[#allocation7 + $0x178] sm:$0xff]
    %v152 = vld [vmem:[#allocation7 + $0x180] sm:$0xff]
    %v153 = vld [vmem:[#allocation7 + $0x188] sm:$0xff]
    %v154 = vld [vmem:[#allocation7 + $0x190] sm:$0xff]
    %v155 = vld [vmem:[#allocation7 + $0x198] sm:$0xff]
    %v156 = vld [vmem:[#allocation7 + $0x1a0] sm:$0xff]
    %v157 = vld [vmem:[#allocation7 + $0x1a8] sm:$0xff]
    %v158 = vld [vmem:[#allocation7 + $0x1b0] sm:$0xff]
    %v159 = vld [vmem:[#allocation7 + $0x1b8] sm:$0xff]
    %v160 = vld [vmem:[#allocation7 + $0x1c0] sm:$0xff]
    %v161 = vld [vmem:[#allocation7 + $0x1c8] sm:$0xff]
    %v162 = vld [vmem:[#allocation7 + $0x1d0] sm:$0xff]
    %v163 = vld [vmem:[#allocation7 + $0x1d8] sm:$0xff]
    %v164 = vld [vmem:[#allocation7 + $0x1e0] sm:$0xff]
    %v165 = vld [vmem:[#allocation7 + $0x1e8] sm:$0xff]
    %v166 = vld [vmem:[#allocation7 + $0x1f0] sm:$0xff]
    %v167 = vld [vmem:[#allocation7 + $0x1f8] sm:$0xff]
    %v168 = vld [vmem:[#allocation8] sm:$0xf]
    %v170 = vperm.slane %v168, 0
    %v171 = vperm.slane %v168, 1
    %v172 = vperm.slane %v168, 2
    %v173 = vperm.slane %v168, 3
    %v242 = vunpack.c.l.b16 %v104
    %v243 = vunpack.c.h.b16 %v104
    %v244 = vunpack.c.l.b16 %v105
    %v245 = vunpack.c.h.b16 %v105
    %v246 = vunpack.c.l.b16 %v106
    %v247 = vunpack.c.h.b16 %v106
    %v248 = vunpack.c.l.b16 %v107
    %v249 = vunpack.c.h.b16 %v107
    %v250 = vunpack.c.l.b16 %v108
    %v251 = vunpack.c.h.b16 %v108
    %v252 = vunpack.c.l.b16 %v109
    %v253 = vunpack.c.h.b16 %v109
    %v254 = vunpack.c.l.b16 %v110
    %v255 = vunpack.c.h.b16 %v110
    %v256 = vunpack.c.l.b16 %v111
    %v257 = vunpack.c.h.b16 %v111
    %v258 = vunpack.c.l.b16 %v112
    %v259 = vunpack.c.h.b16 %v112
    %v260 = vunpack.c.l.b16 %v113
    %v261 = vunpack.c.h.b16 %v113
    %v262 = vunpack.c.l.b16 %v114
    %v263 = vunpack.c.h.b16 %v114
    %v264 = vunpack.c.l.b16 %v115
    %v265 = vunpack.c.h.b16 %v115
    %v266 = vunpack.c.l.b16 %v116
    %v267 = vunpack.c.h.b16 %v116
    %v268 = vunpack.c.l.b16 %v117
    %v269 = vunpack.c.h.b16 %v117
    %v270 = vunpack.c.l.b16 %v118
    %v271 = vunpack.c.h.b16 %v118
    %v272 = vunpack.c.l.b16 %v119
    %v273 = vunpack.c.h.b16 %v119
    %v274 = vunpack.c.l.b16 %v120
    %v275 = vunpack.c.h.b16 %v120
    %v276 = vunpack.c.l.b16 %v121
    %v277 = vunpack.c.h.b16 %v121
    %v278 = vunpack.c.l.b16 %v122
    %v279 = vunpack.c.h.b16 %v122
    %v280 = vunpack.c.l.b16 %v123
    %v281 = vunpack.c.h.b16 %v123
    %v282 = vunpack.c.l.b16 %v124
    %v283 = vunpack.c.h.b16 %v124
    %v284 = vunpack.c.l.b16 %v125
    %v285 = vunpack.c.h.b16 %v125
    %v286 = vunpack.c.l.b16 %v126
    %v287 = vunpack.c.h.b16 %v126
    %v288 = vunpack.c.l.b16 %v127
    %v289 = vunpack.c.h.b16 %v127
    %v290 = vunpack.c.l.b16 %v128
    %v291 = vunpack.c.h.b16 %v128
    %v292 = vunpack.c.l.b16 %v129
    %v293 = vunpack.c.h.b16 %v129
    %v294 = vunpack.c.l.b16 %v130
    %v295 = vunpack.c.h.b16 %v130
    %v296 = vunpack.c.l.b16 %v131
    %v297 = vunpack.c.h.b16 %v131
    %v298 = vunpack.c.l.b16 %v132
    %v299 = vunpack.c.h.b16 %v132
    %v300 = vunpack.c.l.b16 %v133
    %v301 = vunpack.c.h.b16 %v133
    %v302 = vunpack.c.l.b16 %v134
    %v303 = vunpack.c.h.b16 %v134
    %v304 = vunpack.c.l.b16 %v135
    %v305 = vunpack.c.h.b16 %v135
    %v306 = vunpack.c.l.b16 %v136
    %v307 = vunpack.c.h.b16 %v136
    %v308 = vunpack.c.l.b16 %v137
    %v309 = vunpack.c.h.b16 %v137
    %v310 = vunpack.c.l.b16 %v138
    %v311 = vunpack.c.h.b16 %v138
    %v312 = vunpack.c.l.b16 %v139
    %v313 = vunpack.c.h.b16 %v139
    %v314 = vunpack.c.l.b16 %v140
    %v315 = vunpack.c.h.b16 %v140
    %v316 = vunpack.c.l.b16 %v141
    %v317 = vunpack.c.h.b16 %v141
    %v318 = vunpack.c.l.b16 %v142
    %v319 = vunpack.c.h.b16 %v142
    %v320 = vunpack.c.l.b16 %v143
    %v321 = vunpack.c.h.b16 %v143
    %v322 = vunpack.c.l.b16 %v144
    %v323 = vunpack.c.h.b16 %v144
    %v324 = vunpack.c.l.b16 %v145
    %v325 = vunpack.c.h.b16 %v145
    %v326 = vunpack.c.l.b16 %v146
    %v327 = vunpack.c.h.b16 %v146
    %v328 = vunpack.c.l.b16 %v147
    %v329 = vunpack.c.h.b16 %v147
    %v330 = vunpack.c.l.b16 %v148
    %v331 = vunpack.c.h.b16 %v148
    %v332 = vunpack.c.l.b16 %v149
    %v333 = vunpack.c.h.b16 %v149
    %v334 = vunpack.c.l.b16 %v150
    %v335 = vunpack.c.h.b16 %v150
    %v336 = vunpack.c.l.b16 %v151
    %v337 = vunpack.c.h.b16 %v151
    %v338 = vunpack.c.l.b16 %v152
    %v339 = vunpack.c.h.b16 %v152
    %v340 = vunpack.c.l.b16 %v153
    %v341 = vunpack.c.h.b16 %v153
    %v342 = vunpack.c.l.b16 %v154
    %v343 = vunpack.c.h.b16 %v154
    %v344 = vunpack.c.l.b16 %v155
    %v345 = vunpack.c.h.b16 %v155
    %v346 = vunpack.c.l.b16 %v156
    %v347 = vunpack.c.h.b16 %v156
    %v348 = vunpack.c.l.b16 %v157
    %v349 = vunpack.c.h.b16 %v157
    %v350 = vunpack.c.l.b16 %v158
    %v351 = vunpack.c.h.b16 %v158
    %v352 = vunpack.c.l.b16 %v159
    %v353 = vunpack.c.h.b16 %v159
    %v354 = vunpack.c.l.b16 %v160
    %v355 = vunpack.c.h.b16 %v160
    %v356 = vunpack.c.l.b16 %v161
    %v357 = vunpack.c.h.b16 %v161
    %v358 = vunpack.c.l.b16 %v162
    %v359 = vunpack.c.h.b16 %v162
    %v360 = vunpack.c.l.b16 %v163
    %v361 = vunpack.c.h.b16 %v163
    %v362 = vunpack.c.l.b16 %v164
    %v363 = vunpack.c.h.b16 %v164
    %v364 = vunpack.c.l.b16 %v165
    %v365 = vunpack.c.h.b16 %v165
    %v366 = vunpack.c.l.b16 %v166
    %v367 = vunpack.c.h.b16 %v166
    %v368 = vunpack.c.l.b16 %v167
    %v369 = vunpack.c.h.b16 %v167
    %v370 = vpack.c.b16 %v246, %v242
    %v371 = vpack.c.b16 %v247, %v243
    %v372 = vpack.c.b16 %v248, %v244
    %v373 = vpack.c.b16 %v249, %v245
    %v374 = vpack.c.b16 %v254, %v250
    %v375 = vpack.c.b16 %v255, %v251
    %v376 = vpack.c.b16 %v256, %v252
    %v377 = vpack.c.b16 %v257, %v253
    %v378 = vpack.c.b16 %v262, %v258
    %v379 = vpack.c.b16 %v263, %v259
    %v380 = vpack.c.b16 %v264, %v260
    %v381 = vpack.c.b16 %v265, %v261
    %v382 = vpack.c.b16 %v270, %v266
    %v383 = vpack.c.b16 %v271, %v267
    %v384 = vpack.c.b16 %v272, %v268
    %v385 = vpack.c.b16 %v273, %v269
    %v386 = vpack.c.b16 %v278, %v274
    %v387 = vpack.c.b16 %v279, %v275
    %v388 = vpack.c.b16 %v280, %v276
    %v389 = vpack.c.b16 %v281, %v277
    %v390 = vpack.c.b16 %v286, %v282
    %v391 = vpack.c.b16 %v287, %v283
    %v392 = vpack.c.b16 %v288, %v284
    %v393 = vpack.c.b16 %v289, %v285
    %v394 = vpack.c.b16 %v294, %v290
    %v395 = vpack.c.b16 %v295, %v291
    %v396 = vpack.c.b16 %v296, %v292
    %v397 = vpack.c.b16 %v297, %v293
    %v398 = vpack.c.b16 %v302, %v298
    %v399 = vpack.c.b16 %v303, %v299
    %v400 = vpack.c.b16 %v304, %v300
    %v401 = vpack.c.b16 %v305, %v301
    %v402 = vpack.c.b16 %v310, %v306
    %v403 = vpack.c.b16 %v311, %v307
    %v404 = vpack.c.b16 %v312, %v308
    %v405 = vpack.c.b16 %v313, %v309
    %v406 = vpack.c.b16 %v318, %v314
    %v407 = vpack.c.b16 %v319, %v315
    %v408 = vpack.c.b16 %v320, %v316
    %v409 = vpack.c.b16 %v321, %v317
    %v410 = vpack.c.b16 %v326, %v322
    %v411 = vpack.c.b16 %v327, %v323
    %v412 = vpack.c.b16 %v328, %v324
    %v413 = vpack.c.b16 %v329, %v325
    %v414 = vpack.c.b16 %v334, %v330
    %v415 = vpack.c.b16 %v335, %v331
    %v416 = vpack.c.b16 %v336, %v332
    %v417 = vpack.c.b16 %v337, %v333
    %v418 = vpack.c.b16 %v342, %v338
    %v419 = vpack.c.b16 %v343, %v339
    %v420 = vpack.c.b16 %v344, %v340
    %v421 = vpack.c.b16 %v345, %v341
    %v422 = vpack.c.b16 %v350, %v346
    %v423 = vpack.c.b16 %v351, %v347
    %v424 = vpack.c.b16 %v352, %v348
    %v425 = vpack.c.b16 %v353, %v349
    %v426 = vpack.c.b16 %v358, %v354
    %v427 = vpack.c.b16 %v359, %v355
    %v428 = vpack.c.b16 %v360, %v356
    %v429 = vpack.c.b16 %v361, %v357
    %v430 = vpack.c.b16 %v366, %v362
    %v431 = vpack.c.b16 %v367, %v363
    %v432 = vpack.c.b16 %v368, %v364
    %v433 = vpack.c.b16 %v369, %v365
    %498 = vmatpush.bf16.msra.mxu0 %v398
    %499 = vmatpush.bf16.msra.mxu0 %v394
    %500 = vmatpush.bf16.msra.mxu0 %v390
    %501 = vmatpush.bf16.msra.mxu0 %v386
    %502 = vmatpush.bf16.msra.mxu0 %v382
    %503 = vmatpush.bf16.msra.mxu0 %v378
    %504 = vmatpush.bf16.msra.mxu0 %v374
    %505 = vmatpush.bf16.msra.mxu0 %v370
    %506 = vmatmul.bf16.gmra.mxu0 %v102
    %v507 = vpop.f32.mrf.mxu0
    %v508 = vadd.f32 %v170, %v507
    %v509 = vpop.f32.mrf.mxu0
    %510 = vdwg.mxu0
    %511 = vmatpush.bf16.msra.mxu0 %v430
    %512 = vmatpush.bf16.msra.mxu0 %v426
    %513 = vmatpush.bf16.msra.mxu0 %v422
    %514 = vmatpush.bf16.msra.mxu0 %v418
    %515 = vmatpush.bf16.msra.mxu0 %v414
    %516 = vmatpush.bf16.msra.mxu0 %v410
    %517 = vmatpush.bf16.msra.mxu0 %v406
    %518 = vmatpush.bf16.msra.mxu0 %v402
    %519 = vmatmul.bf16.gmra.mxu0 %v103
    %v520 = vpop.f32.mrf.mxu0
    %v521 = vadd.f32 %v508, %v520
    %v522 = vpop.f32.mrf.mxu0
    %523 = vdwg.mxu0
    %524 = vmatpush.bf16.msra.mxu0 %v399
    %525 = vmatpush.bf16.msra.mxu0 %v395
    %526 = vmatpush.bf16.msra.mxu0 %v391
    %527 = vmatpush.bf16.msra.mxu0 %v387
    %528 = vmatpush.bf16.msra.mxu0 %v383
    %529 = vmatpush.bf16.msra.mxu0 %v379
    %530 = vmatpush.bf16.msra.mxu0 %v375
    %531 = vmatpush.bf16.msra.mxu0 %v371
    %532 = vmatmul.bf16.gmra.mxu0 %v102
    %v533 = vpop.f32.mrf.mxu0
    %v534 = vadd.f32 %v171, %v533
    %v535 = vpop.f32.mrf.mxu0
    %536 = vdwg.mxu0
    %537 = vmatpush.bf16.msra.mxu0 %v431
    %538 = vmatpush.bf16.msra.mxu0 %v427
    %539 = vmatpush.bf16.msra.mxu0 %v423
    %540 = vmatpush.bf16.msra.mxu0 %v419
    %541 = vmatpush.bf16.msra.mxu0 %v415
    %542 = vmatpush.bf16.msra.mxu0 %v411
    %543 = vmatpush.bf16.msra.mxu0 %v407
    %544 = vmatpush.bf16.msra.mxu0 %v403
    %545 = vmatmul.bf16.gmra.mxu0 %v103
    %v546 = vpop.f32.mrf.mxu0
    %v547 = vadd.f32 %v534, %v546
    %v548 = vpop.f32.mrf.mxu0
    %549 = vdwg.mxu0
    %550 = vmatpush.bf16.msra.mxu0 %v400
    %551 = vmatpush.bf16.msra.mxu0 %v396
    %552 = vmatpush.bf16.msra.mxu0 %v392
    %553 = vmatpush.bf16.msra.mxu0 %v388
    %554 = vmatpush.bf16.msra.mxu0 %v384
    %555 = vmatpush.bf16.msra.mxu0 %v380
    %556 = vmatpush.bf16.msra.mxu0 %v376
    %557 = vmatpush.bf16.msra.mxu0 %v372
    %558 = vmatmul.bf16.gmra.mxu0 %v102
    %v559 = vpop.f32.mrf.mxu0
    %v560 = vadd.f32 %v172, %v559
    %v561 = vpop.f32.mrf.mxu0
    %562 = vdwg.mxu0
    %563 = vmatpush.bf16.msra.mxu0 %v432
    %564 = vmatpush.bf16.msra.mxu0 %v428
    %565 = vmatpush.bf16.msra.mxu0 %v424
    %566 = vmatpush.bf16.msra.mxu0 %v420
    %567 = vmatpush.bf16.msra.mxu0 %v416
    %568 = vmatpush.bf16.msra.mxu0 %v412
    %569 = vmatpush.bf16.msra.mxu0 %v408
    %570 = vmatpush.bf16.msra.mxu0 %v404
    %571 = vmatmul.bf16.gmra.mxu0 %v103
    %v572 = vpop.f32.mrf.mxu0
    %v573 = vadd.f32 %v560, %v572
    %v574 = vpop.f32.mrf.mxu0
    %575 = vdwg.mxu0
    %576 = vmatpush.bf16.msra.mxu0 %v401
    %577 = vmatpush.bf16.msra.mxu0 %v397
    %578 = vmatpush.bf16.msra.mxu0 %v393
    %579 = vmatpush.bf16.msra.mxu0 %v389
    %580 = vmatpush.bf16.msra.mxu0 %v385
    %581 = vmatpush.bf16.msra.mxu0 %v381
    %582 = vmatpush.bf16.msra.mxu0 %v377
    %583 = vmatpush.bf16.msra.mxu0 %v373
    %584 = vmatmul.bf16.gmra.mxu0 %v102
    %v585 = vpop.f32.mrf.mxu0
    %v586 = vadd.f32 %v173, %v585
    %v587 = vpop.f32.mrf.mxu0
    %588 = vdwg.mxu0
    %589 = vmatpush.bf16.msra.mxu0 %v433
    %590 = vmatpush.bf16.msra.mxu0 %v429
    %591 = vmatpush.bf16.msra.mxu0 %v425
    %592 = vmatpush.bf16.msra.mxu0 %v421
    %593 = vmatpush.bf16.msra.mxu0 %v417
    %594 = vmatpush.bf16.msra.mxu0 %v413
    %595 = vmatpush.bf16.msra.mxu0 %v409
    %596 = vmatpush.bf16.msra.mxu0 %v405
    %597 = vmatmul.bf16.gmra.mxu0 %v103
    %v598 = vpop.f32.mrf.mxu0
    %v599 = vadd.f32 %v586, %v598
    %v600 = vpop.f32.mrf.mxu0
    %601 = vdwg.mxu0
    %v602 = vxor.u32 %v521, 2147483648
    %v603 = vmul.f32 %v602, 1.442695
    %v604 = vpow.pop %v603
    %v605 = vadd.f32 %v604, 1.0
    %v606 = vrcp.pop %v605
    %v607 = vmul.f32 %v605, %v606
    %v608 = vsub.f32 1.0, %v607
    %v609 = vmul.f32 %v606, %v608
    %v610 = vadd.f32 %v606, %v609
    %vm611 = vweird.f32 %v605
    %vm612 = vweird.f32 %v606
    %vm613 = vmor %vm611, %vm612
    %v614 = vsel %vm613, %v606, %v610
    %v615 = vand.u32 2147483647, %v605
    %vm616 = vcmp.eq.f32.partialorder %v615, 8.507059e+37
    %v617 = vand.u32 %v605, 2147483648
    %v618 = vor.u32 1.1754944e-38, %v617
    %v619 = vsel %vm616, %v618, %v614
    %v620 = vmul.f32 1.0, %v619
    %v621 = vxor.u32 %v547, 2147483648
    %v622 = vmul.f32 %v621, 1.442695
    %v623 = vpow.pop %v622
    %v624 = vadd.f32 %v623, 1.0
    %v625 = vrcp.pop %v624
    %v626 = vmul.f32 %v624, %v625
    %v627 = vsub.f32 1.0, %v626
    %v628 = vmul.f32 %v625, %v627
    %v629 = vadd.f32 %v625, %v628
    %vm630 = vweird.f32 %v624
    %vm631 = vweird.f32 %v625
    %vm632 = vmor %vm630, %vm631
    %v633 = vsel %vm632, %v625, %v629
    %v634 = vand.u32 2147483647, %v624
    %vm635 = vcmp.eq.f32.partialorder %v634, 8.507059e+37
    %v636 = vand.u32 %v624, 2147483648
    %v637 = vor.u32 1.1754944e-38, %v636
    %v638 = vsel %vm635, %v637, %v633
    %v639 = vmul.f32 1.0, %v638
    %v640 = vmul.f32 %v620, %v599
    %v641 = vadd.f32 %v573, %v640
    %v642 = vtanh.pop %v641
    %v643 = vsub.f32 1.0, %v639
    %v644 = vmul.f32 %v643, %v642
    %v645 = vmul.f32 %v639, %v101
    %v646 = vadd.f32 %v644, %v645
    %v647 = vpack.c.bf16 %v646, %v646
    %v648 = vld [vmem:[#allocation10] sm:$0xf]
    %v649 = vld [vmem:[#allocation10 + $0x4] sm:$0xf]
    %v650 = vld [vmem:[#allocation10 + $0x8] sm:$0xf]
    %v651 = vld [vmem:[#allocation10 + $0xc] sm:$0xf]
    %v652 = vld [vmem:[#allocation10 + $0x10] sm:$0xf]
    %v653 = vld [vmem:[#allocation10 + $0x14] sm:$0xf]
    %v654 = vld [vmem:[#allocation10 + $0x18] sm:$0xf]
    %v655 = vld [vmem:[#allocation10 + $0x1c] sm:$0xf]
    %v656 = vld [vmem:[#allocation10 + $0x20] sm:$0xf]
    %v657 = vld [vmem:[#allocation10 + $0x24] sm:$0xf]
    %v658 = vld [vmem:[#allocation10 + $0x28] sm:$0xf]
    %v659 = vld [vmem:[#allocation10 + $0x2c] sm:$0xf]
    %v660 = vld [vmem:[#allocation10 + $0x30] sm:$0xf]
    %v661 = vld [vmem:[#allocation10 + $0x34] sm:$0xf]
    %v662 = vld [vmem:[#allocation10 + $0x38] sm:$0xf]
    %v663 = vld [vmem:[#allocation10 + $0x3c] sm:$0xf]
    %v664 = vld [vmem:[%s5] sm:$0x1]
    %v666 = vperm.slane %v664, 0
    %v684 = vunpack.c.l.b16 %v648
    %v685 = vunpack.c.l.b16 %v649
    %v686 = vunpack.c.l.b16 %v650
    %v687 = vunpack.c.l.b16 %v651
    %v688 = vunpack.c.l.b16 %v652
    %v689 = vunpack.c.l.b16 %v653
    %v690 = vunpack.c.l.b16 %v654
    %v691 = vunpack.c.l.b16 %v655
    %v692 = vunpack.c.l.b16 %v656
    %v693 = vunpack.c.l.b16 %v657
    %v694 = vunpack.c.l.b16 %v658
    %v695 = vunpack.c.l.b16 %v659
    %v696 = vunpack.c.l.b16 %v660
    %v697 = vunpack.c.l.b16 %v661
    %v698 = vunpack.c.l.b16 %v662
    %v699 = vunpack.c.l.b16 %v663
    %v700 = vpack.c.b16 %v685, %v684
    %v701 = vpack.c.b16 %v687, %v686
    %v702 = vpack.c.b16 %v689, %v688
    %v703 = vpack.c.b16 %v691, %v690
    %v704 = vpack.c.b16 %v693, %v692
    %v705 = vpack.c.b16 %v695, %v694
    %v706 = vpack.c.b16 %v697, %v696
    %v707 = vpack.c.b16 %v699, %v698
    %716 = vmatpush.bf16.msra.mxu0 %v707
    %717 = vmatpush.bf16.msra.mxu0 %v706
    %718 = vmatpush.bf16.msra.mxu0 %v705
    %719 = vmatpush.bf16.msra.mxu0 %v704
    %720 = vmatpush.bf16.msra.mxu0 %v703
    %721 = vmatpush.bf16.msra.mxu0 %v702
    %722 = vmatpush.bf16.msra.mxu0 %v701
    %723 = vmatpush.bf16.msra.mxu0 %v700
    %724 = vmatmul.bf16.gmra.mxu0 %v647
    %v725 = vpop.f32.mrf.mxu0
    %v726 = vadd.f32 %v666, %v725
    %v727 = vpop.f32.mrf.mxu0
    %728 = vdwg.mxu0
    %729 = vmax.xlane.f32.xlu0 %v726
    %v730 = vpop.xlane.xlu0 %729
    %v731 = vsub.f32 %v726, %v730
    %v732 = vmul.f32 %v731, 1.442695
    %v733 = vpow.pop %v732
    %734 = vadd.xlane.f32.xlu0 %v733
    %v735 = vpop.xlane.xlu0 %734
    %v736 = vlog2.pop %v735
    %v737 = vmul.f32 %v736, 0.6931472
    %v738 = vsub.f32 %v731, %v737
    %739 = vst [vmem:[#allocation11] sm:$0xff] %v738
    %s740 = scalar_lea.vmem [#allocation2], 4
    %v741 = vld [vmem:[%s740] sm:$0xf]
    %v742 = vld [vmem:[#allocation7] sm:$0xff]
    %v743 = vld [vmem:[#allocation7 + $0x8] sm:$0xff]
    %v744 = vld [vmem:[#allocation7 + $0x10] sm:$0xff]
    %v745 = vld [vmem:[#allocation7 + $0x18] sm:$0xff]
    %v746 = vld [vmem:[#allocation7 + $0x20] sm:$0xff]
    %v747 = vld [vmem:[#allocation7 + $0x28] sm:$0xff]
    %v748 = vld [vmem:[#allocation7 + $0x30] sm:$0xff]
    %v749 = vld [vmem:[#allocation7 + $0x38] sm:$0xff]
    %v750 = vld [vmem:[#allocation7 + $0x40] sm:$0xff]
    %v751 = vld [vmem:[#allocation7 + $0x48] sm:$0xff]
    %v752 = vld [vmem:[#allocation7 + $0x50] sm:$0xff]
    %v753 = vld [vmem:[#allocation7 + $0x58] sm:$0xff]
    %v754 = vld [vmem:[#allocation7 + $0x60] sm:$0xff]
    %v755 = vld [vmem:[#allocation7 + $0x68] sm:$0xff]
    %v756 = vld [vmem:[#allocation7 + $0x70] sm:$0xff]
    %v757 = vld [vmem:[#allocation7 + $0x78] sm:$0xff]
    %v758 = vld [vmem:[#allocation7 + $0x80] sm:$0xff]
    %v759 = vld [vmem:[#allocation7 + $0x88] sm:$0xff]
    %v760 = vld [vmem:[#allocation7 + $0x90] sm:$0xff]
    %v761 = vld [vmem:[#allocation7 + $0x98] sm:$0xff]
    %v762 = vld [vmem:[#allocation7 + $0xa0] sm:$0xff]
    %v763 = vld [vmem:[#allocation7 + $0xa8] sm:$0xff]
    %v764 = vld [vmem:[#allocation7 + $0xb0] sm:$0xff]
    %v765 = vld [vmem:[#allocation7 + $0xb8] sm:$0xff]
    %v766 = vld [vmem:[#allocation7 + $0xc0] sm:$0xff]
    %v767 = vld [vmem:[#allocation7 + $0xc8] sm:$0xff]
    %v768 = vld [vmem:[#allocation7 + $0xd0] sm:$0xff]
    %v769 = vld [vmem:[#allocation7 + $0xd8] sm:$0xff]
    %v770 = vld [vmem:[#allocation7 + $0xe0] sm:$0xff]
    %v771 = vld [vmem:[#allocation7 + $0xe8] sm:$0xff]
    %v772 = vld [vmem:[#allocation7 + $0xf0] sm:$0xff]
    %v773 = vld [vmem:[#allocation7 + $0xf8] sm:$0xff]
    %v774 = vld [vmem:[#allocation7 + $0x100] sm:$0xff]
    %v775 = vld [vmem:[#allocation7 + $0x108] sm:$0xff]
    %v776 = vld [vmem:[#allocation7 + $0x110] sm:$0xff]
    %v777 = vld [vmem:[#allocation7 + $0x118] sm:$0xff]
    %v778 = vld [vmem:[#allocation7 + $0x120] sm:$0xff]
    %v779 = vld [vmem:[#allocation7 + $0x128] sm:$0xff]
    %v780 = vld [vmem:[#allocation7 + $0x130] sm:$0xff]
    %v781 = vld [vmem:[#allocation7 + $0x138] sm:$0xff]
    %v782 = vld [vmem:[#allocation7 + $0x140] sm:$0xff]
    %v783 = vld [vmem:[#allocation7 + $0x148] sm:$0xff]
    %v784 = vld [vmem:[#allocation7 + $0x150] sm:$0xff]
    %v785 = vld [vmem:[#allocation7 + $0x158] sm:$0xff]
    %v786 = vld [vmem:[#allocation7 + $0x160] sm:$0xff]
    %v787 = vld [vmem:[#allocation7 + $0x168] sm:$0xff]
    %v788 = vld [vmem:[#allocation7 + $0x170] sm:$0xff]
    %v789 = vld [vmem:[#allocation7 + $0x178] sm:$0xff]
    %v790 = vld [vmem:[#allocation7 + $0x180] sm:$0xff]
    %v791 = vld [vmem:[#allocation7 + $0x188] sm:$0xff]
    %v792 = vld [vmem:[#allocation7 + $0x190] sm:$0xff]
    %v793 = vld [vmem:[#allocation7 + $0x198] sm:$0xff]
    %v794 = vld [vmem:[#allocation7 + $0x1a0] sm:$0xff]
    %v795 = vld [vmem:[#allocation7 + $0x1a8] sm:$0xff]
    %v796 = vld [vmem:[#allocation7 + $0x1b0] sm:$0xff]
    %v797 = vld [vmem:[#allocation7 + $0x1b8] sm:$0xff]
    %v798 = vld [vmem:[#allocation7 + $0x1c0] sm:$0xff]
    %v799 = vld [vmem:[#allocation7 + $0x1c8] sm:$0xff]
    %v800 = vld [vmem:[#allocation7 + $0x1d0] sm:$0xff]
    %v801 = vld [vmem:[#allocation7 + $0x1d8] sm:$0xff]
    %v802 = vld [vmem:[#allocation7 + $0x1e0] sm:$0xff]
    %v803 = vld [vmem:[#allocation7 + $0x1e8] sm:$0xff]
    %v804 = vld [vmem:[#allocation7 + $0x1f0] sm:$0xff]
    %v805 = vld [vmem:[#allocation7 + $0x1f8] sm:$0xff]
    %v806 = vld [vmem:[#allocation8] sm:$0xf]
    %v808 = vperm.slane %v806, 0
    %v809 = vperm.slane %v806, 1
    %v810 = vperm.slane %v806, 2
    %v811 = vperm.slane %v806, 3
    %v880 = vunpack.c.l.b16 %v742
    %v881 = vunpack.c.h.b16 %v742
    %v882 = vunpack.c.l.b16 %v743
    %v883 = vunpack.c.h.b16 %v743
    %v884 = vunpack.c.l.b16 %v744
    %v885 = vunpack.c.h.b16 %v744
    %v886 = vunpack.c.l.b16 %v745
    %v887 = vunpack.c.h.b16 %v745
    %v888 = vunpack.c.l.b16 %v746
    %v889 = vunpack.c.h.b16 %v746
    %v890 = vunpack.c.l.b16 %v747
    %v891 = vunpack.c.h.b16 %v747
    %v892 = vunpack.c.l.b16 %v748
    %v893 = vunpack.c.h.b16 %v748
    %v894 = vunpack.c.l.b16 %v749
    %v895 = vunpack.c.h.b16 %v749
    %v896 = vunpack.c.l.b16 %v750
    %v897 = vunpack.c.h.b16 %v750
    %v898 = vunpack.c.l.b16 %v751
    %v899 = vunpack.c.h.b16 %v751
    %v900 = vunpack.c.l.b16 %v752
    %v901 = vunpack.c.h.b16 %v752
    %v902 = vunpack.c.l.b16 %v753
    %v903 = vunpack.c.h.b16 %v753
    %v904 = vunpack.c.l.b16 %v754
    %v905 = vunpack.c.h.b16 %v754
    %v906 = vunpack.c.l.b16 %v755
    %v907 = vunpack.c.h.b16 %v755
    %v908 = vunpack.c.l.b16 %v756
    %v909 = vunpack.c.h.b16 %v756
    %v910 = vunpack.c.l.b16 %v757
    %v911 = vunpack.c.h.b16 %v757
    %v912 = vunpack.c.l.b16 %v758
    %v913 = vunpack.c.h.b16 %v758
    %v914 = vunpack.c.l.b16 %v759
    %v915 = vunpack.c.h.b16 %v759
    %v916 = vunpack.c.l.b16 %v760
    %v917 = vunpack.c.h.b16 %v760
    %v918 = vunpack.c.l.b16 %v761
    %v919 = vunpack.c.h.b16 %v761
    %v920 = vunpack.c.l.b16 %v762
    %v921 = vunpack.c.h.b16 %v762
    %v922 = vunpack.c.l.b16 %v763
    %v923 = vunpack.c.h.b16 %v763
    %v924 = vunpack.c.l.b16 %v764
    %v925 = vunpack.c.h.b16 %v764
    %v926 = vunpack.c.l.b16 %v765
    %v927 = vunpack.c.h.b16 %v765
    %v928 = vunpack.c.l.b16 %v766
    %v929 = vunpack.c.h.b16 %v766
    %v930 = vunpack.c.l.b16 %v767
    %v931 = vunpack.c.h.b16 %v767
    %v932 = vunpack.c.l.b16 %v768
    %v933 = vunpack.c.h.b16 %v768
    %v934 = vunpack.c.l.b16 %v769
    %v935 = vunpack.c.h.b16 %v769
    %v936 = vunpack.c.l.b16 %v770
    %v937 = vunpack.c.h.b16 %v770
    %v938 = vunpack.c.l.b16 %v771
    %v939 = vunpack.c.h.b16 %v771
    %v940 = vunpack.c.l.b16 %v772
    %v941 = vunpack.c.h.b16 %v772
    %v942 = vunpack.c.l.b16 %v773
    %v943 = vunpack.c.h.b16 %v773
    %v944 = vunpack.c.l.b16 %v774
    %v945 = vunpack.c.h.b16 %v774
    %v946 = vunpack.c.l.b16 %v775
    %v947 = vunpack.c.h.b16 %v775
    %v948 = vunpack.c.l.b16 %v776
    %v949 = vunpack.c.h.b16 %v776
    %v950 = vunpack.c.l.b16 %v777
    %v951 = vunpack.c.h.b16 %v777
    %v952 = vunpack.c.l.b16 %v778
    %v953 = vunpack.c.h.b16 %v778
    %v954 = vunpack.c.l.b16 %v779
    %v955 = vunpack.c.h.b16 %v779
    %v956 = vunpack.c.l.b16 %v780
    %v957 = vunpack.c.h.b16 %v780
    %v958 = vunpack.c.l.b16 %v781
    %v959 = vunpack.c.h.b16 %v781
    %v960 = vunpack.c.l.b16 %v782
    %v961 = vunpack.c.h.b16 %v782
    %v962 = vunpack.c.l.b16 %v783
    %v963 = vunpack.c.h.b16 %v783
    %v964 = vunpack.c.l.b16 %v784
    %v965 = vunpack.c.h.b16 %v784
    %v966 = vunpack.c.l.b16 %v785
    %v967 = vunpack.c.h.b16 %v785
    %v968 = vunpack.c.l.b16 %v786
    %v969 = vunpack.c.h.b16 %v786
    %v970 = vunpack.c.l.b16 %v787
    %v971 = vunpack.c.h.b16 %v787
    %v972 = vunpack.c.l.b16 %v788
    %v973 = vunpack.c.h.b16 %v788
    %v974 = vunpack.c.l.b16 %v789
    %v975 = vunpack.c.h.b16 %v789
    %v976 = vunpack.c.l.b16 %v790
    %v977 = vunpack.c.h.b16 %v790
    %v978 = vunpack.c.l.b16 %v791
    %v979 = vunpack.c.h.b16 %v791
    %v980 = vunpack.c.l.b16 %v792
    %v981 = vunpack.c.h.b16 %v792
    %v982 = vunpack.c.l.b16 %v793
    %v983 = vunpack.c.h.b16 %v793
    %v984 = vunpack.c.l.b16 %v794
    %v985 = vunpack.c.h.b16 %v794
    %v986 = vunpack.c.l.b16 %v795
    %v987 = vunpack.c.h.b16 %v795
    %v988 = vunpack.c.l.b16 %v796
    %v989 = vunpack.c.h.b16 %v796
    %v990 = vunpack.c.l.b16 %v797
    %v991 = vunpack.c.h.b16 %v797
    %v992 = vunpack.c.l.b16 %v798
    %v993 = vunpack.c.h.b16 %v798
    %v994 = vunpack.c.l.b16 %v799
    %v995 = vunpack.c.h.b16 %v799
    %v996 = vunpack.c.l.b16 %v800
    %v997 = vunpack.c.h.b16 %v800
    %v998 = vunpack.c.l.b16 %v801
    %v999 = vunpack.c.h.b16 %v801
    %v1000 = vunpack.c.l.b16 %v802
    %v1001 = vunpack.c.h.b16 %v802
    %v1002 = vunpack.c.l.b16 %v803
    %v1003 = vunpack.c.h.b16 %v803
    %v1004 = vunpack.c.l.b16 %v804
    %v1005 = vunpack.c.h.b16 %v804
    %v1006 = vunpack.c.l.b16 %v805
    %v1007 = vunpack.c.h.b16 %v805
    %v1008 = vpack.c.b16 %v884, %v880
    %v1009 = vpack.c.b16 %v885, %v881
    %v1010 = vpack.c.b16 %v886, %v882
    %v1011 = vpack.c.b16 %v887, %v883
    %v1012 = vpack.c.b16 %v892, %v888
    %v1013 = vpack.c.b16 %v893, %v889
    %v1014 = vpack.c.b16 %v894, %v890
    %v1015 = vpack.c.b16 %v895, %v891
    %v1016 = vpack.c.b16 %v900, %v896
    %v1017 = vpack.c.b16 %v901, %v897
    %v1018 = vpack.c.b16 %v902, %v898
    %v1019 = vpack.c.b16 %v903, %v899
    %v1020 = vpack.c.b16 %v908, %v904
    %v1021 = vpack.c.b16 %v909, %v905
    %v1022 = vpack.c.b16 %v910, %v906
    %v1023 = vpack.c.b16 %v911, %v907
    %v1024 = vpack.c.b16 %v916, %v912
    %v1025 = vpack.c.b16 %v917, %v913
    %v1026 = vpack.c.b16 %v918, %v914
    %v1027 = vpack.c.b16 %v919, %v915
    %v1028 = vpack.c.b16 %v924, %v920
    %v1029 = vpack.c.b16 %v925, %v921
    %v1030 = vpack.c.b16 %v926, %v922
    %v1031 = vpack.c.b16 %v927, %v923
    %v1032 = vpack.c.b16 %v932, %v928
    %v1033 = vpack.c.b16 %v933, %v929
    %v1034 = vpack.c.b16 %v934, %v930
    %v1035 = vpack.c.b16 %v935, %v931
    %v1036 = vpack.c.b16 %v940, %v936
    %v1037 = vpack.c.b16 %v941, %v937
    %v1038 = vpack.c.b16 %v942, %v938
    %v1039 = vpack.c.b16 %v943, %v939
    %v1040 = vpack.c.b16 %v948, %v944
    %v1041 = vpack.c.b16 %v949, %v945
    %v1042 = vpack.c.b16 %v950, %v946
    %v1043 = vpack.c.b16 %v951, %v947
    %v1044 = vpack.c.b16 %v956, %v952
    %v1045 = vpack.c.b16 %v957, %v953
    %v1046 = vpack.c.b16 %v958, %v954
    %v1047 = vpack.c.b16 %v959, %v955
    %v1048 = vpack.c.b16 %v964, %v960
    %v1049 = vpack.c.b16 %v965, %v961
    %v1050 = vpack.c.b16 %v966, %v962
    %v1051 = vpack.c.b16 %v967, %v963
    %v1052 = vpack.c.b16 %v972, %v968
    %v1053 = vpack.c.b16 %v973, %v969
    %v1054 = vpack.c.b16 %v974, %v970
    %v1055 = vpack.c.b16 %v975, %v971
    %v1056 = vpack.c.b16 %v980, %v976
    %v1057 = vpack.c.b16 %v981, %v977
    %v1058 = vpack.c.b16 %v982, %v978
    %v1059 = vpack.c.b16 %v983, %v979
    %v1060 = vpack.c.b16 %v988, %v984
    %v1061 = vpack.c.b16 %v989, %v985
    %v1062 = vpack.c.b16 %v990, %v986
    %v1063 = vpack.c.b16 %v991, %v987
    %v1064 = vpack.c.b16 %v996, %v992
    %v1065 = vpack.c.b16 %v997, %v993
    %v1066 = vpack.c.b16 %v998, %v994
    %v1067 = vpack.c.b16 %v999, %v995
    %v1068 = vpack.c.b16 %v1004, %v1000
    %v1069 = vpack.c.b16 %v1005, %v1001
    %v1070 = vpack.c.b16 %v1006, %v1002
    %v1071 = vpack.c.b16 %v1007, %v1003
    %1136 = vmatpush.bf16.msra.mxu0 %v1036
    %1137 = vmatpush.bf16.msra.mxu0 %v1032
    %1138 = vmatpush.bf16.msra.mxu0 %v1028
    %1139 = vmatpush.bf16.msra.mxu0 %v1024
    %1140 = vmatpush.bf16.msra.mxu0 %v1020
    %1141 = vmatpush.bf16.msra.mxu0 %v1016
    %1142 = vmatpush.bf16.msra.mxu0 %v1012
    %1143 = vmatpush.bf16.msra.mxu0 %v1008
    %1144 = vmatmul.bf16.gmra.mxu0 %v741
    %v1145 = vpop.f32.mrf.mxu0
    %v1146 = vadd.f32 %v808, %v1145
    %v1147 = vpop.f32.mrf.mxu0
    %1148 = vdwg.mxu0
    %1149 = vmatpush.bf16.msra.mxu0 %v1068
    %1150 = vmatpush.bf16.msra.mxu0 %v1064
    %1151 = vmatpush.bf16.msra.mxu0 %v1060
    %1152 = vmatpush.bf16.msra.mxu0 %v1056
    %1153 = vmatpush.bf16.msra.mxu0 %v1052
    %1154 = vmatpush.bf16.msra.mxu0 %v1048
    %1155 = vmatpush.bf16.msra.mxu0 %v1044
    %1156 = vmatpush.bf16.msra.mxu0 %v1040
    %1157 = vmatmul.bf16.gmra.mxu0 %v647
    %v1158 = vpop.f32.mrf.mxu0
    %v1159 = vadd.f32 %v1146, %v1158
    %v1160 = vpop.f32.mrf.mxu0
    %1161 = vdwg.mxu0
    %1162 = vmatpush.bf16.msra.mxu0 %v1037
    %1163 = vmatpush.bf16.msra.mxu0 %v1033
    %1164 = vmatpush.bf16.msra.mxu0 %v1029
    %1165 = vmatpush.bf16.msra.mxu0 %v1025
    %1166 = vmatpush.bf16.msra.mxu0 %v1021
    %1167 = vmatpush.bf16.msra.mxu0 %v1017
    %1168 = vmatpush.bf16.msra.mxu0 %v1013
    %1169 = vmatpush.bf16.msra.mxu0 %v1009
    %1170 = vmatmul.bf16.gmra.mxu0 %v741
    %v1171 = vpop.f32.mrf.mxu0
    %v1172 = vadd.f32 %v809, %v1171
    %v1173 = vpop.f32.mrf.mxu0
    %1174 = vdwg.mxu0
    %1175 = vmatpush.bf16.msra.mxu0 %v1069
    %1176 = vmatpush.bf16.msra.mxu0 %v1065
    %1177 = vmatpush.bf16.msra.mxu0 %v1061
    %1178 = vmatpush.bf16.msra.mxu0 %v1057
    %1179 = vmatpush.bf16.msra.mxu0 %v1053
    %1180 = vmatpush.bf16.msra.mxu0 %v1049
    %1181 = vmatpush.bf16.msra.mxu0 %v1045
    %1182 = vmatpush.bf16.msra.mxu0 %v1041
    %1183 = vmatmul.bf16.gmra.mxu0 %v647
    %v1184 = vpop.f32.mrf.mxu0
    %v1185 = vadd.f32 %v1172, %v1184
    %v1186 = vpop.f32.mrf.mxu0
    %1187 = vdwg.mxu0
    %1188 = vmatpush.bf16.msra.mxu0 %v1038
    %1189 = vmatpush.bf16.msra.mxu0 %v1034
    %1190 = vmatpush.bf16.msra.mxu0 %v1030
    %1191 = vmatpush.bf16.msra.mxu0 %v1026
    %1192 = vmatpush.bf16.msra.mxu0 %v1022
    %1193 = vmatpush.bf16.msra.mxu0 %v1018
    %1194 = vmatpush.bf16.msra.mxu0 %v1014
    %1195 = vmatpush.bf16.msra.mxu0 %v1010
    %1196 = vmatmul.bf16.gmra.mxu0 %v741
    %v1197 = vpop.f32.mrf.mxu0
    %v1198 = vadd.f32 %v810, %v1197
    %v1199 = vpop.f32.mrf.mxu0
    %1200 = vdwg.mxu0
    %1201 = vmatpush.bf16.msra.mxu0 %v1070
    %1202 = vmatpush.bf16.msra.mxu0 %v1066
    %1203 = vmatpush.bf16.msra.mxu0 %v1062
    %1204 = vmatpush.bf16.msra.mxu0 %v1058
    %1205 = vmatpush.bf16.msra.mxu0 %v1054
    %1206 = vmatpush.bf16.msra.mxu0 %v1050
    %1207 = vmatpush.bf16.msra.mxu0 %v1046
    %1208 = vmatpush.bf16.msra.mxu0 %v1042
    %1209 = vmatmul.bf16.gmra.mxu0 %v647
    %v1210 = vpop.f32.mrf.mxu0
    %v1211 = vadd.f32 %v1198, %v1210
    %v1212 = vpop.f32.mrf.mxu0
    %1213 = vdwg.mxu0
    %1214 = vmatpush.bf16.msra.mxu0 %v1039
    %1215 = vmatpush.bf16.msra.mxu0 %v1035
    %1216 = vmatpush.bf16.msra.mxu0 %v1031
    %1217 = vmatpush.bf16.msra.mxu0 %v1027
    %1218 = vmatpush.bf16.msra.mxu0 %v1023
    %1219 = vmatpush.bf16.msra.mxu0 %v1019
    %1220 = vmatpush.bf16.msra.mxu0 %v1015
    %1221 = vmatpush.bf16.msra.mxu0 %v1011
    %1222 = vmatmul.bf16.gmra.mxu0 %v741
    %v1223 = vpop.f32.mrf.mxu0
    %v1224 = vadd.f32 %v811, %v1223
    %v1225 = vpop.f32.mrf.mxu0
    %1226 = vdwg.mxu0
    %1227 = vmatpush.bf16.msra.mxu0 %v1071
    %1228 = vmatpush.bf16.msra.mxu0 %v1067
    %1229 = vmatpush.bf16.msra.mxu0 %v1063
    %1230 = vmatpush.bf16.msra.mxu0 %v1059
    %1231 = vmatpush.bf16.msra.mxu0 %v1055
    %1232 = vmatpush.bf16.msra.mxu0 %v1051
    %1233 = vmatpush.bf16.msra.mxu0 %v1047
    %1234 = vmatpush.bf16.msra.mxu0 %v1043
    %1235 = vmatmul.bf16.gmra.mxu0 %v647
    %v1236 = vpop.f32.mrf.mxu0
    %v1237 = vadd.f32 %v1224, %v1236
    %v1238 = vpop.f32.mrf.mxu0
    %1239 = vdwg.mxu0
    %v1240 = vxor.u32 %v1159, 2147483648
    %v1241 = vmul.f32 %v1240, 1.442695
    %v1242 = vpow.pop %v1241
    %v1243 = vadd.f32 %v1242, 1.0
    %v1244 = vrcp.pop %v1243
    %v1245 = vmul.f32 %v1243, %v1244
    %v1246 = vsub.f32 1.0, %v1245
    %v1247 = vmul.f32 %v1244, %v1246
    %v1248 = vadd.f32 %v1244, %v1247
    %vm1249 = vweird.f32 %v1243
    %vm1250 = vweird.f32 %v1244
    %vm1251 = vmor %vm1249, %vm1250
    %v1252 = vsel %vm1251, %v1244, %v1248
    %v1253 = vand.u32 2147483647, %v1243
    %vm1254 = vcmp.eq.f32.partialorder %v1253, 8.507059e+37
    %v1255 = vand.u32 %v1243, 2147483648
    %v1256 = vor.u32 1.1754944e-38, %v1255
    %v1257 = vsel %vm1254, %v1256, %v1252
    %v1258 = vmul.f32 1.0, %v1257
    %v1259 = vxor.u32 %v1185, 2147483648
    %v1260 = vmul.f32 %v1259, 1.442695
    %v1261 = vpow.pop %v1260
    %v1262 = vadd.f32 %v1261, 1.0
    %v1263 = vrcp.pop %v1262
    %v1264 = vmul.f32 %v1262, %v1263
    %v1265 = vsub.f32 1.0, %v1264
    %v1266 = vmul.f32 %v1263, %v1265
    %v1267 = vadd.f32 %v1263, %v1266
    %vm1268 = vweird.f32 %v1262
    %vm1269 = vweird.f32 %v1263
    %vm1270 = vmor %vm1268, %vm1269
    %v1271 = vsel %vm1270, %v1263, %v1267
    %v1272 = vand.u32 2147483647, %v1262
    %vm1273 = vcmp.eq.f32.partialorder %v1272, 8.507059e+37
    %v1274 = vand.u32 %v1262, 2147483648
    %v1275 = vor.u32 1.1754944e-38, %v1274
    %v1276 = vsel %vm1273, %v1275, %v1271
    %v1277 = vmul.f32 1.0, %v1276
    %v1278 = vmul.f32 %v1258, %v1237
    %v1279 = vadd.f32 %v1211, %v1278
    %v1280 = vtanh.pop %v1279
    %v1281 = vsub.f32 1.0, %v1277
    %v1282 = vmul.f32 %v1281, %v1280
    %v1283 = vmul.f32 %v1277, %v646
    %v1284 = vadd.f32 %v1282, %v1283
    %v1285 = vpack.c.bf16 %v1284, %v1284
    %v1286 = vld [vmem:[#allocation10] sm:$0xf]
    %v1287 = vld [vmem:[#allocation10 + $0x4] sm:$0xf]
    %v1288 = vld [vmem:[#allocation10 + $0x8] sm:$0xf]
    %v1289 = vld [vmem:[#allocation10 + $0xc] sm:$0xf]
    %v1290 = vld [vmem:[#allocation10 + $0x10] sm:$0xf]
    %v1291 = vld [vmem:[#allocation10 + $0x14] sm:$0xf]
    %v1292 = vld [vmem:[#allocation10 + $0x18] sm:$0xf]
    %v1293 = vld [vmem:[#allocation10 + $0x1c] sm:$0xf]
    %v1294 = vld [vmem:[#allocation10 + $0x20] sm:$0xf]
    %v1295 = vld [vmem:[#allocation10 + $0x24] sm:$0xf]
    %v1296 = vld [vmem:[#allocation10 + $0x28] sm:$0xf]
    %v1297 = vld [vmem:[#allocation10 + $0x2c] sm:$0xf]
    %v1298 = vld [vmem:[#allocation10 + $0x30] sm:$0xf]
    %v1299 = vld [vmem:[#allocation10 + $0x34] sm:$0xf]
    %v1300 = vld [vmem:[#allocation10 + $0x38] sm:$0xf]
    %v1301 = vld [vmem:[#allocation10 + $0x3c] sm:$0xf]
    %v1302 = vld [vmem:[%s5] sm:$0x1]
    %v1304 = vperm.slane %v1302, 0
    %v1322 = vunpack.c.l.b16 %v1286
    %v1323 = vunpack.c.l.b16 %v1287
    %v1324 = vunpack.c.l.b16 %v1288
    %v1325 = vunpack.c.l.b16 %v1289
    %v1326 = vunpack.c.l.b16 %v1290
    %v1327 = vunpack.c.l.b16 %v1291
    %v1328 = vunpack.c.l.b16 %v1292
    %v1329 = vunpack.c.l.b16 %v1293
    %v1330 = vunpack.c.l.b16 %v1294
    %v1331 = vunpack.c.l.b16 %v1295
    %v1332 = vunpack.c.l.b16 %v1296
    %v1333 = vunpack.c.l.b16 %v1297
    %v1334 = vunpack.c.l.b16 %v1298
    %v1335 = vunpack.c.l.b16 %v1299
    %v1336 = vunpack.c.l.b16 %v1300
    %v1337 = vunpack.c.l.b16 %v1301
    %v1338 = vpack.c.b16 %v1323, %v1322
    %v1339 = vpack.c.b16 %v1325, %v1324
    %v1340 = vpack.c.b16 %v1327, %v1326
    %v1341 = vpack.c.b16 %v1329, %v1328
    %v1342 = vpack.c.b16 %v1331, %v1330
    %v1343 = vpack.c.b16 %v1333, %v1332
    %v1344 = vpack.c.b16 %v1335, %v1334
    %v1345 = vpack.c.b16 %v1337, %v1336
    %1354 = vmatpush.bf16.msra.mxu0 %v1345
    %1355 = vmatpush.bf16.msra.mxu0 %v1344
    %1356 = vmatpush.bf16.msra.mxu0 %v1343
    %1357 = vmatpush.bf16.msra.mxu0 %v1342
    %1358 = vmatpush.bf16.msra.mxu0 %v1341
    %1359 = vmatpush.bf16.msra.mxu0 %v1340
    %1360 = vmatpush.bf16.msra.mxu0 %v1339
    %1361 = vmatpush.bf16.msra.mxu0 %v1338
    %1362 = vmatmul.bf16.gmra.mxu0 %v1285
    %v1363 = vpop.f32.mrf.mxu0
    %v1364 = vadd.f32 %v1304, %v1363
    %v1365 = vpop.f32.mrf.mxu0
    %1366 = vdwg.mxu0
    %1367 = vmax.xlane.f32.xlu0 %v1364
    %v1368 = vpop.xlane.xlu0 %1367
    %v1369 = vsub.f32 %v1364, %v1368
    %v1370 = vmul.f32 %v1369, 1.442695
    %v1371 = vpow.pop %v1370
    %1372 = vadd.xlane.f32.xlu0 %v1371
    %v1373 = vpop.xlane.xlu0 %1372
    %v1374 = vlog2.pop %v1373
    %v1375 = vmul.f32 %v1374, 0.6931472
    %v1376 = vsub.f32 %v1369, %v1375
    %s1377 = scalar_lea.vmem [#allocation11], 8
    %1378 = vst [vmem:[%s1377] sm:$0xff] %v1376
    %s1379 = scalar_lea.vmem [#allocation2], 8
    %v1380 = vld [vmem:[%s1379] sm:$0xf]
    %v1381 = vld [vmem:[#allocation7] sm:$0xff]
    %v1382 = vld [vmem:[#allocation7 + $0x8] sm:$0xff]
    %v1383 = vld [vmem:[#allocation7 + $0x10] sm:$0xff]
    %v1384 = vld [vmem:[#allocation7 + $0x18] sm:$0xff]
    %v1385 = vld [vmem:[#allocation7 + $0x20] sm:$0xff]
    %v1386 = vld [vmem:[#allocation7 + $0x28] sm:$0xff]
    %v1387 = vld [vmem:[#allocation7 + $0x30] sm:$0xff]
    %v1388 = vld [vmem:[#allocation7 + $0x38] sm:$0xff]
    %v1389 = vld [vmem:[#allocation7 + $0x40] sm:$0xff]
    %v1390 = vld [vmem:[#allocation7 + $0x48] sm:$0xff]
    %v1391 = vld [vmem:[#allocation7 + $0x50] sm:$0xff]
    %v1392 = vld [vmem:[#allocation7 + $0x58] sm:$0xff]
    %v1393 = vld [vmem:[#allocation7 + $0x60] sm:$0xff]
    %v1394 = vld [vmem:[#allocation7 + $0x68] sm:$0xff]
    %v1395 = vld [vmem:[#allocation7 + $0x70] sm:$0xff]
    %v1396 = vld [vmem:[#allocation7 + $0x78] sm:$0xff]
    %v1397 = vld [vmem:[#allocation7 + $0x80] sm:$0xff]
    %v1398 = vld [vmem:[#allocation7 + $0x88] sm:$0xff]
    %v1399 = vld [vmem:[#allocation7 + $0x90] sm:$0xff]
    %v1400 = vld [vmem:[#allocation7 + $0x98] sm:$0xff]
    %v1401 = vld [vmem:[#allocation7 + $0xa0] sm:$0xff]
    %v1402 = vld [vmem:[#allocation7 + $0xa8] sm:$0xff]
    %v1403 = vld [vmem:[#allocation7 + $0xb0] sm:$0xff]
    %v1404 = vld [vmem:[#allocation7 + $0xb8] sm:$0xff]
    %v1405 = vld [vmem:[#allocation7 + $0xc0] sm:$0xff]
    %v1406 = vld [vmem:[#allocation7 + $0xc8] sm:$0xff]
    %v1407 = vld [vmem:[#allocation7 + $0xd0] sm:$0xff]
    %v1408 = vld [vmem:[#allocation7 + $0xd8] sm:$0xff]
    %v1409 = vld [vmem:[#allocation7 + $0xe0] sm:$0xff]
    %v1410 = vld [vmem:[#allocation7 + $0xe8] sm:$0xff]
    %v1411 = vld [vmem:[#allocation7 + $0xf0] sm:$0xff]
    %v1412 = vld [vmem:[#allocation7 + $0xf8] sm:$0xff]
    %v1413 = vld [vmem:[#allocation7 + $0x100] sm:$0xff]
    %v1414 = vld [vmem:[#allocation7 + $0x108] sm:$0xff]
    %v1415 = vld [vmem:[#allocation7 + $0x110] sm:$0xff]
    %v1416 = vld [vmem:[#allocation7 + $0x118] sm:$0xff]
    %v1417 = vld [vmem:[#allocation7 + $0x120] sm:$0xff]
    %v1418 = vld [vmem:[#allocation7 + $0x128] sm:$0xff]
    %v1419 = vld [vmem:[#allocation7 + $0x130] sm:$0xff]
    %v1420 = vld [vmem:[#allocation7 + $0x138] sm:$0xff]
    %v1421 = vld [vmem:[#allocation7 + $0x140] sm:$0xff]
    %v1422 = vld [vmem:[#allocation7 + $0x148] sm:$0xff]
    %v1423 = vld [vmem:[#allocation7 + $0x150] sm:$0xff]
    %v1424 = vld [vmem:[#allocation7 + $0x158] sm:$0xff]
    %v1425 = vld [vmem:[#allocation7 + $0x160] sm:$0xff]
    %v1426 = vld [vmem:[#allocation7 + $0x168] sm:$0xff]
    %v1427 = vld [vmem:[#allocation7 + $0x170] sm:$0xff]
    %v1428 = vld [vmem:[#allocation7 + $0x178] sm:$0xff]
    %v1429 = vld [vmem:[#allocation7 + $0x180] sm:$0xff]
    %v1430 = vld [vmem:[#allocation7 + $0x188] sm:$0xff]
    %v1431 = vld [vmem:[#allocation7 + $0x190] sm:$0xff]
    %v1432 = vld [vmem:[#allocation7 + $0x198] sm:$0xff]
    %v1433 = vld [vmem:[#allocation7 + $0x1a0] sm:$0xff]
    %v1434 = vld [vmem:[#allocation7 + $0x1a8] sm:$0xff]
    %v1435 = vld [vmem:[#allocation7 + $0x1b0] sm:$0xff]
    %v1436 = vld [vmem:[#allocation7 + $0x1b8] sm:$0xff]
    %v1437 = vld [vmem:[#allocation7 + $0x1c0] sm:$0xff]
    %v1438 = vld [vmem:[#allocation7 + $0x1c8] sm:$0xff]
    %v1439 = vld [vmem:[#allocation7 + $0x1d0] sm:$0xff]
    %v1440 = vld [vmem:[#allocation7 + $0x1d8] sm:$0xff]
    %v1441 = vld [vmem:[#allocation7 + $0x1e0] sm:$0xff]
    %v1442 = vld [vmem:[#allocation7 + $0x1e8] sm:$0xff]
    %v1443 = vld [vmem:[#allocation7 + $0x1f0] sm:$0xff]
    %v1444 = vld [vmem:[#allocation7 + $0x1f8] sm:$0xff]
    %v1445 = vld [vmem:[#allocation8] sm:$0xf]
    %v1447 = vperm.slane %v1445, 0
    %v1448 = vperm.slane %v1445, 1
    %v1449 = vperm.slane %v1445, 2
    %v1450 = vperm.slane %v1445, 3
    %v1519 = vunpack.c.l.b16 %v1381
    %v1520 = vunpack.c.h.b16 %v1381
    %v1521 = vunpack.c.l.b16 %v1382
    %v1522 = vunpack.c.h.b16 %v1382
    %v1523 = vunpack.c.l.b16 %v1383
    %v1524 = vunpack.c.h.b16 %v1383
    %v1525 = vunpack.c.l.b16 %v1384
    %v1526 = vunpack.c.h.b16 %v1384
    %v1527 = vunpack.c.l.b16 %v1385
    %v1528 = vunpack.c.h.b16 %v1385
    %v1529 = vunpack.c.l.b16 %v1386
    %v1530 = vunpack.c.h.b16 %v1386
    %v1531 = vunpack.c.l.b16 %v1387
    %v1532 = vunpack.c.h.b16 %v1387
    %v1533 = vunpack.c.l.b16 %v1388
    %v1534 = vunpack.c.h.b16 %v1388
    %v1535 = vunpack.c.l.b16 %v1389
    %v1536 = vunpack.c.h.b16 %v1389
    %v1537 = vunpack.c.l.b16 %v1390
    %v1538 = vunpack.c.h.b16 %v1390
    %v1539 = vunpack.c.l.b16 %v1391
    %v1540 = vunpack.c.h.b16 %v1391
    %v1541 = vunpack.c.l.b16 %v1392
    %v1542 = vunpack.c.h.b16 %v1392
    %v1543 = vunpack.c.l.b16 %v1393
    %v1544 = vunpack.c.h.b16 %v1393
    %v1545 = vunpack.c.l.b16 %v1394
    %v1546 = vunpack.c.h.b16 %v1394
    %v1547 = vunpack.c.l.b16 %v1395
    %v1548 = vunpack.c.h.b16 %v1395
    %v1549 = vunpack.c.l.b16 %v1396
    %v1550 = vunpack.c.h.b16 %v1396
    %v1551 = vunpack.c.l.b16 %v1397
    %v1552 = vunpack.c.h.b16 %v1397
    %v1553 = vunpack.c.l.b16 %v1398
    %v1554 = vunpack.c.h.b16 %v1398
    %v1555 = vunpack.c.l.b16 %v1399
    %v1556 = vunpack.c.h.b16 %v1399
    %v1557 = vunpack.c.l.b16 %v1400
    %v1558 = vunpack.c.h.b16 %v1400
    %v1559 = vunpack.c.l.b16 %v1401
    %v1560 = vunpack.c.h.b16 %v1401
    %v1561 = vunpack.c.l.b16 %v1402
    %v1562 = vunpack.c.h.b16 %v1402
    %v1563 = vunpack.c.l.b16 %v1403
    %v1564 = vunpack.c.h.b16 %v1403
    %v1565 = vunpack.c.l.b16 %v1404
    %v1566 = vunpack.c.h.b16 %v1404
    %v1567 = vunpack.c.l.b16 %v1405
    %v1568 = vunpack.c.h.b16 %v1405
    %v1569 = vunpack.c.l.b16 %v1406
    %v1570 = vunpack.c.h.b16 %v1406
    %v1571 = vunpack.c.l.b16 %v1407
    %v1572 = vunpack.c.h.b16 %v1407
    %v1573 = vunpack.c.l.b16 %v1408
    %v1574 = vunpack.c.h.b16 %v1408
    %v1575 = vunpack.c.l.b16 %v1409
    %v1576 = vunpack.c.h.b16 %v1409
    %v1577 = vunpack.c.l.b16 %v1410
    %v1578 = vunpack.c.h.b16 %v1410
    %v1579 = vunpack.c.l.b16 %v1411
    %v1580 = vunpack.c.h.b16 %v1411
    %v1581 = vunpack.c.l.b16 %v1412
    %v1582 = vunpack.c.h.b16 %v1412
    %v1583 = vunpack.c.l.b16 %v1413
    %v1584 = vunpack.c.h.b16 %v1413
    %v1585 = vunpack.c.l.b16 %v1414
    %v1586 = vunpack.c.h.b16 %v1414
    %v1587 = vunpack.c.l.b16 %v1415
    %v1588 = vunpack.c.h.b16 %v1415
    %v1589 = vunpack.c.l.b16 %v1416
    %v1590 = vunpack.c.h.b16 %v1416
    %v1591 = vunpack.c.l.b16 %v1417
    %v1592 = vunpack.c.h.b16 %v1417
    %v1593 = vunpack.c.l.b16 %v1418
    %v1594 = vunpack.c.h.b16 %v1418
    %v1595 = vunpack.c.l.b16 %v1419
    %v1596 = vunpack.c.h.b16 %v1419
    %v1597 = vunpack.c.l.b16 %v1420
    %v1598 = vunpack.c.h.b16 %v1420
    %v1599 = vunpack.c.l.b16 %v1421
    %v1600 = vunpack.c.h.b16 %v1421
    %v1601 = vunpack.c.l.b16 %v1422
    %v1602 = vunpack.c.h.b16 %v1422
    %v1603 = vunpack.c.l.b16 %v1423
    %v1604 = vunpack.c.h.b16 %v1423
    %v1605 = vunpack.c.l.b16 %v1424
    %v1606 = vunpack.c.h.b16 %v1424
    %v1607 = vunpack.c.l.b16 %v1425
    %v1608 = vunpack.c.h.b16 %v1425
    %v1609 = vunpack.c.l.b16 %v1426
    %v1610 = vunpack.c.h.b16 %v1426
    %v1611 = vunpack.c.l.b16 %v1427
    %v1612 = vunpack.c.h.b16 %v1427
    %v1613 = vunpack.c.l.b16 %v1428
    %v1614 = vunpack.c.h.b16 %v1428
    %v1615 = vunpack.c.l.b16 %v1429
    %v1616 = vunpack.c.h.b16 %v1429
    %v1617 = vunpack.c.l.b16 %v1430
    %v1618 = vunpack.c.h.b16 %v1430
    %v1619 = vunpack.c.l.b16 %v1431
    %v1620 = vunpack.c.h.b16 %v1431
    %v1621 = vunpack.c.l.b16 %v1432
    %v1622 = vunpack.c.h.b16 %v1432
    %v1623 = vunpack.c.l.b16 %v1433
    %v1624 = vunpack.c.h.b16 %v1433
    %v1625 = vunpack.c.l.b16 %v1434
    %v1626 = vunpack.c.h.b16 %v1434
    %v1627 = vunpack.c.l.b16 %v1435
    %v1628 = vunpack.c.h.b16 %v1435
    %v1629 = vunpack.c.l.b16 %v1436
    %v1630 = vunpack.c.h.b16 %v1436
    %v1631 = vunpack.c.l.b16 %v1437
    %v1632 = vunpack.c.h.b16 %v1437
    %v1633 = vunpack.c.l.b16 %v1438
    %v1634 = vunpack.c.h.b16 %v1438
    %v1635 = vunpack.c.l.b16 %v1439
    %v1636 = vunpack.c.h.b16 %v1439
    %v1637 = vunpack.c.l.b16 %v1440
    %v1638 = vunpack.c.h.b16 %v1440
    %v1639 = vunpack.c.l.b16 %v1441
    %v1640 = vunpack.c.h.b16 %v1441
    %v1641 = vunpack.c.l.b16 %v1442
    %v1642 = vunpack.c.h.b16 %v1442
    %v1643 = vunpack.c.l.b16 %v1443
    %v1644 = vunpack.c.h.b16 %v1443
    %v1645 = vunpack.c.l.b16 %v1444
    %v1646 = vunpack.c.h.b16 %v1444
    %v1647 = vpack.c.b16 %v1523, %v1519
    %v1648 = vpack.c.b16 %v1524, %v1520
    %v1649 = vpack.c.b16 %v1525, %v1521
    %v1650 = vpack.c.b16 %v1526, %v1522
    %v1651 = vpack.c.b16 %v1531, %v1527
    %v1652 = vpack.c.b16 %v1532, %v1528
    %v1653 = vpack.c.b16 %v1533, %v1529
    %v1654 = vpack.c.b16 %v1534, %v1530
    %v1655 = vpack.c.b16 %v1539, %v1535
    %v1656 = vpack.c.b16 %v1540, %v1536
    %v1657 = vpack.c.b16 %v1541, %v1537
    %v1658 = vpack.c.b16 %v1542, %v1538
    %v1659 = vpack.c.b16 %v1547, %v1543
    %v1660 = vpack.c.b16 %v1548, %v1544
    %v1661 = vpack.c.b16 %v1549, %v1545
    %v1662 = vpack.c.b16 %v1550, %v1546
    %v1663 = vpack.c.b16 %v1555, %v1551
    %v1664 = vpack.c.b16 %v1556, %v1552
    %v1665 = vpack.c.b16 %v1557, %v1553
    %v1666 = vpack.c.b16 %v1558, %v1554
    %v1667 = vpack.c.b16 %v1563, %v1559
    %v1668 = vpack.c.b16 %v1564, %v1560
    %v1669 = vpack.c.b16 %v1565, %v1561
    %v1670 = vpack.c.b16 %v1566, %v1562
    %v1671 = vpack.c.b16 %v1571, %v1567
    %v1672 = vpack.c.b16 %v1572, %v1568
    %v1673 = vpack.c.b16 %v1573, %v1569
    %v1674 = vpack.c.b16 %v1574, %v1570
    %v1675 = vpack.c.b16 %v1579, %v1575
    %v1676 = vpack.c.b16 %v1580, %v1576
    %v1677 = vpack.c.b16 %v1581, %v1577
    %v1678 = vpack.c.b16 %v1582, %v1578
    %v1679 = vpack.c.b16 %v1587, %v1583
    %v1680 = vpack.c.b16 %v1588, %v1584
    %v1681 = vpack.c.b16 %v1589, %v1585
    %v1682 = vpack.c.b16 %v1590, %v1586
    %v1683 = vpack.c.b16 %v1595, %v1591
    %v1684 = vpack.c.b16 %v1596, %v1592
    %v1685 = vpack.c.b16 %v1597, %v1593
    %v1686 = vpack.c.b16 %v1598, %v1594
    %v1687 = vpack.c.b16 %v1603, %v1599
    %v1688 = vpack.c.b16 %v1604, %v1600
    %v1689 = vpack.c.b16 %v1605, %v1601
    %v1690 = vpack.c.b16 %v1606, %v1602
    %v1691 = vpack.c.b16 %v1611, %v1607
    %v1692 = vpack.c.b16 %v1612, %v1608
    %v1693 = vpack.c.b16 %v1613, %v1609
    %v1694 = vpack.c.b16 %v1614, %v1610
    %v1695 = vpack.c.b16 %v1619, %v1615
    %v1696 = vpack.c.b16 %v1620, %v1616
    %v1697 = vpack.c.b16 %v1621, %v1617
    %v1698 = vpack.c.b16 %v1622, %v1618
    %v1699 = vpack.c.b16 %v1627, %v1623
    %v1700 = vpack.c.b16 %v1628, %v1624
    %v1701 = vpack.c.b16 %v1629, %v1625
    %v1702 = vpack.c.b16 %v1630, %v1626
    %v1703 = vpack.c.b16 %v1635, %v1631
    %v1704 = vpack.c.b16 %v1636, %v1632
    %v1705 = vpack.c.b16 %v1637, %v1633
    %v1706 = vpack.c.b16 %v1638, %v1634
    %v1707 = vpack.c.b16 %v1643, %v1639
    %v1708 = vpack.c.b16 %v1644, %v1640
    %v1709 = vpack.c.b16 %v1645, %v1641
    %v1710 = vpack.c.b16 %v1646, %v1642
    %1775 = vmatpush.bf16.msra.mxu0 %v1675
    %1776 = vmatpush.bf16.msra.mxu0 %v1671
    %1777 = vmatpush.bf16.msra.mxu0 %v1667
    %1778 = vmatpush.bf16.msra.mxu0 %v1663
    %1779 = vmatpush.bf16.msra.mxu0 %v1659
    %1780 = vmatpush.bf16.msra.mxu0 %v1655
    %1781 = vmatpush.bf16.msra.mxu0 %v1651
    %1782 = vmatpush.bf16.msra.mxu0 %v1647
    %1783 = vmatmul.bf16.gmra.mxu0 %v1380
    %v1784 = vpop.f32.mrf.mxu0
    %v1785 = vadd.f32 %v1447, %v1784
    %v1786 = vpop.f32.mrf.mxu0
    %1787 = vdwg.mxu0
    %1788 = vmatpush.bf16.msra.mxu0 %v1707
    %1789 = vmatpush.bf16.msra.mxu0 %v1703
    %1790 = vmatpush.bf16.msra.mxu0 %v1699
    %1791 = vmatpush.bf16.msra.mxu0 %v1695
    %1792 = vmatpush.bf16.msra.mxu0 %v1691
    %1793 = vmatpush.bf16.msra.mxu0 %v1687
    %1794 = vmatpush.bf16.msra.mxu0 %v1683
    %1795 = vmatpush.bf16.msra.mxu0 %v1679
    %1796 = vmatmul.bf16.gmra.mxu0 %v1285
    %v1797 = vpop.f32.mrf.mxu0
    %v1798 = vadd.f32 %v1785, %v1797
    %v1799 = vpop.f32.mrf.mxu0
    %1800 = vdwg.mxu0
    %1801 = vmatpush.bf16.msra.mxu0 %v1676
    %1802 = vmatpush.bf16.msra.mxu0 %v1672
    %1803 = vmatpush.bf16.msra.mxu0 %v1668
    %1804 = vmatpush.bf16.msra.mxu0 %v1664
    %1805 = vmatpush.bf16.msra.mxu0 %v1660
    %1806 = vmatpush.bf16.msra.mxu0 %v1656
    %1807 = vmatpush.bf16.msra.mxu0 %v1652
    %1808 = vmatpush.bf16.msra.mxu0 %v1648
    %1809 = vmatmul.bf16.gmra.mxu0 %v1380
    %v1810 = vpop.f32.mrf.mxu0
    %v1811 = vadd.f32 %v1448, %v1810
    %v1812 = vpop.f32.mrf.mxu0
    %1813 = vdwg.mxu0
    %1814 = vmatpush.bf16.msra.mxu0 %v1708
    %1815 = vmatpush.bf16.msra.mxu0 %v1704
    %1816 = vmatpush.bf16.msra.mxu0 %v1700
    %1817 = vmatpush.bf16.msra.mxu0 %v1696
    %1818 = vmatpush.bf16.msra.mxu0 %v1692
    %1819 = vmatpush.bf16.msra.mxu0 %v1688
    %1820 = vmatpush.bf16.msra.mxu0 %v1684
    %1821 = vmatpush.bf16.msra.mxu0 %v1680
    %1822 = vmatmul.bf16.gmra.mxu0 %v1285
    %v1823 = vpop.f32.mrf.mxu0
    %v1824 = vadd.f32 %v1811, %v1823
    %v1825 = vpop.f32.mrf.mxu0
    %1826 = vdwg.mxu0
    %1827 = vmatpush.bf16.msra.mxu0 %v1677
    %1828 = vmatpush.bf16.msra.mxu0 %v1673
    %1829 = vmatpush.bf16.msra.mxu0 %v1669
    %1830 = vmatpush.bf16.msra.mxu0 %v1665
    %1831 = vmatpush.bf16.msra.mxu0 %v1661
    %1832 = vmatpush.bf16.msra.mxu0 %v1657
    %1833 = vmatpush.bf16.msra.mxu0 %v1653
    %1834 = vmatpush.bf16.msra.mxu0 %v1649
    %1835 = vmatmul.bf16.gmra.mxu0 %v1380
    %v1836 = vpop.f32.mrf.mxu0
    %v1837 = vadd.f32 %v1449, %v1836
    %v1838 = vpop.f32.mrf.mxu0
    %1839 = vdwg.mxu0
    %1840 = vmatpush.bf16.msra.mxu0 %v1709
    %1841 = vmatpush.bf16.msra.mxu0 %v1705
    %1842 = vmatpush.bf16.msra.mxu0 %v1701
    %1843 = vmatpush.bf16.msra.mxu0 %v1697
    %1844 = vmatpush.bf16.msra.mxu0 %v1693
    %1845 = vmatpush.bf16.msra.mxu0 %v1689
    %1846 = vmatpush.bf16.msra.mxu0 %v1685
    %1847 = vmatpush.bf16.msra.mxu0 %v1681
    %1848 = vmatmul.bf16.gmra.mxu0 %v1285
    %v1849 = vpop.f32.mrf.mxu0
    %v1850 = vadd.f32 %v1837, %v1849
    %v1851 = vpop.f32.mrf.mxu0
    %1852 = vdwg.mxu0
    %1853 = vmatpush.bf16.msra.mxu0 %v1678
    %1854 = vmatpush.bf16.msra.mxu0 %v1674
    %1855 = vmatpush.bf16.msra.mxu0 %v1670
    %1856 = vmatpush.bf16.msra.mxu0 %v1666
    %1857 = vmatpush.bf16.msra.mxu0 %v1662
    %1858 = vmatpush.bf16.msra.mxu0 %v1658
    %1859 = vmatpush.bf16.msra.mxu0 %v1654
    %1860 = vmatpush.bf16.msra.mxu0 %v1650
    %1861 = vmatmul.bf16.gmra.mxu0 %v1380
    %v1862 = vpop.f32.mrf.mxu0
    %v1863 = vadd.f32 %v1450, %v1862
    %v1864 = vpop.f32.mrf.mxu0
    %1865 = vdwg.mxu0
    %1866 = vmatpush.bf16.msra.mxu0 %v1710
    %1867 = vmatpush.bf16.msra.mxu0 %v1706
    %1868 = vmatpush.bf16.msra.mxu0 %v1702
    %1869 = vmatpush.bf16.msra.mxu0 %v1698
    %1870 = vmatpush.bf16.msra.mxu0 %v1694
    %1871 = vmatpush.bf16.msra.mxu0 %v1690
    %1872 = vmatpush.bf16.msra.mxu0 %v1686
    %1873 = vmatpush.bf16.msra.mxu0 %v1682
    %1874 = vmatmul.bf16.gmra.mxu0 %v1285
    %v1875 = vpop.f32.mrf.mxu0
    %v1876 = vadd.f32 %v1863, %v1875
    %v1877 = vpop.f32.mrf.mxu0
    %1878 = vdwg.mxu0
    %v1879 = vxor.u32 %v1798, 2147483648
    %v1880 = vmul.f32 %v1879, 1.442695
    %v1881 = vpow.pop %v1880
    %v1882 = vadd.f32 %v1881, 1.0
    %v1883 = vrcp.pop %v1882
    %v1884 = vmul.f32 %v1882, %v1883
    %v1885 = vsub.f32 1.0, %v1884
    %v1886 = vmul.f32 %v1883, %v1885
    %v1887 = vadd.f32 %v1883, %v1886
    %vm1888 = vweird.f32 %v1882
    %vm1889 = vweird.f32 %v1883
    %vm1890 = vmor %vm1888, %vm1889
    %v1891 = vsel %vm1890, %v1883, %v1887
    %v1892 = vand.u32 2147483647, %v1882
    %vm1893 = vcmp.eq.f32.partialorder %v1892, 8.507059e+37
    %v1894 = vand.u32 %v1882, 2147483648
    %v1895 = vor.u32 1.1754944e-38, %v1894
    %v1896 = vsel %vm1893, %v1895, %v1891
    %v1897 = vmul.f32 1.0, %v1896
    %v1898 = vxor.u32 %v1824, 2147483648
    %v1899 = vmul.f32 %v1898, 1.442695
    %v1900 = vpow.pop %v1899
    %v1901 = vadd.f32 %v1900, 1.0
    %v1902 = vrcp.pop %v1901
    %v1903 = vmul.f32 %v1901, %v1902
    %v1904 = vsub.f32 1.0, %v1903
    %v1905 = vmul.f32 %v1902, %v1904
    %v1906 = vadd.f32 %v1902, %v1905
    %vm1907 = vweird.f32 %v1901
    %vm1908 = vweird.f32 %v1902
    %vm1909 = vmor %vm1907, %vm1908
    %v1910 = vsel %vm1909, %v1902, %v1906
    %v1911 = vand.u32 2147483647, %v1901
    %vm1912 = vcmp.eq.f32.partialorder %v1911, 8.507059e+37
    %v1913 = vand.u32 %v1901, 2147483648
    %v1914 = vor.u32 1.1754944e-38, %v1913
    %v1915 = vsel %vm1912, %v1914, %v1910
    %v1916 = vmul.f32 1.0, %v1915
    %v1917 = vmul.f32 %v1897, %v1876
    %v1918 = vadd.f32 %v1850, %v1917
    %v1919 = vtanh.pop %v1918
    %v1920 = vsub.f32 1.0, %v1916
    %v1921 = vmul.f32 %v1920, %v1919
    %v1922 = vmul.f32 %v1916, %v1284
    %v1923 = vadd.f32 %v1921, %v1922
    %v1924 = vpack.c.bf16 %v1923, %v1923
    %v1925 = vld [vmem:[#allocation10] sm:$0xf]
    %v1926 = vld [vmem:[#allocation10 + $0x4] sm:$0xf]
    %v1927 = vld [vmem:[#allocation10 + $0x8] sm:$0xf]
    %v1928 = vld [vmem:[#allocation10 + $0xc] sm:$0xf]
    %v1929 = vld [vmem:[#allocation10 + $0x10] sm:$0xf]
    %v1930 = vld [vmem:[#allocation10 + $0x14] sm:$0xf]
    %v1931 = vld [vmem:[#allocation10 + $0x18] sm:$0xf]
    %v1932 = vld [vmem:[#allocation10 + $0x1c] sm:$0xf]
    %v1933 = vld [vmem:[#allocation10 + $0x20] sm:$0xf]
    %v1934 = vld [vmem:[#allocation10 + $0x24] sm:$0xf]
    %v1935 = vld [vmem:[#allocation10 + $0x28] sm:$0xf]
    %v1936 = vld [vmem:[#allocation10 + $0x2c] sm:$0xf]
    %v1937 = vld [vmem:[#allocation10 + $0x30] sm:$0xf]
    %v1938 = vld [vmem:[#allocation10 + $0x34] sm:$0xf]
    %v1939 = vld [vmem:[#allocation10 + $0x38] sm:$0xf]
    %v1940 = vld [vmem:[#allocation10 + $0x3c] sm:$0xf]
    %v1941 = vld [vmem:[%s5] sm:$0x1]
    %v1943 = vperm.slane %v1941, 0
    %v1961 = vunpack.c.l.b16 %v1925
    %v1962 = vunpack.c.l.b16 %v1926
    %v1963 = vunpack.c.l.b16 %v1927
    %v1964 = vunpack.c.l.b16 %v1928
    %v1965 = vunpack.c.l.b16 %v1929
    %v1966 = vunpack.c.l.b16 %v1930
    %v1967 = vunpack.c.l.b16 %v1931
    %v1968 = vunpack.c.l.b16 %v1932
    %v1969 = vunpack.c.l.b16 %v1933
    %v1970 = vunpack.c.l.b16 %v1934
    %v1971 = vunpack.c.l.b16 %v1935
    %v1972 = vunpack.c.l.b16 %v1936
    %v1973 = vunpack.c.l.b16 %v1937
    %v1974 = vunpack.c.l.b16 %v1938
    %v1975 = vunpack.c.l.b16 %v1939
    %v1976 = vunpack.c.l.b16 %v1940
    %v1977 = vpack.c.b16 %v1962, %v1961
    %v1978 = vpack.c.b16 %v1964, %v1963
    %v1979 = vpack.c.b16 %v1966, %v1965
    %v1980 = vpack.c.b16 %v1968, %v1967
    %v1981 = vpack.c.b16 %v1970, %v1969
    %v1982 = vpack.c.b16 %v1972, %v1971
    %v1983 = vpack.c.b16 %v1974, %v1973
    %v1984 = vpack.c.b16 %v1976, %v1975
    %1993 = vmatpush.bf16.msra.mxu0 %v1984
    %1994 = vmatpush.bf16.msra.mxu0 %v1983
    %1995 = vmatpush.bf16.msra.mxu0 %v1982
    %1996 = vmatpush.bf16.msra.mxu0 %v1981
    %1997 = vmatpush.bf16.msra.mxu0 %v1980
    %1998 = vmatpush.bf16.msra.mxu0 %v1979
    %1999 = vmatpush.bf16.msra.mxu0 %v1978
    %2000 = vmatpush.bf16.msra.mxu0 %v1977
    %2001 = vmatmul.bf16.gmra.mxu0 %v1924
    %v2002 = vpop.f32.mrf.mxu0
    %v2003 = vadd.f32 %v1943, %v2002
    %v2004 = vpop.f32.mrf.mxu0
    %2005 = vdwg.mxu0
    %2006 = vmax.xlane.f32.xlu0 %v2003
    %v2007 = vpop.xlane.xlu0 %2006
    %v2008 = vsub.f32 %v2003, %v2007
    %v2009 = vmul.f32 %v2008, 1.442695
    %v2010 = vpow.pop %v2009
    %2011 = vadd.xlane.f32.xlu0 %v2010
    %v2012 = vpop.xlane.xlu0 %2011
    %v2013 = vlog2.pop %v2012
    %v2014 = vmul.f32 %v2013, 0.6931472
    %v2015 = vsub.f32 %v2008, %v2014
    %s2016 = scalar_lea.vmem [#allocation11], 16
    %2017 = vst [vmem:[%s2016] sm:$0xff] %v2015
    %s2018 = scalar_lea.vmem [#allocation2], 12
    %v2019 = vld [vmem:[%s2018] sm:$0xf]
    %v2020 = vld [vmem:[#allocation7] sm:$0xff]
    %v2021 = vld [vmem:[#allocation7 + $0x8] sm:$0xff]
    %v2022 = vld [vmem:[#allocation7 + $0x10] sm:$0xff]
    %v2023 = vld [vmem:[#allocation7 + $0x18] sm:$0xff]
    %v2024 = vld [vmem:[#allocation7 + $0x20] sm:$0xff]
    %v2025 = vld [vmem:[#allocation7 + $0x28] sm:$0xff]
    %v2026 = vld [vmem:[#allocation7 + $0x30] sm:$0xff]
    %v2027 = vld [vmem:[#allocation7 + $0x38] sm:$0xff]
    %v2028 = vld [vmem:[#allocation7 + $0x40] sm:$0xff]
    %v2029 = vld [vmem:[#allocation7 + $0x48] sm:$0xff]
    %v2030 = vld [vmem:[#allocation7 + $0x50] sm:$0xff]
    %v2031 = vld [vmem:[#allocation7 + $0x58] sm:$0xff]
    %v2032 = vld [vmem:[#allocation7 + $0x60] sm:$0xff]
    %v2033 = vld [vmem:[#allocation7 + $0x68] sm:$0xff]
    %v2034 = vld [vmem:[#allocation7 + $0x70] sm:$0xff]
    %v2035 = vld [vmem:[#allocation7 + $0x78] sm:$0xff]
    %v2036 = vld [vmem:[#allocation7 + $0x80] sm:$0xff]
    %v2037 = vld [vmem:[#allocation7 + $0x88] sm:$0xff]
    %v2038 = vld [vmem:[#allocation7 + $0x90] sm:$0xff]
    %v2039 = vld [vmem:[#allocation7 + $0x98] sm:$0xff]
    %v2040 = vld [vmem:[#allocation7 + $0xa0] sm:$0xff]
    %v2041 = vld [vmem:[#allocation7 + $0xa8] sm:$0xff]
    %v2042 = vld [vmem:[#allocation7 + $0xb0] sm:$0xff]
    %v2043 = vld [vmem:[#allocation7 + $0xb8] sm:$0xff]
    %v2044 = vld [vmem:[#allocation7 + $0xc0] sm:$0xff]
    %v2045 = vld [vmem:[#allocation7 + $0xc8] sm:$0xff]
    %v2046 = vld [vmem:[#allocation7 + $0xd0] sm:$0xff]
    %v2047 = vld [vmem:[#allocation7 + $0xd8] sm:$0xff]
    %v2048 = vld [vmem:[#allocation7 + $0xe0] sm:$0xff]
    %v2049 = vld [vmem:[#allocation7 + $0xe8] sm:$0xff]
    %v2050 = vld [vmem:[#allocation7 + $0xf0] sm:$0xff]
    %v2051 = vld [vmem:[#allocation7 + $0xf8] sm:$0xff]
    %v2052 = vld [vmem:[#allocation7 + $0x100] sm:$0xff]
    %v2053 = vld [vmem:[#allocation7 + $0x108] sm:$0xff]
    %v2054 = vld [vmem:[#allocation7 + $0x110] sm:$0xff]
    %v2055 = vld [vmem:[#allocation7 + $0x118] sm:$0xff]
    %v2056 = vld [vmem:[#allocation7 + $0x120] sm:$0xff]
    %v2057 = vld [vmem:[#allocation7 + $0x128] sm:$0xff]
    %v2058 = vld [vmem:[#allocation7 + $0x130] sm:$0xff]
    %v2059 = vld [vmem:[#allocation7 + $0x138] sm:$0xff]
    %v2060 = vld [vmem:[#allocation7 + $0x140] sm:$0xff]
    %v2061 = vld [vmem:[#allocation7 + $0x148] sm:$0xff]
    %v2062 = vld [vmem:[#allocation7 + $0x150] sm:$0xff]
    %v2063 = vld [vmem:[#allocation7 + $0x158] sm:$0xff]
    %v2064 = vld [vmem:[#allocation7 + $0x160] sm:$0xff]
    %v2065 = vld [vmem:[#allocation7 + $0x168] sm:$0xff]
    %v2066 = vld [vmem:[#allocation7 + $0x170] sm:$0xff]
    %v2067 = vld [vmem:[#allocation7 + $0x178] sm:$0xff]
    %v2068 = vld [vmem:[#allocation7 + $0x180] sm:$0xff]
    %v2069 = vld [vmem:[#allocation7 + $0x188] sm:$0xff]
    %v2070 = vld [vmem:[#allocation7 + $0x190] sm:$0xff]
    %v2071 = vld [vmem:[#allocation7 + $0x198] sm:$0xff]
    %v2072 = vld [vmem:[#allocation7 + $0x1a0] sm:$0xff]
    %v2073 = vld [vmem:[#allocation7 + $0x1a8] sm:$0xff]
    %v2074 = vld [vmem:[#allocation7 + $0x1b0] sm:$0xff]
    %v2075 = vld [vmem:[#allocation7 + $0x1b8] sm:$0xff]
    %v2076 = vld [vmem:[#allocation7 + $0x1c0] sm:$0xff]
    %v2077 = vld [vmem:[#allocation7 + $0x1c8] sm:$0xff]
    %v2078 = vld [vmem:[#allocation7 + $0x1d0] sm:$0xff]
    %v2079 = vld [vmem:[#allocation7 + $0x1d8] sm:$0xff]
    %v2080 = vld [vmem:[#allocation7 + $0x1e0] sm:$0xff]
    %v2081 = vld [vmem:[#allocation7 + $0x1e8] sm:$0xff]
    %v2082 = vld [vmem:[#allocation7 + $0x1f0] sm:$0xff]
    %v2083 = vld [vmem:[#allocation7 + $0x1f8] sm:$0xff]
    %v2084 = vld [vmem:[#allocation8] sm:$0xf]
    %v2086 = vperm.slane %v2084, 0
    %v2087 = vperm.slane %v2084, 1
    %v2088 = vperm.slane %v2084, 2
    %v2089 = vperm.slane %v2084, 3
    %v2158 = vunpack.c.l.b16 %v2020
    %v2159 = vunpack.c.h.b16 %v2020
    %v2160 = vunpack.c.l.b16 %v2021
    %v2161 = vunpack.c.h.b16 %v2021
    %v2162 = vunpack.c.l.b16 %v2022
    %v2163 = vunpack.c.h.b16 %v2022
    %v2164 = vunpack.c.l.b16 %v2023
    %v2165 = vunpack.c.h.b16 %v2023
    %v2166 = vunpack.c.l.b16 %v2024
    %v2167 = vunpack.c.h.b16 %v2024
    %v2168 = vunpack.c.l.b16 %v2025
    %v2169 = vunpack.c.h.b16 %v2025
    %v2170 = vunpack.c.l.b16 %v2026
    %v2171 = vunpack.c.h.b16 %v2026
    %v2172 = vunpack.c.l.b16 %v2027
    %v2173 = vunpack.c.h.b16 %v2027
    %v2174 = vunpack.c.l.b16 %v2028
    %v2175 = vunpack.c.h.b16 %v2028
    %v2176 = vunpack.c.l.b16 %v2029
    %v2177 = vunpack.c.h.b16 %v2029
    %v2178 = vunpack.c.l.b16 %v2030
    %v2179 = vunpack.c.h.b16 %v2030
    %v2180 = vunpack.c.l.b16 %v2031
    %v2181 = vunpack.c.h.b16 %v2031
    %v2182 = vunpack.c.l.b16 %v2032
    %v2183 = vunpack.c.h.b16 %v2032
    %v2184 = vunpack.c.l.b16 %v2033
    %v2185 = vunpack.c.h.b16 %v2033
    %v2186 = vunpack.c.l.b16 %v2034
    %v2187 = vunpack.c.h.b16 %v2034
    %v2188 = vunpack.c.l.b16 %v2035
    %v2189 = vunpack.c.h.b16 %v2035
    %v2190 = vunpack.c.l.b16 %v2036
    %v2191 = vunpack.c.h.b16 %v2036
    %v2192 = vunpack.c.l.b16 %v2037
    %v2193 = vunpack.c.h.b16 %v2037
    %v2194 = vunpack.c.l.b16 %v2038
    %v2195 = vunpack.c.h.b16 %v2038
    %v2196 = vunpack.c.l.b16 %v2039
    %v2197 = vunpack.c.h.b16 %v2039
    %v2198 = vunpack.c.l.b16 %v2040
    %v2199 = vunpack.c.h.b16 %v2040
    %v2200 = vunpack.c.l.b16 %v2041
    %v2201 = vunpack.c.h.b16 %v2041
    %v2202 = vunpack.c.l.b16 %v2042
    %v2203 = vunpack.c.h.b16 %v2042
    %v2204 = vunpack.c.l.b16 %v2043
    %v2205 = vunpack.c.h.b16 %v2043
    %v2206 = vunpack.c.l.b16 %v2044
    %v2207 = vunpack.c.h.b16 %v2044
    %v2208 = vunpack.c.l.b16 %v2045
    %v2209 = vunpack.c.h.b16 %v2045
    %v2210 = vunpack.c.l.b16 %v2046
    %v2211 = vunpack.c.h.b16 %v2046
    %v2212 = vunpack.c.l.b16 %v2047
    %v2213 = vunpack.c.h.b16 %v2047
    %v2214 = vunpack.c.l.b16 %v2048
    %v2215 = vunpack.c.h.b16 %v2048
    %v2216 = vunpack.c.l.b16 %v2049
    %v2217 = vunpack.c.h.b16 %v2049
    %v2218 = vunpack.c.l.b16 %v2050
    %v2219 = vunpack.c.h.b16 %v2050
    %v2220 = vunpack.c.l.b16 %v2051
    %v2221 = vunpack.c.h.b16 %v2051
    %v2222 = vunpack.c.l.b16 %v2052
    %v2223 = vunpack.c.h.b16 %v2052
    %v2224 = vunpack.c.l.b16 %v2053
    %v2225 = vunpack.c.h.b16 %v2053
    %v2226 = vunpack.c.l.b16 %v2054
    %v2227 = vunpack.c.h.b16 %v2054
    %v2228 = vunpack.c.l.b16 %v2055
    %v2229 = vunpack.c.h.b16 %v2055
    %v2230 = vunpack.c.l.b16 %v2056
    %v2231 = vunpack.c.h.b16 %v2056
    %v2232 = vunpack.c.l.b16 %v2057
    %v2233 = vunpack.c.h.b16 %v2057
    %v2234 = vunpack.c.l.b16 %v2058
    %v2235 = vunpack.c.h.b16 %v2058
    %v2236 = vunpack.c.l.b16 %v2059
    %v2237 = vunpack.c.h.b16 %v2059
    %v2238 = vunpack.c.l.b16 %v2060
    %v2239 = vunpack.c.h.b16 %v2060
    %v2240 = vunpack.c.l.b16 %v2061
    %v2241 = vunpack.c.h.b16 %v2061
    %v2242 = vunpack.c.l.b16 %v2062
    %v2243 = vunpack.c.h.b16 %v2062
    %v2244 = vunpack.c.l.b16 %v2063
    %v2245 = vunpack.c.h.b16 %v2063
    %v2246 = vunpack.c.l.b16 %v2064
    %v2247 = vunpack.c.h.b16 %v2064
    %v2248 = vunpack.c.l.b16 %v2065
    %v2249 = vunpack.c.h.b16 %v2065
    %v2250 = vunpack.c.l.b16 %v2066
    %v2251 = vunpack.c.h.b16 %v2066
    %v2252 = vunpack.c.l.b16 %v2067
    %v2253 = vunpack.c.h.b16 %v2067
    %v2254 = vunpack.c.l.b16 %v2068
    %v2255 = vunpack.c.h.b16 %v2068
    %v2256 = vunpack.c.l.b16 %v2069
    %v2257 = vunpack.c.h.b16 %v2069
    %v2258 = vunpack.c.l.b16 %v2070
    %v2259 = vunpack.c.h.b16 %v2070
    %v2260 = vunpack.c.l.b16 %v2071
    %v2261 = vunpack.c.h.b16 %v2071
    %v2262 = vunpack.c.l.b16 %v2072
    %v2263 = vunpack.c.h.b16 %v2072
    %v2264 = vunpack.c.l.b16 %v2073
    %v2265 = vunpack.c.h.b16 %v2073
    %v2266 = vunpack.c.l.b16 %v2074
    %v2267 = vunpack.c.h.b16 %v2074
    %v2268 = vunpack.c.l.b16 %v2075
    %v2269 = vunpack.c.h.b16 %v2075
    %v2270 = vunpack.c.l.b16 %v2076
    %v2271 = vunpack.c.h.b16 %v2076
    %v2272 = vunpack.c.l.b16 %v2077
    %v2273 = vunpack.c.h.b16 %v2077
    %v2274 = vunpack.c.l.b16 %v2078
    %v2275 = vunpack.c.h.b16 %v2078
    %v2276 = vunpack.c.l.b16 %v2079
    %v2277 = vunpack.c.h.b16 %v2079
    %v2278 = vunpack.c.l.b16 %v2080
    %v2279 = vunpack.c.h.b16 %v2080
    %v2280 = vunpack.c.l.b16 %v2081
    %v2281 = vunpack.c.h.b16 %v2081
    %v2282 = vunpack.c.l.b16 %v2082
    %v2283 = vunpack.c.h.b16 %v2082
    %v2284 = vunpack.c.l.b16 %v2083
    %v2285 = vunpack.c.h.b16 %v2083
    %v2286 = vpack.c.b16 %v2162, %v2158
    %v2287 = vpack.c.b16 %v2163, %v2159
    %v2288 = vpack.c.b16 %v2164, %v2160
    %v2289 = vpack.c.b16 %v2165, %v2161
    %v2290 = vpack.c.b16 %v2170, %v2166
    %v2291 = vpack.c.b16 %v2171, %v2167
    %v2292 = vpack.c.b16 %v2172, %v2168
    %v2293 = vpack.c.b16 %v2173, %v2169
    %v2294 = vpack.c.b16 %v2178, %v2174
    %v2295 = vpack.c.b16 %v2179, %v2175
    %v2296 = vpack.c.b16 %v2180, %v2176
    %v2297 = vpack.c.b16 %v2181, %v2177
    %v2298 = vpack.c.b16 %v2186, %v2182
    %v2299 = vpack.c.b16 %v2187, %v2183
    %v2300 = vpack.c.b16 %v2188, %v2184
    %v2301 = vpack.c.b16 %v2189, %v2185
    %v2302 = vpack.c.b16 %v2194, %v2190
    %v2303 = vpack.c.b16 %v2195, %v2191
    %v2304 = vpack.c.b16 %v2196, %v2192
    %v2305 = vpack.c.b16 %v2197, %v2193
    %v2306 = vpack.c.b16 %v2202, %v2198
    %v2307 = vpack.c.b16 %v2203, %v2199
    %v2308 = vpack.c.b16 %v2204, %v2200
    %v2309 = vpack.c.b16 %v2205, %v2201
    %v2310 = vpack.c.b16 %v2210, %v2206
    %v2311 = vpack.c.b16 %v2211, %v2207
    %v2312 = vpack.c.b16 %v2212, %v2208
    %v2313 = vpack.c.b16 %v2213, %v2209
    %v2314 = vpack.c.b16 %v2218, %v2214
    %v2315 = vpack.c.b16 %v2219, %v2215
    %v2316 = vpack.c.b16 %v2220, %v2216
    %v2317 = vpack.c.b16 %v2221, %v2217
    %v2318 = vpack.c.b16 %v2226, %v2222
    %v2319 = vpack.c.b16 %v2227, %v2223
    %v2320 = vpack.c.b16 %v2228, %v2224
    %v2321 = vpack.c.b16 %v2229, %v2225
    %v2322 = vpack.c.b16 %v2234, %v2230
    %v2323 = vpack.c.b16 %v2235, %v2231
    %v2324 = vpack.c.b16 %v2236, %v2232
    %v2325 = vpack.c.b16 %v2237, %v2233
    %v2326 = vpack.c.b16 %v2242, %v2238
    %v2327 = vpack.c.b16 %v2243, %v2239
    %v2328 = vpack.c.b16 %v2244, %v2240
    %v2329 = vpack.c.b16 %v2245, %v2241
    %v2330 = vpack.c.b16 %v2250, %v2246
    %v2331 = vpack.c.b16 %v2251, %v2247
    %v2332 = vpack.c.b16 %v2252, %v2248
    %v2333 = vpack.c.b16 %v2253, %v2249
    %v2334 = vpack.c.b16 %v2258, %v2254
    %v2335 = vpack.c.b16 %v2259, %v2255
    %v2336 = vpack.c.b16 %v2260, %v2256
    %v2337 = vpack.c.b16 %v2261, %v2257
    %v2338 = vpack.c.b16 %v2266, %v2262
    %v2339 = vpack.c.b16 %v2267, %v2263
    %v2340 = vpack.c.b16 %v2268, %v2264
    %v2341 = vpack.c.b16 %v2269, %v2265
    %v2342 = vpack.c.b16 %v2274, %v2270
    %v2343 = vpack.c.b16 %v2275, %v2271
    %v2344 = vpack.c.b16 %v2276, %v2272
    %v2345 = vpack.c.b16 %v2277, %v2273
    %v2346 = vpack.c.b16 %v2282, %v2278
    %v2347 = vpack.c.b16 %v2283, %v2279
    %v2348 = vpack.c.b16 %v2284, %v2280
    %v2349 = vpack.c.b16 %v2285, %v2281
    %2414 = vmatpush.bf16.msra.mxu0 %v2314
    %2415 = vmatpush.bf16.msra.mxu0 %v2310
    %2416 = vmatpush.bf16.msra.mxu0 %v2306
    %2417 = vmatpush.bf16.msra.mxu0 %v2302
    %2418 = vmatpush.bf16.msra.mxu0 %v2298
    %2419 = vmatpush.bf16.msra.mxu0 %v2294
    %2420 = vmatpush.bf16.msra.mxu0 %v2290
    %2421 = vmatpush.bf16.msra.mxu0 %v2286
    %2422 = vmatmul.bf16.gmra.mxu0 %v2019
    %v2423 = vpop.f32.mrf.mxu0
    %v2424 = vadd.f32 %v2086, %v2423
    %v2425 = vpop.f32.mrf.mxu0
    %2426 = vdwg.mxu0
    %2427 = vmatpush.bf16.msra.mxu0 %v2346
    %2428 = vmatpush.bf16.msra.mxu0 %v2342
    %2429 = vmatpush.bf16.msra.mxu0 %v2338
    %2430 = vmatpush.bf16.msra.mxu0 %v2334
    %2431 = vmatpush.bf16.msra.mxu0 %v2330
    %2432 = vmatpush.bf16.msra.mxu0 %v2326
    %2433 = vmatpush.bf16.msra.mxu0 %v2322
    %2434 = vmatpush.bf16.msra.mxu0 %v2318
    %2435 = vmatmul.bf16.gmra.mxu0 %v1924
    %v2436 = vpop.f32.mrf.mxu0
    %v2437 = vadd.f32 %v2424, %v2436
    %v2438 = vpop.f32.mrf.mxu0
    %2439 = vdwg.mxu0
    %2440 = vmatpush.bf16.msra.mxu0 %v2315
    %2441 = vmatpush.bf16.msra.mxu0 %v2311
    %2442 = vmatpush.bf16.msra.mxu0 %v2307
    %2443 = vmatpush.bf16.msra.mxu0 %v2303
    %2444 = vmatpush.bf16.msra.mxu0 %v2299
    %2445 = vmatpush.bf16.msra.mxu0 %v2295
    %2446 = vmatpush.bf16.msra.mxu0 %v2291
    %2447 = vmatpush.bf16.msra.mxu0 %v2287
    %2448 = vmatmul.bf16.gmra.mxu0 %v2019
    %v2449 = vpop.f32.mrf.mxu0
    %v2450 = vadd.f32 %v2087, %v2449
    %v2451 = vpop.f32.mrf.mxu0
    %2452 = vdwg.mxu0
    %2453 = vmatpush.bf16.msra.mxu0 %v2347
    %2454 = vmatpush.bf16.msra.mxu0 %v2343
    %2455 = vmatpush.bf16.msra.mxu0 %v2339
    %2456 = vmatpush.bf16.msra.mxu0 %v2335
    %2457 = vmatpush.bf16.msra.mxu0 %v2331
    %2458 = vmatpush.bf16.msra.mxu0 %v2327
    %2459 = vmatpush.bf16.msra.mxu0 %v2323
    %2460 = vmatpush.bf16.msra.mxu0 %v2319
    %2461 = vmatmul.bf16.gmra.mxu0 %v1924
    %v2462 = vpop.f32.mrf.mxu0
    %v2463 = vadd.f32 %v2450, %v2462
    %v2464 = vpop.f32.mrf.mxu0
    %2465 = vdwg.mxu0
    %2466 = vmatpush.bf16.msra.mxu0 %v2316
    %2467 = vmatpush.bf16.msra.mxu0 %v2312
    %2468 = vmatpush.bf16.msra.mxu0 %v2308
    %2469 = vmatpush.bf16.msra.mxu0 %v2304
    %2470 = vmatpush.bf16.msra.mxu0 %v2300
    %2471 = vmatpush.bf16.msra.mxu0 %v2296
    %2472 = vmatpush.bf16.msra.mxu0 %v2292
    %2473 = vmatpush.bf16.msra.mxu0 %v2288
    %2474 = vmatmul.bf16.gmra.mxu0 %v2019
    %v2475 = vpop.f32.mrf.mxu0
    %v2476 = vadd.f32 %v2088, %v2475
    %v2477 = vpop.f32.mrf.mxu0
    %2478 = vdwg.mxu0
    %2479 = vmatpush.bf16.msra.mxu0 %v2348
    %2480 = vmatpush.bf16.msra.mxu0 %v2344
    %2481 = vmatpush.bf16.msra.mxu0 %v2340
    %2482 = vmatpush.bf16.msra.mxu0 %v2336
    %2483 = vmatpush.bf16.msra.mxu0 %v2332
    %2484 = vmatpush.bf16.msra.mxu0 %v2328
    %2485 = vmatpush.bf16.msra.mxu0 %v2324
    %2486 = vmatpush.bf16.msra.mxu0 %v2320
    %2487 = vmatmul.bf16.gmra.mxu0 %v1924
    %v2488 = vpop.f32.mrf.mxu0
    %v2489 = vadd.f32 %v2476, %v2488
    %v2490 = vpop.f32.mrf.mxu0
    %2491 = vdwg.mxu0
    %2492 = vmatpush.bf16.msra.mxu0 %v2317
    %2493 = vmatpush.bf16.msra.mxu0 %v2313
    %2494 = vmatpush.bf16.msra.mxu0 %v2309
    %2495 = vmatpush.bf16.msra.mxu0 %v2305
    %2496 = vmatpush.bf16.msra.mxu0 %v2301
    %2497 = vmatpush.bf16.msra.mxu0 %v2297
    %2498 = vmatpush.bf16.msra.mxu0 %v2293
    %2499 = vmatpush.bf16.msra.mxu0 %v2289
    %2500 = vmatmul.bf16.gmra.mxu0 %v2019
    %v2501 = vpop.f32.mrf.mxu0
    %v2502 = vadd.f32 %v2089, %v2501
    %v2503 = vpop.f32.mrf.mxu0
    %2504 = vdwg.mxu0
    %2505 = vmatpush.bf16.msra.mxu0 %v2349
    %2506 = vmatpush.bf16.msra.mxu0 %v2345
    %2507 = vmatpush.bf16.msra.mxu0 %v2341
    %2508 = vmatpush.bf16.msra.mxu0 %v2337
    %2509 = vmatpush.bf16.msra.mxu0 %v2333
    %2510 = vmatpush.bf16.msra.mxu0 %v2329
    %2511 = vmatpush.bf16.msra.mxu0 %v2325
    %2512 = vmatpush.bf16.msra.mxu0 %v2321
    %2513 = vmatmul.bf16.gmra.mxu0 %v1924
    %v2514 = vpop.f32.mrf.mxu0
    %v2515 = vadd.f32 %v2502, %v2514
    %v2516 = vpop.f32.mrf.mxu0
    %2517 = vdwg.mxu0
    %v2518 = vxor.u32 %v2437, 2147483648
    %v2519 = vmul.f32 %v2518, 1.442695
    %v2520 = vpow.pop %v2519
    %v2521 = vadd.f32 %v2520, 1.0
    %v2522 = vrcp.pop %v2521
    %v2523 = vmul.f32 %v2521, %v2522
    %v2524 = vsub.f32 1.0, %v2523
    %v2525 = vmul.f32 %v2522, %v2524
    %v2526 = vadd.f32 %v2522, %v2525
    %vm2527 = vweird.f32 %v2521
    %vm2528 = vweird.f32 %v2522
    %vm2529 = vmor %vm2527, %vm2528
    %v2530 = vsel %vm2529, %v2522, %v2526
    %v2531 = vand.u32 2147483647, %v2521
    %vm2532 = vcmp.eq.f32.partialorder %v2531, 8.507059e+37
    %v2533 = vand.u32 %v2521, 2147483648
    %v2534 = vor.u32 1.1754944e-38, %v2533
    %v2535 = vsel %vm2532, %v2534, %v2530
    %v2536 = vmul.f32 1.0, %v2535
    %v2537 = vxor.u32 %v2463, 2147483648
    %v2538 = vmul.f32 %v2537, 1.442695
    %v2539 = vpow.pop %v2538
    %v2540 = vadd.f32 %v2539, 1.0
    %v2541 = vrcp.pop %v2540
    %v2542 = vmul.f32 %v2540, %v2541
    %v2543 = vsub.f32 1.0, %v2542
    %v2544 = vmul.f32 %v2541, %v2543
    %v2545 = vadd.f32 %v2541, %v2544
    %vm2546 = vweird.f32 %v2540
    %vm2547 = vweird.f32 %v2541
    %vm2548 = vmor %vm2546, %vm2547
    %v2549 = vsel %vm2548, %v2541, %v2545
    %v2550 = vand.u32 2147483647, %v2540
    %vm2551 = vcmp.eq.f32.partialorder %v2550, 8.507059e+37
    %v2552 = vand.u32 %v2540, 2147483648
    %v2553 = vor.u32 1.1754944e-38, %v2552
    %v2554 = vsel %vm2551, %v2553, %v2549
    %v2555 = vmul.f32 1.0, %v2554
    %v2556 = vmul.f32 %v2536, %v2515
    %v2557 = vadd.f32 %v2489, %v2556
    %v2558 = vtanh.pop %v2557
    %v2559 = vsub.f32 1.0, %v2555
    %v2560 = vmul.f32 %v2559, %v2558
    %v2561 = vmul.f32 %v2555, %v1923
    %v2562 = vadd.f32 %v2560, %v2561
    %v2563 = vpack.c.bf16 %v2562, %v2562
    %v2564 = vld [vmem:[#allocation10] sm:$0xf]
    %v2565 = vld [vmem:[#allocation10 + $0x4] sm:$0xf]
    %v2566 = vld [vmem:[#allocation10 + $0x8] sm:$0xf]
    %v2567 = vld [vmem:[#allocation10 + $0xc] sm:$0xf]
    %v2568 = vld [vmem:[#allocation10 + $0x10] sm:$0xf]
    %v2569 = vld [vmem:[#allocation10 + $0x14] sm:$0xf]
    %v2570 = vld [vmem:[#allocation10 + $0x18] sm:$0xf]
    %v2571 = vld [vmem:[#allocation10 + $0x1c] sm:$0xf]
    %v2572 = vld [vmem:[#allocation10 + $0x20] sm:$0xf]
    %v2573 = vld [vmem:[#allocation10 + $0x24] sm:$0xf]
    %v2574 = vld [vmem:[#allocation10 + $0x28] sm:$0xf]
    %v2575 = vld [vmem:[#allocation10 + $0x2c] sm:$0xf]
    %v2576 = vld [vmem:[#allocation10 + $0x30] sm:$0xf]
    %v2577 = vld [vmem:[#allocation10 + $0x34] sm:$0xf]
    %v2578 = vld [vmem:[#allocation10 + $0x38] sm:$0xf]
    %v2579 = vld [vmem:[#allocation10 + $0x3c] sm:$0xf]
    %v2580 = vld [vmem:[%s5] sm:$0x1]
    %v2582 = vperm.slane %v2580, 0
    %v2600 = vunpack.c.l.b16 %v2564
    %v2601 = vunpack.c.l.b16 %v2565
    %v2602 = vunpack.c.l.b16 %v2566
    %v2603 = vunpack.c.l.b16 %v2567
    %v2604 = vunpack.c.l.b16 %v2568
    %v2605 = vunpack.c.l.b16 %v2569
    %v2606 = vunpack.c.l.b16 %v2570
    %v2607 = vunpack.c.l.b16 %v2571
    %v2608 = vunpack.c.l.b16 %v2572
    %v2609 = vunpack.c.l.b16 %v2573
    %v2610 = vunpack.c.l.b16 %v2574
    %v2611 = vunpack.c.l.b16 %v2575
    %v2612 = vunpack.c.l.b16 %v2576
    %v2613 = vunpack.c.l.b16 %v2577
    %v2614 = vunpack.c.l.b16 %v2578
    %v2615 = vunpack.c.l.b16 %v2579
    %v2616 = vpack.c.b16 %v2601, %v2600
    %v2617 = vpack.c.b16 %v2603, %v2602
    %v2618 = vpack.c.b16 %v2605, %v2604
    %v2619 = vpack.c.b16 %v2607, %v2606
    %v2620 = vpack.c.b16 %v2609, %v2608
    %v2621 = vpack.c.b16 %v2611, %v2610
    %v2622 = vpack.c.b16 %v2613, %v2612
    %v2623 = vpack.c.b16 %v2615, %v2614
    %2632 = vmatpush.bf16.msra.mxu0 %v2623
    %2633 = vmatpush.bf16.msra.mxu0 %v2622
    %2634 = vmatpush.bf16.msra.mxu0 %v2621
    %2635 = vmatpush.bf16.msra.mxu0 %v2620
    %2636 = vmatpush.bf16.msra.mxu0 %v2619
    %2637 = vmatpush.bf16.msra.mxu0 %v2618
    %2638 = vmatpush.bf16.msra.mxu0 %v2617
    %2639 = vmatpush.bf16.msra.mxu0 %v2616
    %2640 = vmatmul.bf16.gmra.mxu0 %v2563
    %v2641 = vpop.f32.mrf.mxu0
    %v2642 = vadd.f32 %v2582, %v2641
    %v2643 = vpop.f32.mrf.mxu0
    %2644 = vdwg.mxu0
    %2645 = vmax.xlane.f32.xlu0 %v2642
    %v2646 = vpop.xlane.xlu0 %2645
    %v2647 = vsub.f32 %v2642, %v2646
    %v2648 = vmul.f32 %v2647, 1.442695
    %v2649 = vpow.pop %v2648
    %2650 = vadd.xlane.f32.xlu0 %v2649
    %v2651 = vpop.xlane.xlu0 %2650
    %v2652 = vlog2.pop %v2651
    %v2653 = vmul.f32 %v2652, 0.6931472
    %v2654 = vsub.f32 %v2647, %v2653
    %s2655 = scalar_lea.vmem [#allocation11], 24
    %2656 = vst [vmem:[%s2655] sm:$0xff] %v2654
    %s2657 = scalar_lea.vmem [#allocation2], 16
    %v2658 = vld [vmem:[%s2657] sm:$0xf]
    %v2659 = vld [vmem:[#allocation7] sm:$0xff]
    %v2660 = vld [vmem:[#allocation7 + $0x8] sm:$0xff]
    %v2661 = vld [vmem:[#allocation7 + $0x10] sm:$0xff]
    %v2662 = vld [vmem:[#allocation7 + $0x18] sm:$0xff]
    %v2663 = vld [vmem:[#allocation7 + $0x20] sm:$0xff]
    %v2664 = vld [vmem:[#allocation7 + $0x28] sm:$0xff]
    %v2665 = vld [vmem:[#allocation7 + $0x30] sm:$0xff]
    %v2666 = vld [vmem:[#allocation7 + $0x38] sm:$0xff]
    %v2667 = vld [vmem:[#allocation7 + $0x40] sm:$0xff]
    %v2668 = vld [vmem:[#allocation7 + $0x48] sm:$0xff]
    %v2669 = vld [vmem:[#allocation7 + $0x50] sm:$0xff]
    %v2670 = vld [vmem:[#allocation7 + $0x58] sm:$0xff]
    %v2671 = vld [vmem:[#allocation7 + $0x60] sm:$0xff]
    %v2672 = vld [vmem:[#allocation7 + $0x68] sm:$0xff]
    %v2673 = vld [vmem:[#allocation7 + $0x70] sm:$0xff]
    %v2674 = vld [vmem:[#allocation7 + $0x78] sm:$0xff]
    %v2675 = vld [vmem:[#allocation7 + $0x80] sm:$0xff]
    %v2676 = vld [vmem:[#allocation7 + $0x88] sm:$0xff]
    %v2677 = vld [vmem:[#allocation7 + $0x90] sm:$0xff]
    %v2678 = vld [vmem:[#allocation7 + $0x98] sm:$0xff]
    %v2679 = vld [vmem:[#allocation7 + $0xa0] sm:$0xff]
    %v2680 = vld [vmem:[#allocation7 + $0xa8] sm:$0xff]
    %v2681 = vld [vmem:[#allocation7 + $0xb0] sm:$0xff]
    %v2682 = vld [vmem:[#allocation7 + $0xb8] sm:$0xff]
    %v2683 = vld [vmem:[#allocation7 + $0xc0] sm:$0xff]
    %v2684 = vld [vmem:[#allocation7 + $0xc8] sm:$0xff]
    %v2685 = vld [vmem:[#allocation7 + $0xd0] sm:$0xff]
    %v2686 = vld [vmem:[#allocation7 + $0xd8] sm:$0xff]
    %v2687 = vld [vmem:[#allocation7 + $0xe0] sm:$0xff]
    %v2688 = vld [vmem:[#allocation7 + $0xe8] sm:$0xff]
    %v2689 = vld [vmem:[#allocation7 + $0xf0] sm:$0xff]
    %v2690 = vld [vmem:[#allocation7 + $0xf8] sm:$0xff]
    %v2691 = vld [vmem:[#allocation7 + $0x100] sm:$0xff]
    %v2692 = vld [vmem:[#allocation7 + $0x108] sm:$0xff]
    %v2693 = vld [vmem:[#allocation7 + $0x110] sm:$0xff]
    %v2694 = vld [vmem:[#allocation7 + $0x118] sm:$0xff]
    %v2695 = vld [vmem:[#allocation7 + $0x120] sm:$0xff]
    %v2696 = vld [vmem:[#allocation7 + $0x128] sm:$0xff]
    %v2697 = vld [vmem:[#allocation7 + $0x130] sm:$0xff]
    %v2698 = vld [vmem:[#allocation7 + $0x138] sm:$0xff]
    %v2699 = vld [vmem:[#allocation7 + $0x140] sm:$0xff]
    %v2700 = vld [vmem:[#allocation7 + $0x148] sm:$0xff]
    %v2701 = vld [vmem:[#allocation7 + $0x150] sm:$0xff]
    %v2702 = vld [vmem:[#allocation7 + $0x158] sm:$0xff]
    %v2703 = vld [vmem:[#allocation7 + $0x160] sm:$0xff]
    %v2704 = vld [vmem:[#allocation7 + $0x168] sm:$0xff]
    %v2705 = vld [vmem:[#allocation7 + $0x170] sm:$0xff]
    %v2706 = vld [vmem:[#allocation7 + $0x178] sm:$0xff]
    %v2707 = vld [vmem:[#allocation7 + $0x180] sm:$0xff]
    %v2708 = vld [vmem:[#allocation7 + $0x188] sm:$0xff]
    %v2709 = vld [vmem:[#allocation7 + $0x190] sm:$0xff]
    %v2710 = vld [vmem:[#allocation7 + $0x198] sm:$0xff]
    %v2711 = vld [vmem:[#allocation7 + $0x1a0] sm:$0xff]
    %v2712 = vld [vmem:[#allocation7 + $0x1a8] sm:$0xff]
    %v2713 = vld [vmem:[#allocation7 + $0x1b0] sm:$0xff]
    %v2714 = vld [vmem:[#allocation7 + $0x1b8] sm:$0xff]
    %v2715 = vld [vmem:[#allocation7 + $0x1c0] sm:$0xff]
    %v2716 = vld [vmem:[#allocation7 + $0x1c8] sm:$0xff]
    %v2717 = vld [vmem:[#allocation7 + $0x1d0] sm:$0xff]
    %v2718 = vld [vmem:[#allocation7 + $0x1d8] sm:$0xff]
    %v2719 = vld [vmem:[#allocation7 + $0x1e0] sm:$0xff]
    %v2720 = vld [vmem:[#allocation7 + $0x1e8] sm:$0xff]
    %v2721 = vld [vmem:[#allocation7 + $0x1f0] sm:$0xff]
    %v2722 = vld [vmem:[#allocation7 + $0x1f8] sm:$0xff]
    %v2723 = vld [vmem:[#allocation8] sm:$0xf]
    %v2725 = vperm.slane %v2723, 0
    %v2726 = vperm.slane %v2723, 1
    %v2727 = vperm.slane %v2723, 2
    %v2728 = vperm.slane %v2723, 3
    %v2797 = vunpack.c.l.b16 %v2659
    %v2798 = vunpack.c.h.b16 %v2659
    %v2799 = vunpack.c.l.b16 %v2660
    %v2800 = vunpack.c.h.b16 %v2660
    %v2801 = vunpack.c.l.b16 %v2661
    %v2802 = vunpack.c.h.b16 %v2661
    %v2803 = vunpack.c.l.b16 %v2662
    %v2804 = vunpack.c.h.b16 %v2662
    %v2805 = vunpack.c.l.b16 %v2663
    %v2806 = vunpack.c.h.b16 %v2663
    %v2807 = vunpack.c.l.b16 %v2664
    %v2808 = vunpack.c.h.b16 %v2664
    %v2809 = vunpack.c.l.b16 %v2665
    %v2810 = vunpack.c.h.b16 %v2665
    %v2811 = vunpack.c.l.b16 %v2666
    %v2812 = vunpack.c.h.b16 %v2666
    %v2813 = vunpack.c.l.b16 %v2667
    %v2814 = vunpack.c.h.b16 %v2667
    %v2815 = vunpack.c.l.b16 %v2668
    %v2816 = vunpack.c.h.b16 %v2668
    %v2817 = vunpack.c.l.b16 %v2669
    %v2818 = vunpack.c.h.b16 %v2669
    %v2819 = vunpack.c.l.b16 %v2670
    %v2820 = vunpack.c.h.b16 %v2670
    %v2821 = vunpack.c.l.b16 %v2671
    %v2822 = vunpack.c.h.b16 %v2671
    %v2823 = vunpack.c.l.b16 %v2672
    %v2824 = vunpack.c.h.b16 %v2672
    %v2825 = vunpack.c.l.b16 %v2673
    %v2826 = vunpack.c.h.b16 %v2673
    %v2827 = vunpack.c.l.b16 %v2674
    %v2828 = vunpack.c.h.b16 %v2674
    %v2829 = vunpack.c.l.b16 %v2675
    %v2830 = vunpack.c.h.b16 %v2675
    %v2831 = vunpack.c.l.b16 %v2676
    %v2832 = vunpack.c.h.b16 %v2676
    %v2833 = vunpack.c.l.b16 %v2677
    %v2834 = vunpack.c.h.b16 %v2677
    %v2835 = vunpack.c.l.b16 %v2678
    %v2836 = vunpack.c.h.b16 %v2678
    %v2837 = vunpack.c.l.b16 %v2679
    %v2838 = vunpack.c.h.b16 %v2679
    %v2839 = vunpack.c.l.b16 %v2680
    %v2840 = vunpack.c.h.b16 %v2680
    %v2841 = vunpack.c.l.b16 %v2681
    %v2842 = vunpack.c.h.b16 %v2681
    %v2843 = vunpack.c.l.b16 %v2682
    %v2844 = vunpack.c.h.b16 %v2682
    %v2845 = vunpack.c.l.b16 %v2683
    %v2846 = vunpack.c.h.b16 %v2683
    %v2847 = vunpack.c.l.b16 %v2684
    %v2848 = vunpack.c.h.b16 %v2684
    %v2849 = vunpack.c.l.b16 %v2685
    %v2850 = vunpack.c.h.b16 %v2685
    %v2851 = vunpack.c.l.b16 %v2686
    %v2852 = vunpack.c.h.b16 %v2686
    %v2853 = vunpack.c.l.b16 %v2687
    %v2854 = vunpack.c.h.b16 %v2687
    %v2855 = vunpack.c.l.b16 %v2688
    %v2856 = vunpack.c.h.b16 %v2688
    %v2857 = vunpack.c.l.b16 %v2689
    %v2858 = vunpack.c.h.b16 %v2689
    %v2859 = vunpack.c.l.b16 %v2690
    %v2860 = vunpack.c.h.b16 %v2690
    %v2861 = vunpack.c.l.b16 %v2691
    %v2862 = vunpack.c.h.b16 %v2691
    %v2863 = vunpack.c.l.b16 %v2692
    %v2864 = vunpack.c.h.b16 %v2692
    %v2865 = vunpack.c.l.b16 %v2693
    %v2866 = vunpack.c.h.b16 %v2693
    %v2867 = vunpack.c.l.b16 %v2694
    %v2868 = vunpack.c.h.b16 %v2694
    %v2869 = vunpack.c.l.b16 %v2695
    %v2870 = vunpack.c.h.b16 %v2695
    %v2871 = vunpack.c.l.b16 %v2696
    %v2872 = vunpack.c.h.b16 %v2696
    %v2873 = vunpack.c.l.b16 %v2697
    %v2874 = vunpack.c.h.b16 %v2697
    %v2875 = vunpack.c.l.b16 %v2698
    %v2876 = vunpack.c.h.b16 %v2698
    %v2877 = vunpack.c.l.b16 %v2699
    %v2878 = vunpack.c.h.b16 %v2699
    %v2879 = vunpack.c.l.b16 %v2700
    %v2880 = vunpack.c.h.b16 %v2700
    %v2881 = vunpack.c.l.b16 %v2701
    %v2882 = vunpack.c.h.b16 %v2701
    %v2883 = vunpack.c.l.b16 %v2702
    %v2884 = vunpack.c.h.b16 %v2702
    %v2885 = vunpack.c.l.b16 %v2703
    %v2886 = vunpack.c.h.b16 %v2703
    %v2887 = vunpack.c.l.b16 %v2704
    %v2888 = vunpack.c.h.b16 %v2704
    %v2889 = vunpack.c.l.b16 %v2705
    %v2890 = vunpack.c.h.b16 %v2705
    %v2891 = vunpack.c.l.b16 %v2706
    %v2892 = vunpack.c.h.b16 %v2706
    %v2893 = vunpack.c.l.b16 %v2707
    %v2894 = vunpack.c.h.b16 %v2707
    %v2895 = vunpack.c.l.b16 %v2708
    %v2896 = vunpack.c.h.b16 %v2708
    %v2897 = vunpack.c.l.b16 %v2709
    %v2898 = vunpack.c.h.b16 %v2709
    %v2899 = vunpack.c.l.b16 %v2710
    %v2900 = vunpack.c.h.b16 %v2710
    %v2901 = vunpack.c.l.b16 %v2711
    %v2902 = vunpack.c.h.b16 %v2711
    %v2903 = vunpack.c.l.b16 %v2712
    %v2904 = vunpack.c.h.b16 %v2712
    %v2905 = vunpack.c.l.b16 %v2713
    %v2906 = vunpack.c.h.b16 %v2713
    %v2907 = vunpack.c.l.b16 %v2714
    %v2908 = vunpack.c.h.b16 %v2714
    %v2909 = vunpack.c.l.b16 %v2715
    %v2910 = vunpack.c.h.b16 %v2715
    %v2911 = vunpack.c.l.b16 %v2716
    %v2912 = vunpack.c.h.b16 %v2716
    %v2913 = vunpack.c.l.b16 %v2717
    %v2914 = vunpack.c.h.b16 %v2717
    %v2915 = vunpack.c.l.b16 %v2718
    %v2916 = vunpack.c.h.b16 %v2718
    %v2917 = vunpack.c.l.b16 %v2719
    %v2918 = vunpack.c.h.b16 %v2719
    %v2919 = vunpack.c.l.b16 %v2720
    %v2920 = vunpack.c.h.b16 %v2720
    %v2921 = vunpack.c.l.b16 %v2721
    %v2922 = vunpack.c.h.b16 %v2721
    %v2923 = vunpack.c.l.b16 %v2722
    %v2924 = vunpack.c.h.b16 %v2722
    %v2925 = vpack.c.b16 %v2801, %v2797
    %v2926 = vpack.c.b16 %v2802, %v2798
    %v2927 = vpack.c.b16 %v2803, %v2799
    %v2928 = vpack.c.b16 %v2804, %v2800
    %v2929 = vpack.c.b16 %v2809, %v2805
    %v2930 = vpack.c.b16 %v2810, %v2806
    %v2931 = vpack.c.b16 %v2811, %v2807
    %v2932 = vpack.c.b16 %v2812, %v2808
    %v2933 = vpack.c.b16 %v2817, %v2813
    %v2934 = vpack.c.b16 %v2818, %v2814
    %v2935 = vpack.c.b16 %v2819, %v2815
    %v2936 = vpack.c.b16 %v2820, %v2816
    %v2937 = vpack.c.b16 %v2825, %v2821
    %v2938 = vpack.c.b16 %v2826, %v2822
    %v2939 = vpack.c.b16 %v2827, %v2823
    %v2940 = vpack.c.b16 %v2828, %v2824
    %v2941 = vpack.c.b16 %v2833, %v2829
    %v2942 = vpack.c.b16 %v2834, %v2830
    %v2943 = vpack.c.b16 %v2835, %v2831
    %v2944 = vpack.c.b16 %v2836, %v2832
    %v2945 = vpack.c.b16 %v2841, %v2837
    %v2946 = vpack.c.b16 %v2842, %v2838
    %v2947 = vpack.c.b16 %v2843, %v2839
    %v2948 = vpack.c.b16 %v2844, %v2840
    %v2949 = vpack.c.b16 %v2849, %v2845
    %v2950 = vpack.c.b16 %v2850, %v2846
    %v2951 = vpack.c.b16 %v2851, %v2847
    %v2952 = vpack.c.b16 %v2852, %v2848
    %v2953 = vpack.c.b16 %v2857, %v2853
    %v2954 = vpack.c.b16 %v2858, %v2854
    %v2955 = vpack.c.b16 %v2859, %v2855
    %v2956 = vpack.c.b16 %v2860, %v2856
    %v2957 = vpack.c.b16 %v2865, %v2861
    %v2958 = vpack.c.b16 %v2866, %v2862
    %v2959 = vpack.c.b16 %v2867, %v2863
    %v2960 = vpack.c.b16 %v2868, %v2864
    %v2961 = vpack.c.b16 %v2873, %v2869
    %v2962 = vpack.c.b16 %v2874, %v2870
    %v2963 = vpack.c.b16 %v2875, %v2871
    %v2964 = vpack.c.b16 %v2876, %v2872
    %v2965 = vpack.c.b16 %v2881, %v2877
    %v2966 = vpack.c.b16 %v2882, %v2878
    %v2967 = vpack.c.b16 %v2883, %v2879
    %v2968 = vpack.c.b16 %v2884, %v2880
    %v2969 = vpack.c.b16 %v2889, %v2885
    %v2970 = vpack.c.b16 %v2890, %v2886
    %v2971 = vpack.c.b16 %v2891, %v2887
    %v2972 = vpack.c.b16 %v2892, %v2888
    %v2973 = vpack.c.b16 %v2897, %v2893
    %v2974 = vpack.c.b16 %v2898, %v2894
    %v2975 = vpack.c.b16 %v2899, %v2895
    %v2976 = vpack.c.b16 %v2900, %v2896
    %v2977 = vpack.c.b16 %v2905, %v2901
    %v2978 = vpack.c.b16 %v2906, %v2902
    %v2979 = vpack.c.b16 %v2907, %v2903
    %v2980 = vpack.c.b16 %v2908, %v2904
    %v2981 = vpack.c.b16 %v2913, %v2909
    %v2982 = vpack.c.b16 %v2914, %v2910
    %v2983 = vpack.c.b16 %v2915, %v2911
    %v2984 = vpack.c.b16 %v2916, %v2912
    %v2985 = vpack.c.b16 %v2921, %v2917
    %v2986 = vpack.c.b16 %v2922, %v2918
    %v2987 = vpack.c.b16 %v2923, %v2919
    %v2988 = vpack.c.b16 %v2924, %v2920
    %3053 = vmatpush.bf16.msra.mxu0 %v2953
    %3054 = vmatpush.bf16.msra.mxu0 %v2949
    %3055 = vmatpush.bf16.msra.mxu0 %v2945
    %3056 = vmatpush.bf16.msra.mxu0 %v2941
    %3057 = vmatpush.bf16.msra.mxu0 %v2937
    %3058 = vmatpush.bf16.msra.mxu0 %v2933
    %3059 = vmatpush.bf16.msra.mxu0 %v2929
    %3060 = vmatpush.bf16.msra.mxu0 %v2925
    %3061 = vmatmul.bf16.gmra.mxu0 %v2658
    %v3062 = vpop.f32.mrf.mxu0
    %v3063 = vadd.f32 %v2725, %v3062
    %v3064 = vpop.f32.mrf.mxu0
    %3065 = vdwg.mxu0
    %3066 = vmatpush.bf16.msra.mxu0 %v2985
    %3067 = vmatpush.bf16.msra.mxu0 %v2981
    %3068 = vmatpush.bf16.msra.mxu0 %v2977
    %3069 = vmatpush.bf16.msra.mxu0 %v2973
    %3070 = vmatpush.bf16.msra.mxu0 %v2969
    %3071 = vmatpush.bf16.msra.mxu0 %v2965
    %3072 = vmatpush.bf16.msra.mxu0 %v2961
    %3073 = vmatpush.bf16.msra.mxu0 %v2957
    %3074 = vmatmul.bf16.gmra.mxu0 %v2563
    %v3075 = vpop.f32.mrf.mxu0
    %v3076 = vadd.f32 %v3063, %v3075
    %v3077 = vpop.f32.mrf.mxu0
    %3078 = vdwg.mxu0
    %3079 = vmatpush.bf16.msra.mxu0 %v2954
    %3080 = vmatpush.bf16.msra.mxu0 %v2950
    %3081 = vmatpush.bf16.msra.mxu0 %v2946
    %3082 = vmatpush.bf16.msra.mxu0 %v2942
    %3083 = vmatpush.bf16.msra.mxu0 %v2938
    %3084 = vmatpush.bf16.msra.mxu0 %v2934
    %3085 = vmatpush.bf16.msra.mxu0 %v2930
    %3086 = vmatpush.bf16.msra.mxu0 %v2926
    %3087 = vmatmul.bf16.gmra.mxu0 %v2658
    %v3088 = vpop.f32.mrf.mxu0
    %v3089 = vadd.f32 %v2726, %v3088
    %v3090 = vpop.f32.mrf.mxu0
    %3091 = vdwg.mxu0
    %3092 = vmatpush.bf16.msra.mxu0 %v2986
    %3093 = vmatpush.bf16.msra.mxu0 %v2982
    %3094 = vmatpush.bf16.msra.mxu0 %v2978
    %3095 = vmatpush.bf16.msra.mxu0 %v2974
    %3096 = vmatpush.bf16.msra.mxu0 %v2970
    %3097 = vmatpush.bf16.msra.mxu0 %v2966
    %3098 = vmatpush.bf16.msra.mxu0 %v2962
    %3099 = vmatpush.bf16.msra.mxu0 %v2958
    %3100 = vmatmul.bf16.gmra.mxu0 %v2563
    %v3101 = vpop.f32.mrf.mxu0
    %v3102 = vadd.f32 %v3089, %v3101
    %v3103 = vpop.f32.mrf.mxu0
    %3104 = vdwg.mxu0
    %3105 = vmatpush.bf16.msra.mxu0 %v2955
    %3106 = vmatpush.bf16.msra.mxu0 %v2951
    %3107 = vmatpush.bf16.msra.mxu0 %v2947
    %3108 = vmatpush.bf16.msra.mxu0 %v2943
    %3109 = vmatpush.bf16.msra.mxu0 %v2939
    %3110 = vmatpush.bf16.msra.mxu0 %v2935
    %3111 = vmatpush.bf16.msra.mxu0 %v2931
    %3112 = vmatpush.bf16.msra.mxu0 %v2927
    %3113 = vmatmul.bf16.gmra.mxu0 %v2658
    %v3114 = vpop.f32.mrf.mxu0
    %v3115 = vadd.f32 %v2727, %v3114
    %v3116 = vpop.f32.mrf.mxu0
    %3117 = vdwg.mxu0
    %3118 = vmatpush.bf16.msra.mxu0 %v2987
    %3119 = vmatpush.bf16.msra.mxu0 %v2983
    %3120 = vmatpush.bf16.msra.mxu0 %v2979
    %3121 = vmatpush.bf16.msra.mxu0 %v2975
    %3122 = vmatpush.bf16.msra.mxu0 %v2971
    %3123 = vmatpush.bf16.msra.mxu0 %v2967
    %3124 = vmatpush.bf16.msra.mxu0 %v2963
    %3125 = vmatpush.bf16.msra.mxu0 %v2959
    %3126 = vmatmul.bf16.gmra.mxu0 %v2563
    %v3127 = vpop.f32.mrf.mxu0
    %v3128 = vadd.f32 %v3115, %v3127
    %v3129 = vpop.f32.mrf.mxu0
    %3130 = vdwg.mxu0
    %3131 = vmatpush.bf16.msra.mxu0 %v2956
    %3132 = vmatpush.bf16.msra.mxu0 %v2952
    %3133 = vmatpush.bf16.msra.mxu0 %v2948
    %3134 = vmatpush.bf16.msra.mxu0 %v2944
    %3135 = vmatpush.bf16.msra.mxu0 %v2940
    %3136 = vmatpush.bf16.msra.mxu0 %v2936
    %3137 = vmatpush.bf16.msra.mxu0 %v2932
    %3138 = vmatpush.bf16.msra.mxu0 %v2928
    %3139 = vmatmul.bf16.gmra.mxu0 %v2658
    %v3140 = vpop.f32.mrf.mxu0
    %v3141 = vadd.f32 %v2728, %v3140
    %v3142 = vpop.f32.mrf.mxu0
    %3143 = vdwg.mxu0
    %3144 = vmatpush.bf16.msra.mxu0 %v2988
    %3145 = vmatpush.bf16.msra.mxu0 %v2984
    %3146 = vmatpush.bf16.msra.mxu0 %v2980
    %3147 = vmatpush.bf16.msra.mxu0 %v2976
    %3148 = vmatpush.bf16.msra.mxu0 %v2972
    %3149 = vmatpush.bf16.msra.mxu0 %v2968
    %3150 = vmatpush.bf16.msra.mxu0 %v2964
    %3151 = vmatpush.bf16.msra.mxu0 %v2960
    %3152 = vmatmul.bf16.gmra.mxu0 %v2563
    %v3153 = vpop.f32.mrf.mxu0
    %v3154 = vadd.f32 %v3141, %v3153
    %v3155 = vpop.f32.mrf.mxu0
    %3156 = vdwg.mxu0
    %v3157 = vxor.u32 %v3076, 2147483648
    %v3158 = vmul.f32 %v3157, 1.442695
    %v3159 = vpow.pop %v3158
    %v3160 = vadd.f32 %v3159, 1.0
    %v3161 = vrcp.pop %v3160
    %v3162 = vmul.f32 %v3160, %v3161
    %v3163 = vsub.f32 1.0, %v3162
    %v3164 = vmul.f32 %v3161, %v3163
    %v3165 = vadd.f32 %v3161, %v3164
    %vm3166 = vweird.f32 %v3160
    %vm3167 = vweird.f32 %v3161
    %vm3168 = vmor %vm3166, %vm3167
    %v3169 = vsel %vm3168, %v3161, %v3165
    %v3170 = vand.u32 2147483647, %v3160
    %vm3171 = vcmp.eq.f32.partialorder %v3170, 8.507059e+37
    %v3172 = vand.u32 %v3160, 2147483648
    %v3173 = vor.u32 1.1754944e-38, %v3172
    %v3174 = vsel %vm3171, %v3173, %v3169
    %v3175 = vmul.f32 1.0, %v3174
    %v3176 = vxor.u32 %v3102, 2147483648
    %v3177 = vmul.f32 %v3176, 1.442695
    %v3178 = vpow.pop %v3177
    %v3179 = vadd.f32 %v3178, 1.0
    %v3180 = vrcp.pop %v3179
    %v3181 = vmul.f32 %v3179, %v3180
    %v3182 = vsub.f32 1.0, %v3181
    %v3183 = vmul.f32 %v3180, %v3182
    %v3184 = vadd.f32 %v3180, %v3183
    %vm3185 = vweird.f32 %v3179
    %vm3186 = vweird.f32 %v3180
    %vm3187 = vmor %vm3185, %vm3186
    %v3188 = vsel %vm3187, %v3180, %v3184
    %v3189 = vand.u32 2147483647, %v3179
    %vm3190 = vcmp.eq.f32.partialorder %v3189, 8.507059e+37
    %v3191 = vand.u32 %v3179, 2147483648
    %v3192 = vor.u32 1.1754944e-38, %v3191
    %v3193 = vsel %vm3190, %v3192, %v3188
    %v3194 = vmul.f32 1.0, %v3193
    %v3195 = vmul.f32 %v3175, %v3154
    %v3196 = vadd.f32 %v3128, %v3195
    %v3197 = vtanh.pop %v3196
    %v3198 = vsub.f32 1.0, %v3194
    %v3199 = vmul.f32 %v3198, %v3197
    %v3200 = vmul.f32 %v3194, %v2562
    %v3201 = vadd.f32 %v3199, %v3200
    %v3202 = vpack.c.bf16 %v3201, %v3201
    %v3203 = vld [vmem:[#allocation10] sm:$0xf]
    %v3204 = vld [vmem:[#allocation10 + $0x4] sm:$0xf]
    %v3205 = vld [vmem:[#allocation10 + $0x8] sm:$0xf]
    %v3206 = vld [vmem:[#allocation10 + $0xc] sm:$0xf]
    %v3207 = vld [vmem:[#allocation10 + $0x10] sm:$0xf]
    %v3208 = vld [vmem:[#allocation10 + $0x14] sm:$0xf]
    %v3209 = vld [vmem:[#allocation10 + $0x18] sm:$0xf]
    %v3210 = vld [vmem:[#allocation10 + $0x1c] sm:$0xf]
    %v3211 = vld [vmem:[#allocation10 + $0x20] sm:$0xf]
    %v3212 = vld [vmem:[#allocation10 + $0x24] sm:$0xf]
    %v3213 = vld [vmem:[#allocation10 + $0x28] sm:$0xf]
    %v3214 = vld [vmem:[#allocation10 + $0x2c] sm:$0xf]
    %v3215 = vld [vmem:[#allocation10 + $0x30] sm:$0xf]
    %v3216 = vld [vmem:[#allocation10 + $0x34] sm:$0xf]
    %v3217 = vld [vmem:[#allocation10 + $0x38] sm:$0xf]
    %v3218 = vld [vmem:[#allocation10 + $0x3c] sm:$0xf]
    %v3219 = vld [vmem:[%s5] sm:$0x1]
    %v3221 = vperm.slane %v3219, 0
    %v3239 = vunpack.c.l.b16 %v3203
    %v3240 = vunpack.c.l.b16 %v3204
    %v3241 = vunpack.c.l.b16 %v3205
    %v3242 = vunpack.c.l.b16 %v3206
    %v3243 = vunpack.c.l.b16 %v3207
    %v3244 = vunpack.c.l.b16 %v3208
    %v3245 = vunpack.c.l.b16 %v3209
    %v3246 = vunpack.c.l.b16 %v3210
    %v3247 = vunpack.c.l.b16 %v3211
    %v3248 = vunpack.c.l.b16 %v3212
    %v3249 = vunpack.c.l.b16 %v3213
    %v3250 = vunpack.c.l.b16 %v3214
    %v3251 = vunpack.c.l.b16 %v3215
    %v3252 = vunpack.c.l.b16 %v3216
    %v3253 = vunpack.c.l.b16 %v3217
    %v3254 = vunpack.c.l.b16 %v3218
    %v3255 = vpack.c.b16 %v3240, %v3239
    %v3256 = vpack.c.b16 %v3242, %v3241
    %v3257 = vpack.c.b16 %v3244, %v3243
    %v3258 = vpack.c.b16 %v3246, %v3245
    %v3259 = vpack.c.b16 %v3248, %v3247
    %v3260 = vpack.c.b16 %v3250, %v3249
    %v3261 = vpack.c.b16 %v3252, %v3251
    %v3262 = vpack.c.b16 %v3254, %v3253
    %3271 = vmatpush.bf16.msra.mxu0 %v3262
    %3272 = vmatpush.bf16.msra.mxu0 %v3261
    %3273 = vmatpush.bf16.msra.mxu0 %v3260
    %3274 = vmatpush.bf16.msra.mxu0 %v3259
    %3275 = vmatpush.bf16.msra.mxu0 %v3258
    %3276 = vmatpush.bf16.msra.mxu0 %v3257
    %3277 = vmatpush.bf16.msra.mxu0 %v3256
    %3278 = vmatpush.bf16.msra.mxu0 %v3255
    %3279 = vmatmul.bf16.gmra.mxu0 %v3202
    %v3280 = vpop.f32.mrf.mxu0
    %v3281 = vadd.f32 %v3221, %v3280
    %v3282 = vpop.f32.mrf.mxu0
    %3283 = vdwg.mxu0
    %3284 = vmax.xlane.f32.xlu0 %v3281
    %v3285 = vpop.xlane.xlu0 %3284
    %v3286 = vsub.f32 %v3281, %v3285
    %v3287 = vmul.f32 %v3286, 1.442695
    %v3288 = vpow.pop %v3287
    %3289 = vadd.xlane.f32.xlu0 %v3288
    %v3290 = vpop.xlane.xlu0 %3289
    %v3291 = vlog2.pop %v3290
    %v3292 = vmul.f32 %v3291, 0.6931472
    %v3293 = vsub.f32 %v3286, %v3292
    %s3294 = scalar_lea.vmem [#allocation11], 32
    %3295 = vst [vmem:[%s3294] sm:$0xff] %v3293
    %s3296 = scalar_lea.vmem [#allocation2], 20
    %v3297 = vld [vmem:[%s3296] sm:$0xf]
    %v3298 = vld [vmem:[#allocation7] sm:$0xff]
    %v3299 = vld [vmem:[#allocation7 + $0x8] sm:$0xff]
    %v3300 = vld [vmem:[#allocation7 + $0x10] sm:$0xff]
    %v3301 = vld [vmem:[#allocation7 + $0x18] sm:$0xff]
    %v3302 = vld [vmem:[#allocation7 + $0x20] sm:$0xff]
    %v3303 = vld [vmem:[#allocation7 + $0x28] sm:$0xff]
    %v3304 = vld [vmem:[#allocation7 + $0x30] sm:$0xff]
    %v3305 = vld [vmem:[#allocation7 + $0x38] sm:$0xff]
    %v3306 = vld [vmem:[#allocation7 + $0x40] sm:$0xff]
    %v3307 = vld [vmem:[#allocation7 + $0x48] sm:$0xff]
    %v3308 = vld [vmem:[#allocation7 + $0x50] sm:$0xff]
    %v3309 = vld [vmem:[#allocation7 + $0x58] sm:$0xff]
    %v3310 = vld [vmem:[#allocation7 + $0x60] sm:$0xff]
    %v3311 = vld [vmem:[#allocation7 + $0x68] sm:$0xff]
    %v3312 = vld [vmem:[#allocation7 + $0x70] sm:$0xff]
    %v3313 = vld [vmem:[#allocation7 + $0x78] sm:$0xff]
    %v3314 = vld [vmem:[#allocation7 + $0x80] sm:$0xff]
    %v3315 = vld [vmem:[#allocation7 + $0x88] sm:$0xff]
    %v3316 = vld [vmem:[#allocation7 + $0x90] sm:$0xff]
    %v3317 = vld [vmem:[#allocation7 + $0x98] sm:$0xff]
    %v3318 = vld [vmem:[#allocation7 + $0xa0] sm:$0xff]
    %v3319 = vld [vmem:[#allocation7 + $0xa8] sm:$0xff]
    %v3320 = vld [vmem:[#allocation7 + $0xb0] sm:$0xff]
    %v3321 = vld [vmem:[#allocation7 + $0xb8] sm:$0xff]
    %v3322 = vld [vmem:[#allocation7 + $0xc0] sm:$0xff]
    %v3323 = vld [vmem:[#allocation7 + $0xc8] sm:$0xff]
    %v3324 = vld [vmem:[#allocation7 + $0xd0] sm:$0xff]
    %v3325 = vld [vmem:[#allocation7 + $0xd8] sm:$0xff]
    %v3326 = vld [vmem:[#allocation7 + $0xe0] sm:$0xff]
    %v3327 = vld [vmem:[#allocation7 + $0xe8] sm:$0xff]
    %v3328 = vld [vmem:[#allocation7 + $0xf0] sm:$0xff]
    %v3329 = vld [vmem:[#allocation7 + $0xf8] sm:$0xff]
    %v3330 = vld [vmem:[#allocation7 + $0x100] sm:$0xff]
    %v3331 = vld [vmem:[#allocation7 + $0x108] sm:$0xff]
    %v3332 = vld [vmem:[#allocation7 + $0x110] sm:$0xff]
    %v3333 = vld [vmem:[#allocation7 + $0x118] sm:$0xff]
    %v3334 = vld [vmem:[#allocation7 + $0x120] sm:$0xff]
    %v3335 = vld [vmem:[#allocation7 + $0x128] sm:$0xff]
    %v3336 = vld [vmem:[#allocation7 + $0x130] sm:$0xff]
    %v3337 = vld [vmem:[#allocation7 + $0x138] sm:$0xff]
    %v3338 = vld [vmem:[#allocation7 + $0x140] sm:$0xff]
    %v3339 = vld [vmem:[#allocation7 + $0x148] sm:$0xff]
    %v3340 = vld [vmem:[#allocation7 + $0x150] sm:$0xff]
    %v3341 = vld [vmem:[#allocation7 + $0x158] sm:$0xff]
    %v3342 = vld [vmem:[#allocation7 + $0x160] sm:$0xff]
    %v3343 = vld [vmem:[#allocation7 + $0x168] sm:$0xff]
    %v3344 = vld [vmem:[#allocation7 + $0x170] sm:$0xff]
    %v3345 = vld [vmem:[#allocation7 + $0x178] sm:$0xff]
    %v3346 = vld [vmem:[#allocation7 + $0x180] sm:$0xff]
    %v3347 = vld [vmem:[#allocation7 + $0x188] sm:$0xff]
    %v3348 = vld [vmem:[#allocation7 + $0x190] sm:$0xff]
    %v3349 = vld [vmem:[#allocation7 + $0x198] sm:$0xff]
    %v3350 = vld [vmem:[#allocation7 + $0x1a0] sm:$0xff]
    %v3351 = vld [vmem:[#allocation7 + $0x1a8] sm:$0xff]
    %v3352 = vld [vmem:[#allocation7 + $0x1b0] sm:$0xff]
    %v3353 = vld [vmem:[#allocation7 + $0x1b8] sm:$0xff]
    %v3354 = vld [vmem:[#allocation7 + $0x1c0] sm:$0xff]
    %v3355 = vld [vmem:[#allocation7 + $0x1c8] sm:$0xff]
    %v3356 = vld [vmem:[#allocation7 + $0x1d0] sm:$0xff]
    %v3357 = vld [vmem:[#allocation7 + $0x1d8] sm:$0xff]
    %v3358 = vld [vmem:[#allocation7 + $0x1e0] sm:$0xff]
    %v3359 = vld [vmem:[#allocation7 + $0x1e8] sm:$0xff]
    %v3360 = vld [vmem:[#allocation7 + $0x1f0] sm:$0xff]
    %v3361 = vld [vmem:[#allocation7 + $0x1f8] sm:$0xff]
    %v3362 = vld [vmem:[#allocation8] sm:$0xf]
    %v3364 = vperm.slane %v3362, 0
    %v3365 = vperm.slane %v3362, 1
    %v3366 = vperm.slane %v3362, 2
    %v3367 = vperm.slane %v3362, 3
    %v3436 = vunpack.c.l.b16 %v3298
    %v3437 = vunpack.c.h.b16 %v3298
    %v3438 = vunpack.c.l.b16 %v3299
    %v3439 = vunpack.c.h.b16 %v3299
    %v3440 = vunpack.c.l.b16 %v3300
    %v3441 = vunpack.c.h.b16 %v3300
    %v3442 = vunpack.c.l.b16 %v3301
    %v3443 = vunpack.c.h.b16 %v3301
    %v3444 = vunpack.c.l.b16 %v3302
    %v3445 = vunpack.c.h.b16 %v3302
    %v3446 = vunpack.c.l.b16 %v3303
    %v3447 = vunpack.c.h.b16 %v3303
    %v3448 = vunpack.c.l.b16 %v3304
    %v3449 = vunpack.c.h.b16 %v3304
    %v3450 = vunpack.c.l.b16 %v3305
    %v3451 = vunpack.c.h.b16 %v3305
    %v3452 = vunpack.c.l.b16 %v3306
    %v3453 = vunpack.c.h.b16 %v3306
    %v3454 = vunpack.c.l.b16 %v3307
    %v3455 = vunpack.c.h.b16 %v3307
    %v3456 = vunpack.c.l.b16 %v3308
    %v3457 = vunpack.c.h.b16 %v3308
    %v3458 = vunpack.c.l.b16 %v3309
    %v3459 = vunpack.c.h.b16 %v3309
    %v3460 = vunpack.c.l.b16 %v3310
    %v3461 = vunpack.c.h.b16 %v3310
    %v3462 = vunpack.c.l.b16 %v3311
    %v3463 = vunpack.c.h.b16 %v3311
    %v3464 = vunpack.c.l.b16 %v3312
    %v3465 = vunpack.c.h.b16 %v3312
    %v3466 = vunpack.c.l.b16 %v3313
    %v3467 = vunpack.c.h.b16 %v3313
    %v3468 = vunpack.c.l.b16 %v3314
    %v3469 = vunpack.c.h.b16 %v3314
    %v3470 = vunpack.c.l.b16 %v3315
    %v3471 = vunpack.c.h.b16 %v3315
    %v3472 = vunpack.c.l.b16 %v3316
    %v3473 = vunpack.c.h.b16 %v3316
    %v3474 = vunpack.c.l.b16 %v3317
    %v3475 = vunpack.c.h.b16 %v3317
    %v3476 = vunpack.c.l.b16 %v3318
    %v3477 = vunpack.c.h.b16 %v3318
    %v3478 = vunpack.c.l.b16 %v3319
    %v3479 = vunpack.c.h.b16 %v3319
    %v3480 = vunpack.c.l.b16 %v3320
    %v3481 = vunpack.c.h.b16 %v3320
    %v3482 = vunpack.c.l.b16 %v3321
    %v3483 = vunpack.c.h.b16 %v3321
    %v3484 = vunpack.c.l.b16 %v3322
    %v3485 = vunpack.c.h.b16 %v3322
    %v3486 = vunpack.c.l.b16 %v3323
    %v3487 = vunpack.c.h.b16 %v3323
    %v3488 = vunpack.c.l.b16 %v3324
    %v3489 = vunpack.c.h.b16 %v3324
    %v3490 = vunpack.c.l.b16 %v3325
    %v3491 = vunpack.c.h.b16 %v3325
    %v3492 = vunpack.c.l.b16 %v3326
    %v3493 = vunpack.c.h.b16 %v3326
    %v3494 = vunpack.c.l.b16 %v3327
    %v3495 = vunpack.c.h.b16 %v3327
    %v3496 = vunpack.c.l.b16 %v3328
    %v3497 = vunpack.c.h.b16 %v3328
    %v3498 = vunpack.c.l.b16 %v3329
    %v3499 = vunpack.c.h.b16 %v3329
    %v3500 = vunpack.c.l.b16 %v3330
    %v3501 = vunpack.c.h.b16 %v3330
    %v3502 = vunpack.c.l.b16 %v3331
    %v3503 = vunpack.c.h.b16 %v3331
    %v3504 = vunpack.c.l.b16 %v3332
    %v3505 = vunpack.c.h.b16 %v3332
    %v3506 = vunpack.c.l.b16 %v3333
    %v3507 = vunpack.c.h.b16 %v3333
    %v3508 = vunpack.c.l.b16 %v3334
    %v3509 = vunpack.c.h.b16 %v3334
    %v3510 = vunpack.c.l.b16 %v3335
    %v3511 = vunpack.c.h.b16 %v3335
    %v3512 = vunpack.c.l.b16 %v3336
    %v3513 = vunpack.c.h.b16 %v3336
    %v3514 = vunpack.c.l.b16 %v3337
    %v3515 = vunpack.c.h.b16 %v3337
    %v3516 = vunpack.c.l.b16 %v3338
    %v3517 = vunpack.c.h.b16 %v3338
    %v3518 = vunpack.c.l.b16 %v3339
    %v3519 = vunpack.c.h.b16 %v3339
    %v3520 = vunpack.c.l.b16 %v3340
    %v3521 = vunpack.c.h.b16 %v3340
    %v3522 = vunpack.c.l.b16 %v3341
    %v3523 = vunpack.c.h.b16 %v3341
    %v3524 = vunpack.c.l.b16 %v3342
    %v3525 = vunpack.c.h.b16 %v3342
    %v3526 = vunpack.c.l.b16 %v3343
    %v3527 = vunpack.c.h.b16 %v3343
    %v3528 = vunpack.c.l.b16 %v3344
    %v3529 = vunpack.c.h.b16 %v3344
    %v3530 = vunpack.c.l.b16 %v3345
    %v3531 = vunpack.c.h.b16 %v3345
    %v3532 = vunpack.c.l.b16 %v3346
    %v3533 = vunpack.c.h.b16 %v3346
    %v3534 = vunpack.c.l.b16 %v3347
    %v3535 = vunpack.c.h.b16 %v3347
    %v3536 = vunpack.c.l.b16 %v3348
    %v3537 = vunpack.c.h.b16 %v3348
    %v3538 = vunpack.c.l.b16 %v3349
    %v3539 = vunpack.c.h.b16 %v3349
    %v3540 = vunpack.c.l.b16 %v3350
    %v3541 = vunpack.c.h.b16 %v3350
    %v3542 = vunpack.c.l.b16 %v3351
    %v3543 = vunpack.c.h.b16 %v3351
    %v3544 = vunpack.c.l.b16 %v3352
    %v3545 = vunpack.c.h.b16 %v3352
    %v3546 = vunpack.c.l.b16 %v3353
    %v3547 = vunpack.c.h.b16 %v3353
    %v3548 = vunpack.c.l.b16 %v3354
    %v3549 = vunpack.c.h.b16 %v3354
    %v3550 = vunpack.c.l.b16 %v3355
    %v3551 = vunpack.c.h.b16 %v3355
    %v3552 = vunpack.c.l.b16 %v3356
    %v3553 = vunpack.c.h.b16 %v3356
    %v3554 = vunpack.c.l.b16 %v3357
    %v3555 = vunpack.c.h.b16 %v3357
    %v3556 = vunpack.c.l.b16 %v3358
    %v3557 = vunpack.c.h.b16 %v3358
    %v3558 = vunpack.c.l.b16 %v3359
    %v3559 = vunpack.c.h.b16 %v3359
    %v3560 = vunpack.c.l.b16 %v3360
    %v3561 = vunpack.c.h.b16 %v3360
    %v3562 = vunpack.c.l.b16 %v3361
    %v3563 = vunpack.c.h.b16 %v3361
    %v3564 = vpack.c.b16 %v3440, %v3436
    %v3565 = vpack.c.b16 %v3441, %v3437
    %v3566 = vpack.c.b16 %v3442, %v3438
    %v3567 = vpack.c.b16 %v3443, %v3439
    %v3568 = vpack.c.b16 %v3448, %v3444
    %v3569 = vpack.c.b16 %v3449, %v3445
    %v3570 = vpack.c.b16 %v3450, %v3446
    %v3571 = vpack.c.b16 %v3451, %v3447
    %v3572 = vpack.c.b16 %v3456, %v3452
    %v3573 = vpack.c.b16 %v3457, %v3453
    %v3574 = vpack.c.b16 %v3458, %v3454
    %v3575 = vpack.c.b16 %v3459, %v3455
    %v3576 = vpack.c.b16 %v3464, %v3460
    %v3577 = vpack.c.b16 %v3465, %v3461
    %v3578 = vpack.c.b16 %v3466, %v3462
    %v3579 = vpack.c.b16 %v3467, %v3463
    %v3580 = vpack.c.b16 %v3472, %v3468
    %v3581 = vpack.c.b16 %v3473, %v3469
    %v3582 = vpack.c.b16 %v3474, %v3470
    %v3583 = vpack.c.b16 %v3475, %v3471
    %v3584 = vpack.c.b16 %v3480, %v3476
    %v3585 = vpack.c.b16 %v3481, %v3477
    %v3586 = vpack.c.b16 %v3482, %v3478
    %v3587 = vpack.c.b16 %v3483, %v3479
    %v3588 = vpack.c.b16 %v3488, %v3484
    %v3589 = vpack.c.b16 %v3489, %v3485
    %v3590 = vpack.c.b16 %v3490, %v3486
    %v3591 = vpack.c.b16 %v3491, %v3487
    %v3592 = vpack.c.b16 %v3496, %v3492
    %v3593 = vpack.c.b16 %v3497, %v3493
    %v3594 = vpack.c.b16 %v3498, %v3494
    %v3595 = vpack.c.b16 %v3499, %v3495
    %v3596 = vpack.c.b16 %v3504, %v3500
    %v3597 = vpack.c.b16 %v3505, %v3501
    %v3598 = vpack.c.b16 %v3506, %v3502
    %v3599 = vpack.c.b16 %v3507, %v3503
    %v3600 = vpack.c.b16 %v3512, %v3508
    %v3601 = vpack.c.b16 %v3513, %v3509
    %v3602 = vpack.c.b16 %v3514, %v3510
    %v3603 = vpack.c.b16 %v3515, %v3511
    %v3604 = vpack.c.b16 %v3520, %v3516
    %v3605 = vpack.c.b16 %v3521, %v3517
    %v3606 = vpack.c.b16 %v3522, %v3518
    %v3607 = vpack.c.b16 %v3523, %v3519
    %v3608 = vpack.c.b16 %v3528, %v3524
    %v3609 = vpack.c.b16 %v3529, %v3525
    %v3610 = vpack.c.b16 %v3530, %v3526
    %v3611 = vpack.c.b16 %v3531, %v3527
    %v3612 = vpack.c.b16 %v3536, %v3532
    %v3613 = vpack.c.b16 %v3537, %v3533
    %v3614 = vpack.c.b16 %v3538, %v3534
    %v3615 = vpack.c.b16 %v3539, %v3535
    %v3616 = vpack.c.b16 %v3544, %v3540
    %v3617 = vpack.c.b16 %v3545, %v3541
    %v3618 = vpack.c.b16 %v3546, %v3542
    %v3619 = vpack.c.b16 %v3547, %v3543
    %v3620 = vpack.c.b16 %v3552, %v3548
    %v3621 = vpack.c.b16 %v3553, %v3549
    %v3622 = vpack.c.b16 %v3554, %v3550
    %v3623 = vpack.c.b16 %v3555, %v3551
    %v3624 = vpack.c.b16 %v3560, %v3556
    %v3625 = vpack.c.b16 %v3561, %v3557
    %v3626 = vpack.c.b16 %v3562, %v3558
    %v3627 = vpack.c.b16 %v3563, %v3559
    %3692 = vmatpush.bf16.msra.mxu0 %v3592
    %3693 = vmatpush.bf16.msra.mxu0 %v3588
    %3694 = vmatpush.bf16.msra.mxu0 %v3584
    %3695 = vmatpush.bf16.msra.mxu0 %v3580
    %3696 = vmatpush.bf16.msra.mxu0 %v3576
    %3697 = vmatpush.bf16.msra.mxu0 %v3572
    %3698 = vmatpush.bf16.msra.mxu0 %v3568
    %3699 = vmatpush.bf16.msra.mxu0 %v3564
    %3700 = vmatmul.bf16.gmra.mxu0 %v3297
    %v3701 = vpop.f32.mrf.mxu0
    %v3702 = vadd.f32 %v3364, %v3701
    %v3703 = vpop.f32.mrf.mxu0
    %3704 = vdwg.mxu0
    %3705 = vmatpush.bf16.msra.mxu0 %v3624
    %3706 = vmatpush.bf16.msra.mxu0 %v3620
    %3707 = vmatpush.bf16.msra.mxu0 %v3616
    %3708 = vmatpush.bf16.msra.mxu0 %v3612
    %3709 = vmatpush.bf16.msra.mxu0 %v3608
    %3710 = vmatpush.bf16.msra.mxu0 %v3604
    %3711 = vmatpush.bf16.msra.mxu0 %v3600
    %3712 = vmatpush.bf16.msra.mxu0 %v3596
    %3713 = vmatmul.bf16.gmra.mxu0 %v3202
    %v3714 = vpop.f32.mrf.mxu0
    %v3715 = vadd.f32 %v3702, %v3714
    %v3716 = vpop.f32.mrf.mxu0
    %3717 = vdwg.mxu0
    %3718 = vmatpush.bf16.msra.mxu0 %v3593
    %3719 = vmatpush.bf16.msra.mxu0 %v3589
    %3720 = vmatpush.bf16.msra.mxu0 %v3585
    %3721 = vmatpush.bf16.msra.mxu0 %v3581
    %3722 = vmatpush.bf16.msra.mxu0 %v3577
    %3723 = vmatpush.bf16.msra.mxu0 %v3573
    %3724 = vmatpush.bf16.msra.mxu0 %v3569
    %3725 = vmatpush.bf16.msra.mxu0 %v3565
    %3726 = vmatmul.bf16.gmra.mxu0 %v3297
    %v3727 = vpop.f32.mrf.mxu0
    %v3728 = vadd.f32 %v3365, %v3727
    %v3729 = vpop.f32.mrf.mxu0
    %3730 = vdwg.mxu0
    %3731 = vmatpush.bf16.msra.mxu0 %v3625
    %3732 = vmatpush.bf16.msra.mxu0 %v3621
    %3733 = vmatpush.bf16.msra.mxu0 %v3617
    %3734 = vmatpush.bf16.msra.mxu0 %v3613
    %3735 = vmatpush.bf16.msra.mxu0 %v3609
    %3736 = vmatpush.bf16.msra.mxu0 %v3605
    %3737 = vmatpush.bf16.msra.mxu0 %v3601
    %3738 = vmatpush.bf16.msra.mxu0 %v3597
    %3739 = vmatmul.bf16.gmra.mxu0 %v3202
    %v3740 = vpop.f32.mrf.mxu0
    %v3741 = vadd.f32 %v3728, %v3740
    %v3742 = vpop.f32.mrf.mxu0
    %3743 = vdwg.mxu0
    %3744 = vmatpush.bf16.msra.mxu0 %v3594
    %3745 = vmatpush.bf16.msra.mxu0 %v3590
    %3746 = vmatpush.bf16.msra.mxu0 %v3586
    %3747 = vmatpush.bf16.msra.mxu0 %v3582
    %3748 = vmatpush.bf16.msra.mxu0 %v3578
    %3749 = vmatpush.bf16.msra.mxu0 %v3574
    %3750 = vmatpush.bf16.msra.mxu0 %v3570
    %3751 = vmatpush.bf16.msra.mxu0 %v3566
    %3752 = vmatmul.bf16.gmra.mxu0 %v3297
    %v3753 = vpop.f32.mrf.mxu0
    %v3754 = vadd.f32 %v3366, %v3753
    %v3755 = vpop.f32.mrf.mxu0
    %3756 = vdwg.mxu0
    %3757 = vmatpush.bf16.msra.mxu0 %v3626
    %3758 = vmatpush.bf16.msra.mxu0 %v3622
    %3759 = vmatpush.bf16.msra.mxu0 %v3618
    %3760 = vmatpush.bf16.msra.mxu0 %v3614
    %3761 = vmatpush.bf16.msra.mxu0 %v3610
    %3762 = vmatpush.bf16.msra.mxu0 %v3606
    %3763 = vmatpush.bf16.msra.mxu0 %v3602
    %3764 = vmatpush.bf16.msra.mxu0 %v3598
    %3765 = vmatmul.bf16.gmra.mxu0 %v3202
    %v3766 = vpop.f32.mrf.mxu0
    %v3767 = vadd.f32 %v3754, %v3766
    %v3768 = vpop.f32.mrf.mxu0
    %3769 = vdwg.mxu0
    %3770 = vmatpush.bf16.msra.mxu0 %v3595
    %3771 = vmatpush.bf16.msra.mxu0 %v3591
    %3772 = vmatpush.bf16.msra.mxu0 %v3587
    %3773 = vmatpush.bf16.msra.mxu0 %v3583
    %3774 = vmatpush.bf16.msra.mxu0 %v3579
    %3775 = vmatpush.bf16.msra.mxu0 %v3575
    %3776 = vmatpush.bf16.msra.mxu0 %v3571
    %3777 = vmatpush.bf16.msra.mxu0 %v3567
    %3778 = vmatmul.bf16.gmra.mxu0 %v3297
    %v3779 = vpop.f32.mrf.mxu0
    %v3780 = vadd.f32 %v3367, %v3779
    %v3781 = vpop.f32.mrf.mxu0
    %3782 = vdwg.mxu0
    %3783 = vmatpush.bf16.msra.mxu0 %v3627
    %3784 = vmatpush.bf16.msra.mxu0 %v3623
    %3785 = vmatpush.bf16.msra.mxu0 %v3619
    %3786 = vmatpush.bf16.msra.mxu0 %v3615
    %3787 = vmatpush.bf16.msra.mxu0 %v3611
    %3788 = vmatpush.bf16.msra.mxu0 %v3607
    %3789 = vmatpush.bf16.msra.mxu0 %v3603
    %3790 = vmatpush.bf16.msra.mxu0 %v3599
    %3791 = vmatmul.bf16.gmra.mxu0 %v3202
    %v3792 = vpop.f32.mrf.mxu0
    %v3793 = vadd.f32 %v3780, %v3792
    %v3794 = vpop.f32.mrf.mxu0
    %3795 = vdwg.mxu0
    %v3796 = vxor.u32 %v3715, 2147483648
    %v3797 = vmul.f32 %v3796, 1.442695
    %v3798 = vpow.pop %v3797
    %v3799 = vadd.f32 %v3798, 1.0
    %v3800 = vrcp.pop %v3799
    %v3801 = vmul.f32 %v3799, %v3800
    %v3802 = vsub.f32 1.0, %v3801
    %v3803 = vmul.f32 %v3800, %v3802
    %v3804 = vadd.f32 %v3800, %v3803
    %vm3805 = vweird.f32 %v3799
    %vm3806 = vweird.f32 %v3800
    %vm3807 = vmor %vm3805, %vm3806
    %v3808 = vsel %vm3807, %v3800, %v3804
    %v3809 = vand.u32 2147483647, %v3799
    %vm3810 = vcmp.eq.f32.partialorder %v3809, 8.507059e+37
    %v3811 = vand.u32 %v3799, 2147483648
    %v3812 = vor.u32 1.1754944e-38, %v3811
    %v3813 = vsel %vm3810, %v3812, %v3808
    %v3814 = vmul.f32 1.0, %v3813
    %v3815 = vxor.u32 %v3741, 2147483648
    %v3816 = vmul.f32 %v3815, 1.442695
    %v3817 = vpow.pop %v3816
    %v3818 = vadd.f32 %v3817, 1.0
    %v3819 = vrcp.pop %v3818
    %v3820 = vmul.f32 %v3818, %v3819
    %v3821 = vsub.f32 1.0, %v3820
    %v3822 = vmul.f32 %v3819, %v3821
    %v3823 = vadd.f32 %v3819, %v3822
    %vm3824 = vweird.f32 %v3818
    %vm3825 = vweird.f32 %v3819
    %vm3826 = vmor %vm3824, %vm3825
    %v3827 = vsel %vm3826, %v3819, %v3823
    %v3828 = vand.u32 2147483647, %v3818
    %vm3829 = vcmp.eq.f32.partialorder %v3828, 8.507059e+37
    %v3830 = vand.u32 %v3818, 2147483648
    %v3831 = vor.u32 1.1754944e-38, %v3830
    %v3832 = vsel %vm3829, %v3831, %v3827
    %v3833 = vmul.f32 1.0, %v3832
    %v3834 = vmul.f32 %v3814, %v3793
    %v3835 = vadd.f32 %v3767, %v3834
    %v3836 = vtanh.pop %v3835
    %v3837 = vsub.f32 1.0, %v3833
    %v3838 = vmul.f32 %v3837, %v3836
    %v3839 = vmul.f32 %v3833, %v3201
    %v3840 = vadd.f32 %v3838, %v3839
    %v3841 = vpack.c.bf16 %v3840, %v3840
    %v3842 = vld [vmem:[#allocation10] sm:$0xf]
    %v3843 = vld [vmem:[#allocation10 + $0x4] sm:$0xf]
    %v3844 = vld [vmem:[#allocation10 + $0x8] sm:$0xf]
    %v3845 = vld [vmem:[#allocation10 + $0xc] sm:$0xf]
    %v3846 = vld [vmem:[#allocation10 + $0x10] sm:$0xf]
    %v3847 = vld [vmem:[#allocation10 + $0x14] sm:$0xf]
    %v3848 = vld [vmem:[#allocation10 + $0x18] sm:$0xf]
    %v3849 = vld [vmem:[#allocation10 + $0x1c] sm:$0xf]
    %v3850 = vld [vmem:[#allocation10 + $0x20] sm:$0xf]
    %v3851 = vld [vmem:[#allocation10 + $0x24] sm:$0xf]
    %v3852 = vld [vmem:[#allocation10 + $0x28] sm:$0xf]
    %v3853 = vld [vmem:[#allocation10 + $0x2c] sm:$0xf]
    %v3854 = vld [vmem:[#allocation10 + $0x30] sm:$0xf]
    %v3855 = vld [vmem:[#allocation10 + $0x34] sm:$0xf]
    %v3856 = vld [vmem:[#allocation10 + $0x38] sm:$0xf]
    %v3857 = vld [vmem:[#allocation10 + $0x3c] sm:$0xf]
    %v3858 = vld [vmem:[%s5] sm:$0x1]
    %v3860 = vperm.slane %v3858, 0
    %v3878 = vunpack.c.l.b16 %v3842
    %v3879 = vunpack.c.l.b16 %v3843
    %v3880 = vunpack.c.l.b16 %v3844
    %v3881 = vunpack.c.l.b16 %v3845
    %v3882 = vunpack.c.l.b16 %v3846
    %v3883 = vunpack.c.l.b16 %v3847
    %v3884 = vunpack.c.l.b16 %v3848
    %v3885 = vunpack.c.l.b16 %v3849
    %v3886 = vunpack.c.l.b16 %v3850
    %v3887 = vunpack.c.l.b16 %v3851
    %v3888 = vunpack.c.l.b16 %v3852
    %v3889 = vunpack.c.l.b16 %v3853
    %v3890 = vunpack.c.l.b16 %v3854
    %v3891 = vunpack.c.l.b16 %v3855
    %v3892 = vunpack.c.l.b16 %v3856
    %v3893 = vunpack.c.l.b16 %v3857
    %v3894 = vpack.c.b16 %v3879, %v3878
    %v3895 = vpack.c.b16 %v3881, %v3880
    %v3896 = vpack.c.b16 %v3883, %v3882
    %v3897 = vpack.c.b16 %v3885, %v3884
    %v3898 = vpack.c.b16 %v3887, %v3886
    %v3899 = vpack.c.b16 %v3889, %v3888
    %v3900 = vpack.c.b16 %v3891, %v3890
    %v3901 = vpack.c.b16 %v3893, %v3892
    %3910 = vmatpush.bf16.msra.mxu0 %v3901
    %3911 = vmatpush.bf16.msra.mxu0 %v3900
    %3912 = vmatpush.bf16.msra.mxu0 %v3899
    %3913 = vmatpush.bf16.msra.mxu0 %v3898
    %3914 = vmatpush.bf16.msra.mxu0 %v3897
    %3915 = vmatpush.bf16.msra.mxu0 %v3896
    %3916 = vmatpush.bf16.msra.mxu0 %v3895
    %3917 = vmatpush.bf16.msra.mxu0 %v3894
    %3918 = vmatmul.bf16.gmra.mxu0 %v3841
    %v3919 = vpop.f32.mrf.mxu0
    %v3920 = vadd.f32 %v3860, %v3919
    %v3921 = vpop.f32.mrf.mxu0
    %3922 = vdwg.mxu0
    %3923 = vmax.xlane.f32.xlu0 %v3920
    %v3924 = vpop.xlane.xlu0 %3923
    %v3925 = vsub.f32 %v3920, %v3924
    %v3926 = vmul.f32 %v3925, 1.442695
    %v3927 = vpow.pop %v3926
    %3928 = vadd.xlane.f32.xlu0 %v3927
    %v3929 = vpop.xlane.xlu0 %3928
    %v3930 = vlog2.pop %v3929
    %v3931 = vmul.f32 %v3930, 0.6931472
    %v3932 = vsub.f32 %v3925, %v3931
    %s3933 = scalar_lea.vmem [#allocation11], 40
    %3934 = vst [vmem:[%s3933] sm:$0xff] %v3932
    %s3935 = scalar_lea.vmem [#allocation2], 24
    %v3936 = vld [vmem:[%s3935] sm:$0xf]
    %v3937 = vld [vmem:[#allocation7] sm:$0xff]
    %v3938 = vld [vmem:[#allocation7 + $0x8] sm:$0xff]
    %v3939 = vld [vmem:[#allocation7 + $0x10] sm:$0xff]
    %v3940 = vld [vmem:[#allocation7 + $0x18] sm:$0xff]
    %v3941 = vld [vmem:[#allocation7 + $0x20] sm:$0xff]
    %v3942 = vld [vmem:[#allocation7 + $0x28] sm:$0xff]
    %v3943 = vld [vmem:[#allocation7 + $0x30] sm:$0xff]
    %v3944 = vld [vmem:[#allocation7 + $0x38] sm:$0xff]
    %v3945 = vld [vmem:[#allocation7 + $0x40] sm:$0xff]
    %v3946 = vld [vmem:[#allocation7 + $0x48] sm:$0xff]
    %v3947 = vld [vmem:[#allocation7 + $0x50] sm:$0xff]
    %v3948 = vld [vmem:[#allocation7 + $0x58] sm:$0xff]
    %v3949 = vld [vmem:[#allocation7 + $0x60] sm:$0xff]
    %v3950 = vld [vmem:[#allocation7 + $0x68] sm:$0xff]
    %v3951 = vld [vmem:[#allocation7 + $0x70] sm:$0xff]
    %v3952 = vld [vmem:[#allocation7 + $0x78] sm:$0xff]
    %v3953 = vld [vmem:[#allocation7 + $0x80] sm:$0xff]
    %v3954 = vld [vmem:[#allocation7 + $0x88] sm:$0xff]
    %v3955 = vld [vmem:[#allocation7 + $0x90] sm:$0xff]
    %v3956 = vld [vmem:[#allocation7 + $0x98] sm:$0xff]
    %v3957 = vld [vmem:[#allocation7 + $0xa0] sm:$0xff]
    %v3958 = vld [vmem:[#allocation7 + $0xa8] sm:$0xff]
    %v3959 = vld [vmem:[#allocation7 + $0xb0] sm:$0xff]
    %v3960 = vld [vmem:[#allocation7 + $0xb8] sm:$0xff]
    %v3961 = vld [vmem:[#allocation7 + $0xc0] sm:$0xff]
    %v3962 = vld [vmem:[#allocation7 + $0xc8] sm:$0xff]
    %v3963 = vld [vmem:[#allocation7 + $0xd0] sm:$0xff]
    %v3964 = vld [vmem:[#allocation7 + $0xd8] sm:$0xff]
    %v3965 = vld [vmem:[#allocation7 + $0xe0] sm:$0xff]
    %v3966 = vld [vmem:[#allocation7 + $0xe8] sm:$0xff]
    %v3967 = vld [vmem:[#allocation7 + $0xf0] sm:$0xff]
    %v3968 = vld [vmem:[#allocation7 + $0xf8] sm:$0xff]
    %v3969 = vld [vmem:[#allocation7 + $0x100] sm:$0xff]
    %v3970 = vld [vmem:[#allocation7 + $0x108] sm:$0xff]
    %v3971 = vld [vmem:[#allocation7 + $0x110] sm:$0xff]
    %v3972 = vld [vmem:[#allocation7 + $0x118] sm:$0xff]
    %v3973 = vld [vmem:[#allocation7 + $0x120] sm:$0xff]
    %v3974 = vld [vmem:[#allocation7 + $0x128] sm:$0xff]
    %v3975 = vld [vmem:[#allocation7 + $0x130] sm:$0xff]
    %v3976 = vld [vmem:[#allocation7 + $0x138] sm:$0xff]
    %v3977 = vld [vmem:[#allocation7 + $0x140] sm:$0xff]
    %v3978 = vld [vmem:[#allocation7 + $0x148] sm:$0xff]
    %v3979 = vld [vmem:[#allocation7 + $0x150] sm:$0xff]
    %v3980 = vld [vmem:[#allocation7 + $0x158] sm:$0xff]
    %v3981 = vld [vmem:[#allocation7 + $0x160] sm:$0xff]
    %v3982 = vld [vmem:[#allocation7 + $0x168] sm:$0xff]
    %v3983 = vld [vmem:[#allocation7 + $0x170] sm:$0xff]
    %v3984 = vld [vmem:[#allocation7 + $0x178] sm:$0xff]
    %v3985 = vld [vmem:[#allocation7 + $0x180] sm:$0xff]
    %v3986 = vld [vmem:[#allocation7 + $0x188] sm:$0xff]
    %v3987 = vld [vmem:[#allocation7 + $0x190] sm:$0xff]
    %v3988 = vld [vmem:[#allocation7 + $0x198] sm:$0xff]
    %v3989 = vld [vmem:[#allocation7 + $0x1a0] sm:$0xff]
    %v3990 = vld [vmem:[#allocation7 + $0x1a8] sm:$0xff]
    %v3991 = vld [vmem:[#allocation7 + $0x1b0] sm:$0xff]
    %v3992 = vld [vmem:[#allocation7 + $0x1b8] sm:$0xff]
    %v3993 = vld [vmem:[#allocation7 + $0x1c0] sm:$0xff]
    %v3994 = vld [vmem:[#allocation7 + $0x1c8] sm:$0xff]
    %v3995 = vld [vmem:[#allocation7 + $0x1d0] sm:$0xff]
    %v3996 = vld [vmem:[#allocation7 + $0x1d8] sm:$0xff]
    %v3997 = vld [vmem:[#allocation7 + $0x1e0] sm:$0xff]
    %v3998 = vld [vmem:[#allocation7 + $0x1e8] sm:$0xff]
    %v3999 = vld [vmem:[#allocation7 + $0x1f0] sm:$0xff]
    %v4000 = vld [vmem:[#allocation7 + $0x1f8] sm:$0xff]
    %v4001 = vld [vmem:[#allocation8] sm:$0xf]
    %v4003 = vperm.slane %v4001, 0
    %v4004 = vperm.slane %v4001, 1
    %v4005 = vperm.slane %v4001, 2
    %v4006 = vperm.slane %v4001, 3
    %v4075 = vunpack.c.l.b16 %v3937
    %v4076 = vunpack.c.h.b16 %v3937
    %v4077 = vunpack.c.l.b16 %v3938
    %v4078 = vunpack.c.h.b16 %v3938
    %v4079 = vunpack.c.l.b16 %v3939
    %v4080 = vunpack.c.h.b16 %v3939
    %v4081 = vunpack.c.l.b16 %v3940
    %v4082 = vunpack.c.h.b16 %v3940
    %v4083 = vunpack.c.l.b16 %v3941
    %v4084 = vunpack.c.h.b16 %v3941
    %v4085 = vunpack.c.l.b16 %v3942
    %v4086 = vunpack.c.h.b16 %v3942
    %v4087 = vunpack.c.l.b16 %v3943
    %v4088 = vunpack.c.h.b16 %v3943
    %v4089 = vunpack.c.l.b16 %v3944
    %v4090 = vunpack.c.h.b16 %v3944
    %v4091 = vunpack.c.l.b16 %v3945
    %v4092 = vunpack.c.h.b16 %v3945
    %v4093 = vunpack.c.l.b16 %v3946
    %v4094 = vunpack.c.h.b16 %v3946
    %v4095 = vunpack.c.l.b16 %v3947
    %v4096 = vunpack.c.h.b16 %v3947
    %v4097 = vunpack.c.l.b16 %v3948
    %v4098 = vunpack.c.h.b16 %v3948
    %v4099 = vunpack.c.l.b16 %v3949
    %v4100 = vunpack.c.h.b16 %v3949
    %v4101 = vunpack.c.l.b16 %v3950
    %v4102 = vunpack.c.h.b16 %v3950
    %v4103 = vunpack.c.l.b16 %v3951
    %v4104 = vunpack.c.h.b16 %v3951
    %v4105 = vunpack.c.l.b16 %v3952
    %v4106 = vunpack.c.h.b16 %v3952
    %v4107 = vunpack.c.l.b16 %v3953
    %v4108 = vunpack.c.h.b16 %v3953
    %v4109 = vunpack.c.l.b16 %v3954
    %v4110 = vunpack.c.h.b16 %v3954
    %v4111 = vunpack.c.l.b16 %v3955
    %v4112 = vunpack.c.h.b16 %v3955
    %v4113 = vunpack.c.l.b16 %v3956
    %v4114 = vunpack.c.h.b16 %v3956
    %v4115 = vunpack.c.l.b16 %v3957
    %v4116 = vunpack.c.h.b16 %v3957
    %v4117 = vunpack.c.l.b16 %v3958
    %v4118 = vunpack.c.h.b16 %v3958
    %v4119 = vunpack.c.l.b16 %v3959
    %v4120 = vunpack.c.h.b16 %v3959
    %v4121 = vunpack.c.l.b16 %v3960
    %v4122 = vunpack.c.h.b16 %v3960
    %v4123 = vunpack.c.l.b16 %v3961
    %v4124 = vunpack.c.h.b16 %v3961
    %v4125 = vunpack.c.l.b16 %v3962
    %v4126 = vunpack.c.h.b16 %v3962
    %v4127 = vunpack.c.l.b16 %v3963
    %v4128 = vunpack.c.h.b16 %v3963
    %v4129 = vunpack.c.l.b16 %v3964
    %v4130 = vunpack.c.h.b16 %v3964
    %v4131 = vunpack.c.l.b16 %v3965
    %v4132 = vunpack.c.h.b16 %v3965
    %v4133 = vunpack.c.l.b16 %v3966
    %v4134 = vunpack.c.h.b16 %v3966
    %v4135 = vunpack.c.l.b16 %v3967
    %v4136 = vunpack.c.h.b16 %v3967
    %v4137 = vunpack.c.l.b16 %v3968
    %v4138 = vunpack.c.h.b16 %v3968
    %v4139 = vunpack.c.l.b16 %v3969
    %v4140 = vunpack.c.h.b16 %v3969
    %v4141 = vunpack.c.l.b16 %v3970
    %v4142 = vunpack.c.h.b16 %v3970
    %v4143 = vunpack.c.l.b16 %v3971
    %v4144 = vunpack.c.h.b16 %v3971
    %v4145 = vunpack.c.l.b16 %v3972
    %v4146 = vunpack.c.h.b16 %v3972
    %v4147 = vunpack.c.l.b16 %v3973
    %v4148 = vunpack.c.h.b16 %v3973
    %v4149 = vunpack.c.l.b16 %v3974
    %v4150 = vunpack.c.h.b16 %v3974
    %v4151 = vunpack.c.l.b16 %v3975
    %v4152 = vunpack.c.h.b16 %v3975
    %v4153 = vunpack.c.l.b16 %v3976
    %v4154 = vunpack.c.h.b16 %v3976
    %v4155 = vunpack.c.l.b16 %v3977
    %v4156 = vunpack.c.h.b16 %v3977
    %v4157 = vunpack.c.l.b16 %v3978
    %v4158 = vunpack.c.h.b16 %v3978
    %v4159 = vunpack.c.l.b16 %v3979
    %v4160 = vunpack.c.h.b16 %v3979
    %v4161 = vunpack.c.l.b16 %v3980
    %v4162 = vunpack.c.h.b16 %v3980
    %v4163 = vunpack.c.l.b16 %v3981
    %v4164 = vunpack.c.h.b16 %v3981
    %v4165 = vunpack.c.l.b16 %v3982
    %v4166 = vunpack.c.h.b16 %v3982
    %v4167 = vunpack.c.l.b16 %v3983
    %v4168 = vunpack.c.h.b16 %v3983
    %v4169 = vunpack.c.l.b16 %v3984
    %v4170 = vunpack.c.h.b16 %v3984
    %v4171 = vunpack.c.l.b16 %v3985
    %v4172 = vunpack.c.h.b16 %v3985
    %v4173 = vunpack.c.l.b16 %v3986
    %v4174 = vunpack.c.h.b16 %v3986
    %v4175 = vunpack.c.l.b16 %v3987
    %v4176 = vunpack.c.h.b16 %v3987
    %v4177 = vunpack.c.l.b16 %v3988
    %v4178 = vunpack.c.h.b16 %v3988
    %v4179 = vunpack.c.l.b16 %v3989
    %v4180 = vunpack.c.h.b16 %v3989
    %v4181 = vunpack.c.l.b16 %v3990
    %v4182 = vunpack.c.h.b16 %v3990
    %v4183 = vunpack.c.l.b16 %v3991
    %v4184 = vunpack.c.h.b16 %v3991
    %v4185 = vunpack.c.l.b16 %v3992
    %v4186 = vunpack.c.h.b16 %v3992
    %v4187 = vunpack.c.l.b16 %v3993
    %v4188 = vunpack.c.h.b16 %v3993
    %v4189 = vunpack.c.l.b16 %v3994
    %v4190 = vunpack.c.h.b16 %v3994
    %v4191 = vunpack.c.l.b16 %v3995
    %v4192 = vunpack.c.h.b16 %v3995
    %v4193 = vunpack.c.l.b16 %v3996
    %v4194 = vunpack.c.h.b16 %v3996
    %v4195 = vunpack.c.l.b16 %v3997
    %v4196 = vunpack.c.h.b16 %v3997
    %v4197 = vunpack.c.l.b16 %v3998
    %v4198 = vunpack.c.h.b16 %v3998
    %v4199 = vunpack.c.l.b16 %v3999
    %v4200 = vunpack.c.h.b16 %v3999
    %v4201 = vunpack.c.l.b16 %v4000
    %v4202 = vunpack.c.h.b16 %v4000
    %v4203 = vpack.c.b16 %v4079, %v4075
    %v4204 = vpack.c.b16 %v4080, %v4076
    %v4205 = vpack.c.b16 %v4081, %v4077
    %v4206 = vpack.c.b16 %v4082, %v4078
    %v4207 = vpack.c.b16 %v4087, %v4083
    %v4208 = vpack.c.b16 %v4088, %v4084
    %v4209 = vpack.c.b16 %v4089, %v4085
    %v4210 = vpack.c.b16 %v4090, %v4086
    %v4211 = vpack.c.b16 %v4095, %v4091
    %v4212 = vpack.c.b16 %v4096, %v4092
    %v4213 = vpack.c.b16 %v4097, %v4093
    %v4214 = vpack.c.b16 %v4098, %v4094
    %v4215 = vpack.c.b16 %v4103, %v4099
    %v4216 = vpack.c.b16 %v4104, %v4100
    %v4217 = vpack.c.b16 %v4105, %v4101
    %v4218 = vpack.c.b16 %v4106, %v4102
    %v4219 = vpack.c.b16 %v4111, %v4107
    %v4220 = vpack.c.b16 %v4112, %v4108
    %v4221 = vpack.c.b16 %v4113, %v4109
    %v4222 = vpack.c.b16 %v4114, %v4110
    %v4223 = vpack.c.b16 %v4119, %v4115
    %v4224 = vpack.c.b16 %v4120, %v4116
    %v4225 = vpack.c.b16 %v4121, %v4117
    %v4226 = vpack.c.b16 %v4122, %v4118
    %v4227 = vpack.c.b16 %v4127, %v4123
    %v4228 = vpack.c.b16 %v4128, %v4124
    %v4229 = vpack.c.b16 %v4129, %v4125
    %v4230 = vpack.c.b16 %v4130, %v4126
    %v4231 = vpack.c.b16 %v4135, %v4131
    %v4232 = vpack.c.b16 %v4136, %v4132
    %v4233 = vpack.c.b16 %v4137, %v4133
    %v4234 = vpack.c.b16 %v4138, %v4134
    %v4235 = vpack.c.b16 %v4143, %v4139
    %v4236 = vpack.c.b16 %v4144, %v4140
    %v4237 = vpack.c.b16 %v4145, %v4141
    %v4238 = vpack.c.b16 %v4146, %v4142
    %v4239 = vpack.c.b16 %v4151, %v4147
    %v4240 = vpack.c.b16 %v4152, %v4148
    %v4241 = vpack.c.b16 %v4153, %v4149
    %v4242 = vpack.c.b16 %v4154, %v4150
    %v4243 = vpack.c.b16 %v4159, %v4155
    %v4244 = vpack.c.b16 %v4160, %v4156
    %v4245 = vpack.c.b16 %v4161, %v4157
    %v4246 = vpack.c.b16 %v4162, %v4158
    %v4247 = vpack.c.b16 %v4167, %v4163
    %v4248 = vpack.c.b16 %v4168, %v4164
    %v4249 = vpack.c.b16 %v4169, %v4165
    %v4250 = vpack.c.b16 %v4170, %v4166
    %v4251 = vpack.c.b16 %v4175, %v4171
    %v4252 = vpack.c.b16 %v4176, %v4172
    %v4253 = vpack.c.b16 %v4177, %v4173
    %v4254 = vpack.c.b16 %v4178, %v4174
    %v4255 = vpack.c.b16 %v4183, %v4179
    %v4256 = vpack.c.b16 %v4184, %v4180
    %v4257 = vpack.c.b16 %v4185, %v4181
    %v4258 = vpack.c.b16 %v4186, %v4182
    %v4259 = vpack.c.b16 %v4191, %v4187
    %v4260 = vpack.c.b16 %v4192, %v4188
    %v4261 = vpack.c.b16 %v4193, %v4189
    %v4262 = vpack.c.b16 %v4194, %v4190
    %v4263 = vpack.c.b16 %v4199, %v4195
    %v4264 = vpack.c.b16 %v4200, %v4196
    %v4265 = vpack.c.b16 %v4201, %v4197
    %v4266 = vpack.c.b16 %v4202, %v4198
    %4331 = vmatpush.bf16.msra.mxu0 %v4231
    %4332 = vmatpush.bf16.msra.mxu0 %v4227
    %4333 = vmatpush.bf16.msra.mxu0 %v4223
    %4334 = vmatpush.bf16.msra.mxu0 %v4219
    %4335 = vmatpush.bf16.msra.mxu0 %v4215
    %4336 = vmatpush.bf16.msra.mxu0 %v4211
    %4337 = vmatpush.bf16.msra.mxu0 %v4207
    %4338 = vmatpush.bf16.msra.mxu0 %v4203
    %4339 = vmatmul.bf16.gmra.mxu0 %v3936
    %v4340 = vpop.f32.mrf.mxu0
    %v4341 = vadd.f32 %v4003, %v4340
    %v4342 = vpop.f32.mrf.mxu0
    %4343 = vdwg.mxu0
    %4344 = vmatpush.bf16.msra.mxu0 %v4263
    %4345 = vmatpush.bf16.msra.mxu0 %v4259
    %4346 = vmatpush.bf16.msra.mxu0 %v4255
    %4347 = vmatpush.bf16.msra.mxu0 %v4251
    %4348 = vmatpush.bf16.msra.mxu0 %v4247
    %4349 = vmatpush.bf16.msra.mxu0 %v4243
    %4350 = vmatpush.bf16.msra.mxu0 %v4239
    %4351 = vmatpush.bf16.msra.mxu0 %v4235
    %4352 = vmatmul.bf16.gmra.mxu0 %v3841
    %v4353 = vpop.f32.mrf.mxu0
    %v4354 = vadd.f32 %v4341, %v4353
    %v4355 = vpop.f32.mrf.mxu0
    %4356 = vdwg.mxu0
    %4357 = vmatpush.bf16.msra.mxu0 %v4232
    %4358 = vmatpush.bf16.msra.mxu0 %v4228
    %4359 = vmatpush.bf16.msra.mxu0 %v4224
    %4360 = vmatpush.bf16.msra.mxu0 %v4220
    %4361 = vmatpush.bf16.msra.mxu0 %v4216
    %4362 = vmatpush.bf16.msra.mxu0 %v4212
    %4363 = vmatpush.bf16.msra.mxu0 %v4208
    %4364 = vmatpush.bf16.msra.mxu0 %v4204
    %4365 = vmatmul.bf16.gmra.mxu0 %v3936
    %v4366 = vpop.f32.mrf.mxu0
    %v4367 = vadd.f32 %v4004, %v4366
    %v4368 = vpop.f32.mrf.mxu0
    %4369 = vdwg.mxu0
    %4370 = vmatpush.bf16.msra.mxu0 %v4264
    %4371 = vmatpush.bf16.msra.mxu0 %v4260
    %4372 = vmatpush.bf16.msra.mxu0 %v4256
    %4373 = vmatpush.bf16.msra.mxu0 %v4252
    %4374 = vmatpush.bf16.msra.mxu0 %v4248
    %4375 = vmatpush.bf16.msra.mxu0 %v4244
    %4376 = vmatpush.bf16.msra.mxu0 %v4240
    %4377 = vmatpush.bf16.msra.mxu0 %v4236
    %4378 = vmatmul.bf16.gmra.mxu0 %v3841
    %v4379 = vpop.f32.mrf.mxu0
    %v4380 = vadd.f32 %v4367, %v4379
    %v4381 = vpop.f32.mrf.mxu0
    %4382 = vdwg.mxu0
    %4383 = vmatpush.bf16.msra.mxu0 %v4233
    %4384 = vmatpush.bf16.msra.mxu0 %v4229
    %4385 = vmatpush.bf16.msra.mxu0 %v4225
    %4386 = vmatpush.bf16.msra.mxu0 %v4221
    %4387 = vmatpush.bf16.msra.mxu0 %v4217
    %4388 = vmatpush.bf16.msra.mxu0 %v4213
    %4389 = vmatpush.bf16.msra.mxu0 %v4209
    %4390 = vmatpush.bf16.msra.mxu0 %v4205
    %4391 = vmatmul.bf16.gmra.mxu0 %v3936
    %v4392 = vpop.f32.mrf.mxu0
    %v4393 = vadd.f32 %v4005, %v4392
    %v4394 = vpop.f32.mrf.mxu0
    %4395 = vdwg.mxu0
    %4396 = vmatpush.bf16.msra.mxu0 %v4265
    %4397 = vmatpush.bf16.msra.mxu0 %v4261
    %4398 = vmatpush.bf16.msra.mxu0 %v4257
    %4399 = vmatpush.bf16.msra.mxu0 %v4253
    %4400 = vmatpush.bf16.msra.mxu0 %v4249
    %4401 = vmatpush.bf16.msra.mxu0 %v4245
    %4402 = vmatpush.bf16.msra.mxu0 %v4241
    %4403 = vmatpush.bf16.msra.mxu0 %v4237
    %4404 = vmatmul.bf16.gmra.mxu0 %v3841
    %v4405 = vpop.f32.mrf.mxu0
    %v4406 = vadd.f32 %v4393, %v4405
    %v4407 = vpop.f32.mrf.mxu0
    %4408 = vdwg.mxu0
    %4409 = vmatpush.bf16.msra.mxu0 %v4234
    %4410 = vmatpush.bf16.msra.mxu0 %v4230
    %4411 = vmatpush.bf16.msra.mxu0 %v4226
    %4412 = vmatpush.bf16.msra.mxu0 %v4222
    %4413 = vmatpush.bf16.msra.mxu0 %v4218
    %4414 = vmatpush.bf16.msra.mxu0 %v4214
    %4415 = vmatpush.bf16.msra.mxu0 %v4210
    %4416 = vmatpush.bf16.msra.mxu0 %v4206
    %4417 = vmatmul.bf16.gmra.mxu0 %v3936
    %v4418 = vpop.f32.mrf.mxu0
    %v4419 = vadd.f32 %v4006, %v4418
    %v4420 = vpop.f32.mrf.mxu0
    %4421 = vdwg.mxu0
    %4422 = vmatpush.bf16.msra.mxu0 %v4266
    %4423 = vmatpush.bf16.msra.mxu0 %v4262
    %4424 = vmatpush.bf16.msra.mxu0 %v4258
    %4425 = vmatpush.bf16.msra.mxu0 %v4254
    %4426 = vmatpush.bf16.msra.mxu0 %v4250
    %4427 = vmatpush.bf16.msra.mxu0 %v4246
    %4428 = vmatpush.bf16.msra.mxu0 %v4242
    %4429 = vmatpush.bf16.msra.mxu0 %v4238
    %4430 = vmatmul.bf16.gmra.mxu0 %v3841
    %v4431 = vpop.f32.mrf.mxu0
    %v4432 = vadd.f32 %v4419, %v4431
    %v4433 = vpop.f32.mrf.mxu0
    %4434 = vdwg.mxu0
    %v4435 = vxor.u32 %v4354, 2147483648
    %v4436 = vmul.f32 %v4435, 1.442695
    %v4437 = vpow.pop %v4436
    %v4438 = vadd.f32 %v4437, 1.0
    %v4439 = vrcp.pop %v4438
    %v4440 = vmul.f32 %v4438, %v4439
    %v4441 = vsub.f32 1.0, %v4440
    %v4442 = vmul.f32 %v4439, %v4441
    %v4443 = vadd.f32 %v4439, %v4442
    %vm4444 = vweird.f32 %v4438
    %vm4445 = vweird.f32 %v4439
    %vm4446 = vmor %vm4444, %vm4445
    %v4447 = vsel %vm4446, %v4439, %v4443
    %v4448 = vand.u32 2147483647, %v4438
    %vm4449 = vcmp.eq.f32.partialorder %v4448, 8.507059e+37
    %v4450 = vand.u32 %v4438, 2147483648
    %v4451 = vor.u32 1.1754944e-38, %v4450
    %v4452 = vsel %vm4449, %v4451, %v4447
    %v4453 = vmul.f32 1.0, %v4452
    %v4454 = vxor.u32 %v4380, 2147483648
    %v4455 = vmul.f32 %v4454, 1.442695
    %v4456 = vpow.pop %v4455
    %v4457 = vadd.f32 %v4456, 1.0
    %v4458 = vrcp.pop %v4457
    %v4459 = vmul.f32 %v4457, %v4458
    %v4460 = vsub.f32 1.0, %v4459
    %v4461 = vmul.f32 %v4458, %v4460
    %v4462 = vadd.f32 %v4458, %v4461
    %vm4463 = vweird.f32 %v4457
    %vm4464 = vweird.f32 %v4458
    %vm4465 = vmor %vm4463, %vm4464
    %v4466 = vsel %vm4465, %v4458, %v4462
    %v4467 = vand.u32 2147483647, %v4457
    %vm4468 = vcmp.eq.f32.partialorder %v4467, 8.507059e+37
    %v4469 = vand.u32 %v4457, 2147483648
    %v4470 = vor.u32 1.1754944e-38, %v4469
    %v4471 = vsel %vm4468, %v4470, %v4466
    %v4472 = vmul.f32 1.0, %v4471
    %v4473 = vmul.f32 %v4453, %v4432
    %v4474 = vadd.f32 %v4406, %v4473
    %v4475 = vtanh.pop %v4474
    %v4476 = vsub.f32 1.0, %v4472
    %v4477 = vmul.f32 %v4476, %v4475
    %v4478 = vmul.f32 %v4472, %v3840
    %v4479 = vadd.f32 %v4477, %v4478
    %v4480 = vpack.c.bf16 %v4479, %v4479
    %v4481 = vld [vmem:[#allocation10] sm:$0xf]
    %v4482 = vld [vmem:[#allocation10 + $0x4] sm:$0xf]
    %v4483 = vld [vmem:[#allocation10 + $0x8] sm:$0xf]
    %v4484 = vld [vmem:[#allocation10 + $0xc] sm:$0xf]
    %v4485 = vld [vmem:[#allocation10 + $0x10] sm:$0xf]
    %v4486 = vld [vmem:[#allocation10 + $0x14] sm:$0xf]
    %v4487 = vld [vmem:[#allocation10 + $0x18] sm:$0xf]
    %v4488 = vld [vmem:[#allocation10 + $0x1c] sm:$0xf]
    %v4489 = vld [vmem:[#allocation10 + $0x20] sm:$0xf]
    %v4490 = vld [vmem:[#allocation10 + $0x24] sm:$0xf]
    %v4491 = vld [vmem:[#allocation10 + $0x28] sm:$0xf]
    %v4492 = vld [vmem:[#allocation10 + $0x2c] sm:$0xf]
    %v4493 = vld [vmem:[#allocation10 + $0x30] sm:$0xf]
    %v4494 = vld [vmem:[#allocation10 + $0x34] sm:$0xf]
    %v4495 = vld [vmem:[#allocation10 + $0x38] sm:$0xf]
    %v4496 = vld [vmem:[#allocation10 + $0x3c] sm:$0xf]
    %v4497 = vld [vmem:[%s5] sm:$0x1]
    %v4499 = vperm.slane %v4497, 0
    %v4517 = vunpack.c.l.b16 %v4481
    %v4518 = vunpack.c.l.b16 %v4482
    %v4519 = vunpack.c.l.b16 %v4483
    %v4520 = vunpack.c.l.b16 %v4484
    %v4521 = vunpack.c.l.b16 %v4485
    %v4522 = vunpack.c.l.b16 %v4486
    %v4523 = vunpack.c.l.b16 %v4487
    %v4524 = vunpack.c.l.b16 %v4488
    %v4525 = vunpack.c.l.b16 %v4489
    %v4526 = vunpack.c.l.b16 %v4490
    %v4527 = vunpack.c.l.b16 %v4491
    %v4528 = vunpack.c.l.b16 %v4492
    %v4529 = vunpack.c.l.b16 %v4493
    %v4530 = vunpack.c.l.b16 %v4494
    %v4531 = vunpack.c.l.b16 %v4495
    %v4532 = vunpack.c.l.b16 %v4496
    %v4533 = vpack.c.b16 %v4518, %v4517
    %v4534 = vpack.c.b16 %v4520, %v4519
    %v4535 = vpack.c.b16 %v4522, %v4521
    %v4536 = vpack.c.b16 %v4524, %v4523
    %v4537 = vpack.c.b16 %v4526, %v4525
    %v4538 = vpack.c.b16 %v4528, %v4527
    %v4539 = vpack.c.b16 %v4530, %v4529
    %v4540 = vpack.c.b16 %v4532, %v4531
    %4549 = vmatpush.bf16.msra.mxu0 %v4540
    %4550 = vmatpush.bf16.msra.mxu0 %v4539
    %4551 = vmatpush.bf16.msra.mxu0 %v4538
    %4552 = vmatpush.bf16.msra.mxu0 %v4537
    %4553 = vmatpush.bf16.msra.mxu0 %v4536
    %4554 = vmatpush.bf16.msra.mxu0 %v4535
    %4555 = vmatpush.bf16.msra.mxu0 %v4534
    %4556 = vmatpush.bf16.msra.mxu0 %v4533
    %4557 = vmatmul.bf16.gmra.mxu0 %v4480
    %v4558 = vpop.f32.mrf.mxu0
    %v4559 = vadd.f32 %v4499, %v4558
    %v4560 = vpop.f32.mrf.mxu0
    %4561 = vdwg.mxu0
    %4562 = vmax.xlane.f32.xlu0 %v4559
    %v4563 = vpop.xlane.xlu0 %4562
    %v4564 = vsub.f32 %v4559, %v4563
    %v4565 = vmul.f32 %v4564, 1.442695
    %v4566 = vpow.pop %v4565
    %4567 = vadd.xlane.f32.xlu0 %v4566
    %v4568 = vpop.xlane.xlu0 %4567
    %v4569 = vlog2.pop %v4568
    %v4570 = vmul.f32 %v4569, 0.6931472
    %v4571 = vsub.f32 %v4564, %v4570
    %s4572 = scalar_lea.vmem [#allocation11], 48
    %4573 = vst [vmem:[%s4572] sm:$0xff] %v4571
    %s4574 = scalar_lea.vmem [#allocation2], 28
    %v4575 = vld [vmem:[%s4574] sm:$0xf]
    %v4576 = vld [vmem:[#allocation7] sm:$0xff]
    %v4577 = vld [vmem:[#allocation7 + $0x8] sm:$0xff]
    %v4578 = vld [vmem:[#allocation7 + $0x10] sm:$0xff]
    %v4579 = vld [vmem:[#allocation7 + $0x18] sm:$0xff]
    %v4580 = vld [vmem:[#allocation7 + $0x20] sm:$0xff]
    %v4581 = vld [vmem:[#allocation7 + $0x28] sm:$0xff]
    %v4582 = vld [vmem:[#allocation7 + $0x30] sm:$0xff]
    %v4583 = vld [vmem:[#allocation7 + $0x38] sm:$0xff]
    %v4584 = vld [vmem:[#allocation7 + $0x40] sm:$0xff]
    %v4585 = vld [vmem:[#allocation7 + $0x48] sm:$0xff]
    %v4586 = vld [vmem:[#allocation7 + $0x50] sm:$0xff]
    %v4587 = vld [vmem:[#allocation7 + $0x58] sm:$0xff]
    %v4588 = vld [vmem:[#allocation7 + $0x60] sm:$0xff]
    %v4589 = vld [vmem:[#allocation7 + $0x68] sm:$0xff]
    %v4590 = vld [vmem:[#allocation7 + $0x70] sm:$0xff]
    %v4591 = vld [vmem:[#allocation7 + $0x78] sm:$0xff]
    %v4592 = vld [vmem:[#allocation7 + $0x80] sm:$0xff]
    %v4593 = vld [vmem:[#allocation7 + $0x88] sm:$0xff]
    %v4594 = vld [vmem:[#allocation7 + $0x90] sm:$0xff]
    %v4595 = vld [vmem:[#allocation7 + $0x98] sm:$0xff]
    %v4596 = vld [vmem:[#allocation7 + $0xa0] sm:$0xff]
    %v4597 = vld [vmem:[#allocation7 + $0xa8] sm:$0xff]
    %v4598 = vld [vmem:[#allocation7 + $0xb0] sm:$0xff]
    %v4599 = vld [vmem:[#allocation7 + $0xb8] sm:$0xff]
    %v4600 = vld [vmem:[#allocation7 + $0xc0] sm:$0xff]
    %v4601 = vld [vmem:[#allocation7 + $0xc8] sm:$0xff]
    %v4602 = vld [vmem:[#allocation7 + $0xd0] sm:$0xff]
    %v4603 = vld [vmem:[#allocation7 + $0xd8] sm:$0xff]
    %v4604 = vld [vmem:[#allocation7 + $0xe0] sm:$0xff]
    %v4605 = vld [vmem:[#allocation7 + $0xe8] sm:$0xff]
    %v4606 = vld [vmem:[#allocation7 + $0xf0] sm:$0xff]
    %v4607 = vld [vmem:[#allocation7 + $0xf8] sm:$0xff]
    %v4608 = vld [vmem:[#allocation7 + $0x100] sm:$0xff]
    %v4609 = vld [vmem:[#allocation7 + $0x108] sm:$0xff]
    %v4610 = vld [vmem:[#allocation7 + $0x110] sm:$0xff]
    %v4611 = vld [vmem:[#allocation7 + $0x118] sm:$0xff]
    %v4612 = vld [vmem:[#allocation7 + $0x120] sm:$0xff]
    %v4613 = vld [vmem:[#allocation7 + $0x128] sm:$0xff]
    %v4614 = vld [vmem:[#allocation7 + $0x130] sm:$0xff]
    %v4615 = vld [vmem:[#allocation7 + $0x138] sm:$0xff]
    %v4616 = vld [vmem:[#allocation7 + $0x140] sm:$0xff]
    %v4617 = vld [vmem:[#allocation7 + $0x148] sm:$0xff]
    %v4618 = vld [vmem:[#allocation7 + $0x150] sm:$0xff]
    %v4619 = vld [vmem:[#allocation7 + $0x158] sm:$0xff]
    %v4620 = vld [vmem:[#allocation7 + $0x160] sm:$0xff]
    %v4621 = vld [vmem:[#allocation7 + $0x168] sm:$0xff]
    %v4622 = vld [vmem:[#allocation7 + $0x170] sm:$0xff]
    %v4623 = vld [vmem:[#allocation7 + $0x178] sm:$0xff]
    %v4624 = vld [vmem:[#allocation7 + $0x180] sm:$0xff]
    %v4625 = vld [vmem:[#allocation7 + $0x188] sm:$0xff]
    %v4626 = vld [vmem:[#allocation7 + $0x190] sm:$0xff]
    %v4627 = vld [vmem:[#allocation7 + $0x198] sm:$0xff]
    %v4628 = vld [vmem:[#allocation7 + $0x1a0] sm:$0xff]
    %v4629 = vld [vmem:[#allocation7 + $0x1a8] sm:$0xff]
    %v4630 = vld [vmem:[#allocation7 + $0x1b0] sm:$0xff]
    %v4631 = vld [vmem:[#allocation7 + $0x1b8] sm:$0xff]
    %v4632 = vld [vmem:[#allocation7 + $0x1c0] sm:$0xff]
    %v4633 = vld [vmem:[#allocation7 + $0x1c8] sm:$0xff]
    %v4634 = vld [vmem:[#allocation7 + $0x1d0] sm:$0xff]
    %v4635 = vld [vmem:[#allocation7 + $0x1d8] sm:$0xff]
    %v4636 = vld [vmem:[#allocation7 + $0x1e0] sm:$0xff]
    %v4637 = vld [vmem:[#allocation7 + $0x1e8] sm:$0xff]
    %v4638 = vld [vmem:[#allocation7 + $0x1f0] sm:$0xff]
    %v4639 = vld [vmem:[#allocation7 + $0x1f8] sm:$0xff]
    %v4640 = vld [vmem:[#allocation8] sm:$0xf]
    %v4642 = vperm.slane %v4640, 0
    %v4643 = vperm.slane %v4640, 1
    %v4644 = vperm.slane %v4640, 2
    %v4645 = vperm.slane %v4640, 3
    %v4714 = vunpack.c.l.b16 %v4576
    %v4715 = vunpack.c.h.b16 %v4576
    %v4716 = vunpack.c.l.b16 %v4577
    %v4717 = vunpack.c.h.b16 %v4577
    %v4718 = vunpack.c.l.b16 %v4578
    %v4719 = vunpack.c.h.b16 %v4578
    %v4720 = vunpack.c.l.b16 %v4579
    %v4721 = vunpack.c.h.b16 %v4579
    %v4722 = vunpack.c.l.b16 %v4580
    %v4723 = vunpack.c.h.b16 %v4580
    %v4724 = vunpack.c.l.b16 %v4581
    %v4725 = vunpack.c.h.b16 %v4581
    %v4726 = vunpack.c.l.b16 %v4582
    %v4727 = vunpack.c.h.b16 %v4582
    %v4728 = vunpack.c.l.b16 %v4583
    %v4729 = vunpack.c.h.b16 %v4583
    %v4730 = vunpack.c.l.b16 %v4584
    %v4731 = vunpack.c.h.b16 %v4584
    %v4732 = vunpack.c.l.b16 %v4585
    %v4733 = vunpack.c.h.b16 %v4585
    %v4734 = vunpack.c.l.b16 %v4586
    %v4735 = vunpack.c.h.b16 %v4586
    %v4736 = vunpack.c.l.b16 %v4587
    %v4737 = vunpack.c.h.b16 %v4587
    %v4738 = vunpack.c.l.b16 %v4588
    %v4739 = vunpack.c.h.b16 %v4588
    %v4740 = vunpack.c.l.b16 %v4589
    %v4741 = vunpack.c.h.b16 %v4589
    %v4742 = vunpack.c.l.b16 %v4590
    %v4743 = vunpack.c.h.b16 %v4590
    %v4744 = vunpack.c.l.b16 %v4591
    %v4745 = vunpack.c.h.b16 %v4591
    %v4746 = vunpack.c.l.b16 %v4592
    %v4747 = vunpack.c.h.b16 %v4592
    %v4748 = vunpack.c.l.b16 %v4593
    %v4749 = vunpack.c.h.b16 %v4593
    %v4750 = vunpack.c.l.b16 %v4594
    %v4751 = vunpack.c.h.b16 %v4594
    %v4752 = vunpack.c.l.b16 %v4595
    %v4753 = vunpack.c.h.b16 %v4595
    %v4754 = vunpack.c.l.b16 %v4596
    %v4755 = vunpack.c.h.b16 %v4596
    %v4756 = vunpack.c.l.b16 %v4597
    %v4757 = vunpack.c.h.b16 %v4597
    %v4758 = vunpack.c.l.b16 %v4598
    %v4759 = vunpack.c.h.b16 %v4598
    %v4760 = vunpack.c.l.b16 %v4599
    %v4761 = vunpack.c.h.b16 %v4599
    %v4762 = vunpack.c.l.b16 %v4600
    %v4763 = vunpack.c.h.b16 %v4600
    %v4764 = vunpack.c.l.b16 %v4601
    %v4765 = vunpack.c.h.b16 %v4601
    %v4766 = vunpack.c.l.b16 %v4602
    %v4767 = vunpack.c.h.b16 %v4602
    %v4768 = vunpack.c.l.b16 %v4603
    %v4769 = vunpack.c.h.b16 %v4603
    %v4770 = vunpack.c.l.b16 %v4604
    %v4771 = vunpack.c.h.b16 %v4604
    %v4772 = vunpack.c.l.b16 %v4605
    %v4773 = vunpack.c.h.b16 %v4605
    %v4774 = vunpack.c.l.b16 %v4606
    %v4775 = vunpack.c.h.b16 %v4606
    %v4776 = vunpack.c.l.b16 %v4607
    %v4777 = vunpack.c.h.b16 %v4607
    %v4778 = vunpack.c.l.b16 %v4608
    %v4779 = vunpack.c.h.b16 %v4608
    %v4780 = vunpack.c.l.b16 %v4609
    %v4781 = vunpack.c.h.b16 %v4609
    %v4782 = vunpack.c.l.b16 %v4610
    %v4783 = vunpack.c.h.b16 %v4610
    %v4784 = vunpack.c.l.b16 %v4611
    %v4785 = vunpack.c.h.b16 %v4611
    %v4786 = vunpack.c.l.b16 %v4612
    %v4787 = vunpack.c.h.b16 %v4612
    %v4788 = vunpack.c.l.b16 %v4613
    %v4789 = vunpack.c.h.b16 %v4613
    %v4790 = vunpack.c.l.b16 %v4614
    %v4791 = vunpack.c.h.b16 %v4614
    %v4792 = vunpack.c.l.b16 %v4615
    %v4793 = vunpack.c.h.b16 %v4615
    %v4794 = vunpack.c.l.b16 %v4616
    %v4795 = vunpack.c.h.b16 %v4616
    %v4796 = vunpack.c.l.b16 %v4617
    %v4797 = vunpack.c.h.b16 %v4617
    %v4798 = vunpack.c.l.b16 %v4618
    %v4799 = vunpack.c.h.b16 %v4618
    %v4800 = vunpack.c.l.b16 %v4619
    %v4801 = vunpack.c.h.b16 %v4619
    %v4802 = vunpack.c.l.b16 %v4620
    %v4803 = vunpack.c.h.b16 %v4620
    %v4804 = vunpack.c.l.b16 %v4621
    %v4805 = vunpack.c.h.b16 %v4621
    %v4806 = vunpack.c.l.b16 %v4622
    %v4807 = vunpack.c.h.b16 %v4622
    %v4808 = vunpack.c.l.b16 %v4623
    %v4809 = vunpack.c.h.b16 %v4623
    %v4810 = vunpack.c.l.b16 %v4624
    %v4811 = vunpack.c.h.b16 %v4624
    %v4812 = vunpack.c.l.b16 %v4625
    %v4813 = vunpack.c.h.b16 %v4625
    %v4814 = vunpack.c.l.b16 %v4626
    %v4815 = vunpack.c.h.b16 %v4626
    %v4816 = vunpack.c.l.b16 %v4627
    %v4817 = vunpack.c.h.b16 %v4627
    %v4818 = vunpack.c.l.b16 %v4628
    %v4819 = vunpack.c.h.b16 %v4628
    %v4820 = vunpack.c.l.b16 %v4629
    %v4821 = vunpack.c.h.b16 %v4629
    %v4822 = vunpack.c.l.b16 %v4630
    %v4823 = vunpack.c.h.b16 %v4630
    %v4824 = vunpack.c.l.b16 %v4631
    %v4825 = vunpack.c.h.b16 %v4631
    %v4826 = vunpack.c.l.b16 %v4632
    %v4827 = vunpack.c.h.b16 %v4632
    %v4828 = vunpack.c.l.b16 %v4633
    %v4829 = vunpack.c.h.b16 %v4633
    %v4830 = vunpack.c.l.b16 %v4634
    %v4831 = vunpack.c.h.b16 %v4634
    %v4832 = vunpack.c.l.b16 %v4635
    %v4833 = vunpack.c.h.b16 %v4635
    %v4834 = vunpack.c.l.b16 %v4636
    %v4835 = vunpack.c.h.b16 %v4636
    %v4836 = vunpack.c.l.b16 %v4637
    %v4837 = vunpack.c.h.b16 %v4637
    %v4838 = vunpack.c.l.b16 %v4638
    %v4839 = vunpack.c.h.b16 %v4638
    %v4840 = vunpack.c.l.b16 %v4639
    %v4841 = vunpack.c.h.b16 %v4639
    %v4842 = vpack.c.b16 %v4718, %v4714
    %v4843 = vpack.c.b16 %v4719, %v4715
    %v4844 = vpack.c.b16 %v4720, %v4716
    %v4845 = vpack.c.b16 %v4721, %v4717
    %v4846 = vpack.c.b16 %v4726, %v4722
    %v4847 = vpack.c.b16 %v4727, %v4723
    %v4848 = vpack.c.b16 %v4728, %v4724
    %v4849 = vpack.c.b16 %v4729, %v4725
    %v4850 = vpack.c.b16 %v4734, %v4730
    %v4851 = vpack.c.b16 %v4735, %v4731
    %v4852 = vpack.c.b16 %v4736, %v4732
    %v4853 = vpack.c.b16 %v4737, %v4733
    %v4854 = vpack.c.b16 %v4742, %v4738
    %v4855 = vpack.c.b16 %v4743, %v4739
    %v4856 = vpack.c.b16 %v4744, %v4740
    %v4857 = vpack.c.b16 %v4745, %v4741
    %v4858 = vpack.c.b16 %v4750, %v4746
    %v4859 = vpack.c.b16 %v4751, %v4747
    %v4860 = vpack.c.b16 %v4752, %v4748
    %v4861 = vpack.c.b16 %v4753, %v4749
    %v4862 = vpack.c.b16 %v4758, %v4754
    %v4863 = vpack.c.b16 %v4759, %v4755
    %v4864 = vpack.c.b16 %v4760, %v4756
    %v4865 = vpack.c.b16 %v4761, %v4757
    %v4866 = vpack.c.b16 %v4766, %v4762
    %v4867 = vpack.c.b16 %v4767, %v4763
    %v4868 = vpack.c.b16 %v4768, %v4764
    %v4869 = vpack.c.b16 %v4769, %v4765
    %v4870 = vpack.c.b16 %v4774, %v4770
    %v4871 = vpack.c.b16 %v4775, %v4771
    %v4872 = vpack.c.b16 %v4776, %v4772
    %v4873 = vpack.c.b16 %v4777, %v4773
    %v4874 = vpack.c.b16 %v4782, %v4778
    %v4875 = vpack.c.b16 %v4783, %v4779
    %v4876 = vpack.c.b16 %v4784, %v4780
    %v4877 = vpack.c.b16 %v4785, %v4781
    %v4878 = vpack.c.b16 %v4790, %v4786
    %v4879 = vpack.c.b16 %v4791, %v4787
    %v4880 = vpack.c.b16 %v4792, %v4788
    %v4881 = vpack.c.b16 %v4793, %v4789
    %v4882 = vpack.c.b16 %v4798, %v4794
    %v4883 = vpack.c.b16 %v4799, %v4795
    %v4884 = vpack.c.b16 %v4800, %v4796
    %v4885 = vpack.c.b16 %v4801, %v4797
    %v4886 = vpack.c.b16 %v4806, %v4802
    %v4887 = vpack.c.b16 %v4807, %v4803
    %v4888 = vpack.c.b16 %v4808, %v4804
    %v4889 = vpack.c.b16 %v4809, %v4805
    %v4890 = vpack.c.b16 %v4814, %v4810
    %v4891 = vpack.c.b16 %v4815, %v4811
    %v4892 = vpack.c.b16 %v4816, %v4812
    %v4893 = vpack.c.b16 %v4817, %v4813
    %v4894 = vpack.c.b16 %v4822, %v4818
    %v4895 = vpack.c.b16 %v4823, %v4819
    %v4896 = vpack.c.b16 %v4824, %v4820
    %v4897 = vpack.c.b16 %v4825, %v4821
    %v4898 = vpack.c.b16 %v4830, %v4826
    %v4899 = vpack.c.b16 %v4831, %v4827
    %v4900 = vpack.c.b16 %v4832, %v4828
    %v4901 = vpack.c.b16 %v4833, %v4829
    %v4902 = vpack.c.b16 %v4838, %v4834
    %v4903 = vpack.c.b16 %v4839, %v4835
    %v4904 = vpack.c.b16 %v4840, %v4836
    %v4905 = vpack.c.b16 %v4841, %v4837
    %4970 = vmatpush.bf16.msra.mxu0 %v4870
    %4971 = vmatpush.bf16.msra.mxu0 %v4866
    %4972 = vmatpush.bf16.msra.mxu0 %v4862
    %4973 = vmatpush.bf16.msra.mxu0 %v4858
    %4974 = vmatpush.bf16.msra.mxu0 %v4854
    %4975 = vmatpush.bf16.msra.mxu0 %v4850
    %4976 = vmatpush.bf16.msra.mxu0 %v4846
    %4977 = vmatpush.bf16.msra.mxu0 %v4842
    %4978 = vmatmul.bf16.gmra.mxu0 %v4575
    %v4979 = vpop.f32.mrf.mxu0
    %v4980 = vadd.f32 %v4642, %v4979
    %v4981 = vpop.f32.mrf.mxu0
    %4982 = vdwg.mxu0
    %4983 = vmatpush.bf16.msra.mxu0 %v4902
    %4984 = vmatpush.bf16.msra.mxu0 %v4898
    %4985 = vmatpush.bf16.msra.mxu0 %v4894
    %4986 = vmatpush.bf16.msra.mxu0 %v4890
    %4987 = vmatpush.bf16.msra.mxu0 %v4886
    %4988 = vmatpush.bf16.msra.mxu0 %v4882
    %4989 = vmatpush.bf16.msra.mxu0 %v4878
    %4990 = vmatpush.bf16.msra.mxu0 %v4874
    %4991 = vmatmul.bf16.gmra.mxu0 %v4480
    %v4992 = vpop.f32.mrf.mxu0
    %v4993 = vadd.f32 %v4980, %v4992
    %v4994 = vpop.f32.mrf.mxu0
    %4995 = vdwg.mxu0
    %4996 = vmatpush.bf16.msra.mxu0 %v4871
    %4997 = vmatpush.bf16.msra.mxu0 %v4867
    %4998 = vmatpush.bf16.msra.mxu0 %v4863
    %4999 = vmatpush.bf16.msra.mxu0 %v4859
    %5000 = vmatpush.bf16.msra.mxu0 %v4855
    %5001 = vmatpush.bf16.msra.mxu0 %v4851
    %5002 = vmatpush.bf16.msra.mxu0 %v4847
    %5003 = vmatpush.bf16.msra.mxu0 %v4843
    %5004 = vmatmul.bf16.gmra.mxu0 %v4575
    %v5005 = vpop.f32.mrf.mxu0
    %v5006 = vadd.f32 %v4643, %v5005
    %v5007 = vpop.f32.mrf.mxu0
    %5008 = vdwg.mxu0
    %5009 = vmatpush.bf16.msra.mxu0 %v4903
    %5010 = vmatpush.bf16.msra.mxu0 %v4899
    %5011 = vmatpush.bf16.msra.mxu0 %v4895
    %5012 = vmatpush.bf16.msra.mxu0 %v4891
    %5013 = vmatpush.bf16.msra.mxu0 %v4887
    %5014 = vmatpush.bf16.msra.mxu0 %v4883
    %5015 = vmatpush.bf16.msra.mxu0 %v4879
    %5016 = vmatpush.bf16.msra.mxu0 %v4875
    %5017 = vmatmul.bf16.gmra.mxu0 %v4480
    %v5018 = vpop.f32.mrf.mxu0
    %v5019 = vadd.f32 %v5006, %v5018
    %v5020 = vpop.f32.mrf.mxu0
    %5021 = vdwg.mxu0
    %5022 = vmatpush.bf16.msra.mxu0 %v4872
    %5023 = vmatpush.bf16.msra.mxu0 %v4868
    %5024 = vmatpush.bf16.msra.mxu0 %v4864
    %5025 = vmatpush.bf16.msra.mxu0 %v4860
    %5026 = vmatpush.bf16.msra.mxu0 %v4856
    %5027 = vmatpush.bf16.msra.mxu0 %v4852
    %5028 = vmatpush.bf16.msra.mxu0 %v4848
    %5029 = vmatpush.bf16.msra.mxu0 %v4844
    %5030 = vmatmul.bf16.gmra.mxu0 %v4575
    %v5031 = vpop.f32.mrf.mxu0
    %v5032 = vadd.f32 %v4644, %v5031
    %v5033 = vpop.f32.mrf.mxu0
    %5034 = vdwg.mxu0
    %5035 = vmatpush.bf16.msra.mxu0 %v4904
    %5036 = vmatpush.bf16.msra.mxu0 %v4900
    %5037 = vmatpush.bf16.msra.mxu0 %v4896
    %5038 = vmatpush.bf16.msra.mxu0 %v4892
    %5039 = vmatpush.bf16.msra.mxu0 %v4888
    %5040 = vmatpush.bf16.msra.mxu0 %v4884
    %5041 = vmatpush.bf16.msra.mxu0 %v4880
    %5042 = vmatpush.bf16.msra.mxu0 %v4876
    %5043 = vmatmul.bf16.gmra.mxu0 %v4480
    %v5044 = vpop.f32.mrf.mxu0
    %v5045 = vadd.f32 %v5032, %v5044
    %v5046 = vpop.f32.mrf.mxu0
    %5047 = vdwg.mxu0
    %5048 = vmatpush.bf16.msra.mxu0 %v4873
    %5049 = vmatpush.bf16.msra.mxu0 %v4869
    %5050 = vmatpush.bf16.msra.mxu0 %v4865
    %5051 = vmatpush.bf16.msra.mxu0 %v4861
    %5052 = vmatpush.bf16.msra.mxu0 %v4857
    %5053 = vmatpush.bf16.msra.mxu0 %v4853
    %5054 = vmatpush.bf16.msra.mxu0 %v4849
    %5055 = vmatpush.bf16.msra.mxu0 %v4845
    %5056 = vmatmul.bf16.gmra.mxu0 %v4575
    %v5057 = vpop.f32.mrf.mxu0
    %v5058 = vadd.f32 %v4645, %v5057
    %v5059 = vpop.f32.mrf.mxu0
    %5060 = vdwg.mxu0
    %5061 = vmatpush.bf16.msra.mxu0 %v4905
    %5062 = vmatpush.bf16.msra.mxu0 %v4901
    %5063 = vmatpush.bf16.msra.mxu0 %v4897
    %5064 = vmatpush.bf16.msra.mxu0 %v4893
    %5065 = vmatpush.bf16.msra.mxu0 %v4889
    %5066 = vmatpush.bf16.msra.mxu0 %v4885
    %5067 = vmatpush.bf16.msra.mxu0 %v4881
    %5068 = vmatpush.bf16.msra.mxu0 %v4877
    %5069 = vmatmul.bf16.gmra.mxu0 %v4480
    %v5070 = vpop.f32.mrf.mxu0
    %v5071 = vadd.f32 %v5058, %v5070
    %v5072 = vpop.f32.mrf.mxu0
    %5073 = vdwg.mxu0
    %v5074 = vxor.u32 %v4993, 2147483648
    %v5075 = vmul.f32 %v5074, 1.442695
    %v5076 = vpow.pop %v5075
    %v5077 = vadd.f32 %v5076, 1.0
    %v5078 = vrcp.pop %v5077
    %v5079 = vmul.f32 %v5077, %v5078
    %v5080 = vsub.f32 1.0, %v5079
    %v5081 = vmul.f32 %v5078, %v5080
    %v5082 = vadd.f32 %v5078, %v5081
    %vm5083 = vweird.f32 %v5077
    %vm5084 = vweird.f32 %v5078
    %vm5085 = vmor %vm5083, %vm5084
    %v5086 = vsel %vm5085, %v5078, %v5082
    %v5087 = vand.u32 2147483647, %v5077
    %vm5088 = vcmp.eq.f32.partialorder %v5087, 8.507059e+37
    %v5089 = vand.u32 %v5077, 2147483648
    %v5090 = vor.u32 1.1754944e-38, %v5089
    %v5091 = vsel %vm5088, %v5090, %v5086
    %v5092 = vmul.f32 1.0, %v5091
    %v5093 = vxor.u32 %v5019, 2147483648
    %v5094 = vmul.f32 %v5093, 1.442695
    %v5095 = vpow.pop %v5094
    %v5096 = vadd.f32 %v5095, 1.0
    %v5097 = vrcp.pop %v5096
    %v5098 = vmul.f32 %v5096, %v5097
    %v5099 = vsub.f32 1.0, %v5098
    %v5100 = vmul.f32 %v5097, %v5099
    %v5101 = vadd.f32 %v5097, %v5100
    %vm5102 = vweird.f32 %v5096
    %vm5103 = vweird.f32 %v5097
    %vm5104 = vmor %vm5102, %vm5103
    %v5105 = vsel %vm5104, %v5097, %v5101
    %v5106 = vand.u32 2147483647, %v5096
    %vm5107 = vcmp.eq.f32.partialorder %v5106, 8.507059e+37
    %v5108 = vand.u32 %v5096, 2147483648
    %v5109 = vor.u32 1.1754944e-38, %v5108
    %v5110 = vsel %vm5107, %v5109, %v5105
    %v5111 = vmul.f32 1.0, %v5110
    %v5112 = vmul.f32 %v5092, %v5071
    %v5113 = vadd.f32 %v5045, %v5112
    %v5114 = vtanh.pop %v5113
    %v5115 = vsub.f32 1.0, %v5111
    %v5116 = vmul.f32 %v5115, %v5114
    %v5117 = vmul.f32 %v5111, %v4479
    %v5118 = vadd.f32 %v5116, %v5117
    %v5119 = vpack.c.bf16 %v5118, %v5118
    %v5120 = vld [vmem:[#allocation10] sm:$0xf]
    %v5121 = vld [vmem:[#allocation10 + $0x4] sm:$0xf]
    %v5122 = vld [vmem:[#allocation10 + $0x8] sm:$0xf]
    %v5123 = vld [vmem:[#allocation10 + $0xc] sm:$0xf]
    %v5124 = vld [vmem:[#allocation10 + $0x10] sm:$0xf]
    %v5125 = vld [vmem:[#allocation10 + $0x14] sm:$0xf]
    %v5126 = vld [vmem:[#allocation10 + $0x18] sm:$0xf]
    %v5127 = vld [vmem:[#allocation10 + $0x1c] sm:$0xf]
    %v5128 = vld [vmem:[#allocation10 + $0x20] sm:$0xf]
    %v5129 = vld [vmem:[#allocation10 + $0x24] sm:$0xf]
    %v5130 = vld [vmem:[#allocation10 + $0x28] sm:$0xf]
    %v5131 = vld [vmem:[#allocation10 + $0x2c] sm:$0xf]
    %v5132 = vld [vmem:[#allocation10 + $0x30] sm:$0xf]
    %v5133 = vld [vmem:[#allocation10 + $0x34] sm:$0xf]
    %v5134 = vld [vmem:[#allocation10 + $0x38] sm:$0xf]
    %v5135 = vld [vmem:[#allocation10 + $0x3c] sm:$0xf]
    %v5136 = vld [vmem:[%s5] sm:$0x1]
    %v5138 = vperm.slane %v5136, 0
    %v5156 = vunpack.c.l.b16 %v5120
    %v5157 = vunpack.c.l.b16 %v5121
    %v5158 = vunpack.c.l.b16 %v5122
    %v5159 = vunpack.c.l.b16 %v5123
    %v5160 = vunpack.c.l.b16 %v5124
    %v5161 = vunpack.c.l.b16 %v5125
    %v5162 = vunpack.c.l.b16 %v5126
    %v5163 = vunpack.c.l.b16 %v5127
    %v5164 = vunpack.c.l.b16 %v5128
    %v5165 = vunpack.c.l.b16 %v5129
    %v5166 = vunpack.c.l.b16 %v5130
    %v5167 = vunpack.c.l.b16 %v5131
    %v5168 = vunpack.c.l.b16 %v5132
    %v5169 = vunpack.c.l.b16 %v5133
    %v5170 = vunpack.c.l.b16 %v5134
    %v5171 = vunpack.c.l.b16 %v5135
    %v5172 = vpack.c.b16 %v5157, %v5156
    %v5173 = vpack.c.b16 %v5159, %v5158
    %v5174 = vpack.c.b16 %v5161, %v5160
    %v5175 = vpack.c.b16 %v5163, %v5162
    %v5176 = vpack.c.b16 %v5165, %v5164
    %v5177 = vpack.c.b16 %v5167, %v5166
    %v5178 = vpack.c.b16 %v5169, %v5168
    %v5179 = vpack.c.b16 %v5171, %v5170
    %5188 = vmatpush.bf16.msra.mxu0 %v5179
    %5189 = vmatpush.bf16.msra.mxu0 %v5178
    %5190 = vmatpush.bf16.msra.mxu0 %v5177
    %5191 = vmatpush.bf16.msra.mxu0 %v5176
    %5192 = vmatpush.bf16.msra.mxu0 %v5175
    %5193 = vmatpush.bf16.msra.mxu0 %v5174
    %5194 = vmatpush.bf16.msra.mxu0 %v5173
    %5195 = vmatpush.bf16.msra.mxu0 %v5172
    %5196 = vmatmul.bf16.gmra.mxu0 %v5119
    %v5197 = vpop.f32.mrf.mxu0
    %v5198 = vadd.f32 %v5138, %v5197
    %v5199 = vpop.f32.mrf.mxu0
    %5200 = vdwg.mxu0
    %5201 = vmax.xlane.f32.xlu0 %v5198
    %v5202 = vpop.xlane.xlu0 %5201
    %v5203 = vsub.f32 %v5198, %v5202
    %v5204 = vmul.f32 %v5203, 1.442695
    %v5205 = vpow.pop %v5204
    %5206 = vadd.xlane.f32.xlu0 %v5205
    %v5207 = vpop.xlane.xlu0 %5206
    %v5208 = vlog2.pop %v5207
    %v5209 = vmul.f32 %v5208, 0.6931472
    %v5210 = vsub.f32 %v5203, %v5209
    %s5211 = scalar_lea.vmem [#allocation11], 56
    %5212 = vst [vmem:[%s5211] sm:$0xff] %v5210
    %5213 = vst [vmem:[#allocation12] sm:$0xff] %v5118
    // Predicated region
    $region46: #{tpu_custom_call.1} parent=1 // pred_check
      _
    $region47: #{tpu_custom_call.1} parent=1 // pred_check_branch
      %5215 = sbr.rel (0) target = $region49
    $region48: #{tpu_custom_call.1} parent=1 // pred_region
      %5217 = vsyncadd [#allocation4], 0
      %s5218 = sshll.u32 [#allocation11], 4
      %s5219 = int_to_ptr.vmem [resolvable:$true] %s5218
      %s5220 = sshll.u32 %s6, 4
      %s5221 = int_to_ptr.hbm [resolvable:$true] %s5220
      %5226 = dma.vmem_to_hbm [thread:$0]  %s5219, 1024, %s5221, [#allocation4], 128, 128, 8
    $region49: #{tpu_custom_call.1} parent=1 // pred_fallthru
      _
    // Predicated region
    $region50: #{tpu_custom_call.1} parent=1 // pred_check
      _
    $region51: #{tpu_custom_call.1} parent=1 // pred_check_branch
      %5228 = sbr.rel (0) target = $region53
    $region52: #{tpu_custom_call.1} parent=1 // pred_region
      %5230 = vsyncadd [#allocation13], 0
      %s5232 = sshll.u32 [#allocation12], 4
      %s5233 = int_to_ptr.vmem [resolvable:$true] %s5232
      %s5234 = sshll.u32 %s7, 4
      %s5235 = int_to_ptr.hbm [resolvable:$true] %s5234
      %5237 = dma.vmem_to_hbm [thread:$0]  %s5233, 128, %s5235, [#allocation13]
    $region53: #{tpu_custom_call.1} parent=1 // pred_fallthru
      _
    // Predicated region
    $region54: #{tpu_custom_call.1} parent=1 // pred_check
      _
    $region55: #{tpu_custom_call.1} parent=1 // pred_check_branch
      %5239 = sbr.rel (0) target = $region57
    $region56: #{tpu_custom_call.1} parent=1 // pred_region
      %5241 = dma.done [#allocation4], 1024
    $region57: #{tpu_custom_call.1} parent=1 // pred_fallthru
      _
    // Predicated region
    $region58: #{tpu_custom_call.1} parent=1 // pred_check
      _
    $region59: #{tpu_custom_call.1} parent=1 // pred_check_branch
      %5243 = sbr.rel (0) target = $region61
    $region60: #{tpu_custom_call.1} parent=1 // pred_region
      %5245 = dma.done [#allocation13], 128
    $region61: #{tpu_custom_call.1} parent=1 // pred_fallthru
      _
    %5246 = vsyncpa [#allocation3], 1
    %5247 = vsyncpa [#allocation6], 1
    %5248 = vsyncpa [#allocation9], 1
    %5249 = vsyncpa [#allocation4], 1
    %5250 = vsyncpa [#allocation13], 1

</llo_original>
